<compile_context>
chip_gen: v5e
topology: v5e:2x2
jax: 0.10.0
libtpu: 0.0.40
codegen_flags: <defaults>
</compile_context>

<pallas_src>
import jax
import jax.numpy as jnp
from jax.experimental import pallas as pl
from jax.experimental.pallas import tpu as pltpu


def _bilinear_matrix(in_size: int, out_size: int) -> jnp.ndarray:
    """(out_size, in_size) 1-D bilinear interpolation matrix, align_corners=True
    (matches nn.UpsamplingBilinear2d)."""
    if in_size == 1:
        return jnp.ones((out_size, 1), jnp.float32)
    src = jnp.arange(out_size, dtype=jnp.float32) * (in_size - 1) / (out_size - 1)
    i0 = jnp.clip(jnp.floor(src).astype(jnp.int32), 0, in_size - 2)
    frac = src - i0.astype(jnp.float32)
    rows = jnp.arange(out_size)
    m = jnp.zeros((out_size, in_size), jnp.float32)
    m = m.at[rows, i0].add(1.0 - frac)
    m = m.at[rows, i0 + 1].add(frac)
    return m


def sematic_embbed_block(high_x, low_x, w3_oihw, b3, w1_oi, b1):
    """high_x: (N, Ch, H, W), low_x: (N, Cl, 2H, 2W)  (NCHW, like PyTorch).
    w3_oihw: (Co, Ch, 3, 3), b3: (Co,), w1_oi: (Co, Cl), b1: (Co,).
    Returns (N, Co, 2H, 2W) float32, NCHW."""
    f32, bf16 = jnp.float32, jnp.bfloat16
    N, Ch, H, W = high_x.shape
    Nl, Cl, Ho, Wo = low_x.shape
    Co = w3_oihw.shape[0]
    assert Nl == N and Ho == 2 * H and Wo == 2 * W
    HoWo = Ho * Wo
    Wp = W + 2                                    # padded row width
    Hw = H * Wp                                   # "wide" conv output length
    Lp = pl.cdiv((H + 2) * Wp + 2, 128) * 128     # lane-padded flat input length

    # Output-channel block: 256 fills the v6e/v7x 256-wide MXU, 128 suits v5e's
    # 4x128x128 MXU and non-256-multiple Co; tiny Co -> one full block.
    cb = Co
    for cand in (256, 128):
        if Co % cand == 0:
            cb = cand
            break
    nc = Co // cb

    # ------------------- host-side operand prep (no im2col) -----------------
    hp = jnp.pad(high_x.astype(f32), ((0, 0), (0, 0), (1, 1), (1, 1)))
    hpf = hp.reshape(N, Ch, (H + 2) * Wp)                            # free
    hpf = jnp.pad(hpf, ((0, 0), (0, 0), (0, Lp - (H + 2) * Wp))).astype(bf16)

    lowf = low_x.astype(f32).reshape(N, Cl, HoWo).astype(bf16)       # free

    # 3x3 weights with taps (dy,dx) major, input channel minor: (Co, 9*Ch).
    w3f = jnp.transpose(w3_oihw.astype(f32), (0, 2, 3, 1)).reshape(Co, 9 * Ch)
    w3f = w3f.astype(bf16)
    w1f = w1_oi.astype(bf16)
    b3c = b3.astype(f32).reshape(Co, 1)
    b1c = b1.astype(f32).reshape(Co, 1)

    uh = _bilinear_matrix(H, Ho).astype(bf16)        # (Ho, H)
    uwt = _bilinear_matrix(W, Wo).T.astype(bf16)     # (W, Wo)

    # ----------------------------- fused kernel -----------------------------
    def kernel(hpf_ref, low_ref, w3_ref, b3_ref, w1_ref, b1_ref,
               uh_ref, uwt_ref, out_ref, yw_scr, y3_scr, u_scr):
        # conv3x3 as nine accumulating MXU matmuls over lane-shifted slices of
        # the flat padded input ("wide" layout: W+2 columns per row; the last
        # two of each row are garbage and dropped below).
        yw = None
        for k in range(9):
            dy, dx = divmod(k, 3)
            s = dy * Wp + dx
            tap = hpf_ref[0, :, s:s + Hw]                        # (Ch, Hw) bf16
            wk = w3_ref[:, k * Ch:(k + 1) * Ch]                  # (cb, Ch) bf16
            d = jnp.dot(wk, tap, preferred_element_type=jnp.float32)
            yw = d if yw is None else yw + d
        yw_scr[...] = (yw + b3_ref[...]).astype(yw_scr.dtype)    # f32 bias add

        # drop the 2 garbage columns of every row: (cb, Hw) -> (cb, H, W).
        for h in range(H):
            y3_scr[:, h, :] = yw_scr[:, h * Wp: h * Wp + W]

        # separable bilinear 2x upsample (align_corners=True), batched over the
        # channel block; the 2-D operators are broadcast in-registers here
        # (no duplicated host-side DMA of cb copies).
        uh_b = jnp.broadcast_to(uh_ref[...], (cb, Ho, H))
        t = jnp.einsum('coh,chw->cow', uh_b, y3_scr[...],
                       preferred_element_type=jnp.float32)       # (cb, Ho, W)
        uw_b = jnp.broadcast_to(uwt_ref[...], (cb, W, Wo))
        u_scr[...] = jnp.einsum('cow,cwp->cop', t.astype(jnp.bfloat16), uw_b,
                                preferred_element_type=jnp.float32)  # (cb,Ho,Wo)

        # conv1x1 on low_x in lane-dense flat-spatial layout, f32 bias.
        z = jnp.dot(w1_ref[...], low_ref[0],
                    preferred_element_type=jnp.float32) + b1_ref[...]  # (cb,HoWo)

        # fuse and store row-by-row into the lane-dense (cb, Ho*Wo) out block.
        for o in range(Ho):
            out_ref[0, :, o * Wo:(o + 1) * Wo] = (
                u_scr[:, o, :] * z[:, o * Wo:(o + 1) * Wo]).astype(out_ref.dtype)

    # VMEM budget from the actual double-buffered block bytes + scratch + live
    # intermediates (with headroom).
    # TODO(synk): cap nearer 48 MiB when specifically targeting v7x (64 MiB).
    bytes_in = (Ch * Lp + Cl * HoWo + cb * 9 * Ch + cb * Cl
                + Ho * H + W * Wo) * 2 + 2 * cb * 4
    bytes_out = cb * HoWo * 4
    bytes_scr = (cb * Hw + cb * H * W) * 2 + cb * Ho * Wo * 4
    bytes_live = cb * (Hw + Ho * W + HoWo) * 4 + cb * (Ho * H + W * Wo) * 2
    vmem_need = 2 * (bytes_in + bytes_out) + bytes_scr + bytes_live
    vmem_limit = int(min(100 * 2**20, max(32 * 2**20, int(1.25 * vmem_need))))

    flops = int(2 * N * Co * (9 * Ch * Hw + Cl * HoWo + Ho * H * W + Ho * W * Wo)
                + N * Co * HoWo)
    bytes_accessed = int(hpf.size * 2 + lowf.size * 2 + w3f.size * 2
                         + w1f.size * 2 + 2 * Co * 4 + (Ho * H + W * Wo) * 2
                         + N * Co * HoWo * 4)

    out_flat = pl.pallas_call(
        kernel,
        out_shape=jax.ShapeDtypeStruct((N, Co, HoWo), f32),
        grid_spec=pltpu.PrefetchScalarGridSpec(
            num_scalar_prefetch=0,
            grid=(N, nc),
            in_specs=[
                pl.BlockSpec((1, Ch, Lp), lambda n, c: (n, 0, 0)),
                pl.BlockSpec((1, Cl, HoWo), lambda n, c: (n, 0, 0)),
                pl.BlockSpec((cb, 9 * Ch), lambda n, c: (c, 0)),
                pl.BlockSpec((cb, 1), lambda n, c: (c, 0)),
                pl.BlockSpec((cb, Cl), lambda n, c: (c, 0)),
                pl.BlockSpec((cb, 1), lambda n, c: (c, 0)),
                pl.BlockSpec((Ho, H), lambda n, c: (0, 0)),
                pl.BlockSpec((W, Wo), lambda n, c: (0, 0)),
            ],
            out_specs=pl.BlockSpec((1, cb, HoWo), lambda n, c: (n, c, 0)),
            scratch_shapes=[
                pltpu.VMEM((cb, Hw), bf16),      # wide conv3x3 output
                pltpu.VMEM((cb, H, W), bf16),    # valid-column conv3x3 output
                pltpu.VMEM((cb, Ho, Wo), f32),   # upsampled conv3x3 output
            ]),
        compiler_params=pltpu.CompilerParams(
            dimension_semantics=("parallel", "parallel"),
            vmem_limit_bytes=vmem_limit),
        cost_estimate=pl.CostEstimate(
            flops=flops, transcendentals=0, bytes_accessed=bytes_accessed),
    )(hpf, lowf, w3f, b3c, w1f, b1c, uh, uwt)

    return out_flat.reshape(N, Co, Ho, Wo)   # free NCHW view of the dense slab


def _reference(high_x, low_x, w3_oihw, b3, w1_oi, b1):
    """Pure-JAX f32 reference matching PyTorch semantics (align_corners=True)."""
    y = jax.lax.conv_general_dilated(
        high_x, w3_oihw, (1, 1), ((1, 1), (1, 1)),
        dimension_numbers=('NCHW', 'OIHW', 'NCHW'))
    y = y + b3[None, :, None, None]
    H, W = high_x.shape[2], high_x.shape[3]
    uh = _bilinear_matrix(H, 2 * H)
    uw = _bilinear_matrix(W, 2 * W)
    up = jnp.einsum('oh,nchw->ncow', uh, y)
    up = jnp.einsum('pw,ncow->ncop', uw, up)
    low = jax.lax.conv_general_dilated(
        low_x, w1_oi[:, :, None, None], (1, 1), ((0, 0), (0, 0)),
        dimension_numbers=('NCHW', 'OIHW', 'NCHW'))
    low = low + b1[None, :, None, None]
    return up * low


if __name__ == "__main__":
    key = jax.random.PRNGKey(0)
    N, Ch, Cl, Co, H, W = 2, 4, 6, 8, 16, 16
    k1, k2, k3, k4, k5, k6 = jax.random.split(key, 6)

    high_x = jax.random.normal(k1, (N, Ch, H, W), jnp.float32)
    low_x = jax.random.normal(k2, (N, Cl, 2 * H, 2 * W), jnp.float32)

    # Deterministic synthetic parameters (PyTorch layouts).
    w3_oihw = jax.random.normal(k3, (Co, Ch, 3, 3), jnp.float32) * 0.1
    b3 = jax.random.normal(k4, (Co,), jnp.float32) * 0.1
    w1_oi = jax.random.normal(k5, (Co, Cl), jnp.float32) * 0.1
    b1 = jax.random.normal(k6, (Co,), jnp.float32) * 0.1

    out = sematic_embbed_block(high_x, low_x, w3_oihw, b3, w1_oi, b1)
    out = jax.block_until_ready(out)

    ref = _reference(high_x, low_x, w3_oihw, b3, w1_oi, b1)
    assert out.shape == ref.shape == (N, Co, 2 * H, 2 * W), (out.shape, ref.shape)
    # bf16 MXU operands -> mixed absolute/relative tolerance.
    ok = jnp.all(jnp.abs(out - ref) <= 1e-2 + 3e-2 * jnp.abs(ref))
    assert bool(ok), float(jnp.max(jnp.abs(out - ref)))

    print("KERNEL_OK")
</pallas_src>

<mosaic_0001>
module attributes {stable_mosaic.version = 11 : i64} {
  func.func @kernel(%arg0: i32, %arg1: i32, %arg2: memref<1x4x384xbf16, #tpu.memory_space<vmem>>, %arg3: memref<1x6x1024xbf16, #tpu.memory_space<vmem>>, %arg4: memref<8x36xbf16, #tpu.memory_space<vmem>>, %arg5: memref<8x1xf32, #tpu.memory_space<vmem>>, %arg6: memref<8x6xbf16, #tpu.memory_space<vmem>>, %arg7: memref<8x1xf32, #tpu.memory_space<vmem>>, %arg8: memref<32x16xbf16, #tpu.memory_space<vmem>>, %arg9: memref<16x32xbf16, #tpu.memory_space<vmem>>, %arg10: memref<1x8x1024xf32, #tpu.memory_space<vmem>>, %arg11: memref<8x288xbf16, #tpu.memory_space<vmem>>, %arg12: memref<8x16x16xbf16, #tpu.memory_space<vmem>>, %arg13: memref<8x32x32xf32, #tpu.memory_space<vmem>>) attributes {dimension_semantics = [#tpu.dimension_semantics<parallel>, #tpu.dimension_semantics<parallel>], iteration_bounds = array<i64: 2, 1>, scalar_prefetch = 0 : i64, scratch_operands = 3 : i64, tpu.core_type = #tpu.core_type<tc>, window_params = [{transform_indices = @transform_0, window_bounds = array<i64: 1, 4, 384>}, {transform_indices = @transform_1, window_bounds = array<i64: 1, 6, 1024>}, {transform_indices = @transform_2, window_bounds = array<i64: 8, 36>}, {transform_indices = @transform_3, window_bounds = array<i64: 8, 1>}, {transform_indices = @transform_4, window_bounds = array<i64: 8, 6>}, {transform_indices = @transform_5, window_bounds = array<i64: 8, 1>}, {pipeline_mode = #tpu.pipeline_mode<synchronous>, transform_indices = @transform_6, window_bounds = array<i64: 32, 16>}, {pipeline_mode = #tpu.pipeline_mode<synchronous>, transform_indices = @transform_7, window_bounds = array<i64: 16, 32>}, {transform_indices = @transform_8, window_bounds = array<i64: 1, 8, 1024>}]} {
    %c0 = arith.constant 0 : index
    %c0_0 = arith.constant 0 : index
    %c0_1 = arith.constant 0 : index
    %0 = vector.load %arg2[%c0, %c0_0, %c0_1] : memref<1x4x384xbf16, #tpu.memory_space<vmem>>, vector<1x4x288xbf16>
    %1 = vector.shape_cast %0 : vector<1x4x288xbf16> to vector<4x288xbf16>
    %c0_2 = arith.constant 0 : index
    %c0_3 = arith.constant 0 : index
    %2 = vector.load %arg4[%c0_2, %c0_3] : memref<8x36xbf16, #tpu.memory_space<vmem>>, vector<8x4xbf16>
    %cst = arith.constant dense<0.000000e+00> : vector<8x288xf32>
    %3 = tpu.matmul %2, %1, %cst {dimension_numbers = #tpu.dot_dimension_numbers<[1], [0], [0], [1], [0, 0, 1, 1], [], []>} : vector<8x4xbf16>, vector<4x288xbf16>, vector<8x288xf32> -> vector<8x288xf32>
    %c0_4 = arith.constant 0 : index
    %c0_5 = arith.constant 0 : index
    %c1 = arith.constant 1 : index
    %4 = vector.load %arg2[%c0_4, %c0_5, %c1] : memref<1x4x384xbf16, #tpu.memory_space<vmem>>, vector<1x4x288xbf16>
    %5 = vector.shape_cast %4 : vector<1x4x288xbf16> to vector<4x288xbf16>
    %c0_6 = arith.constant 0 : index
    %c4 = arith.constant 4 : index
    %6 = vector.load %arg4[%c0_6, %c4] : memref<8x36xbf16, #tpu.memory_space<vmem>>, vector<8x4xbf16>
    %cst_7 = arith.constant dense<0.000000e+00> : vector<8x288xf32>
    %7 = tpu.matmul %6, %5, %cst_7 {dimension_numbers = #tpu.dot_dimension_numbers<[1], [0], [0], [1], [0, 0, 1, 1], [], []>} : vector<8x4xbf16>, vector<4x288xbf16>, vector<8x288xf32> -> vector<8x288xf32>
    %8 = arith.addf %3, %7 : vector<8x288xf32>
    %c0_8 = arith.constant 0 : index
    %c0_9 = arith.constant 0 : index
    %c2 = arith.constant 2 : index
    %9 = vector.load %arg2[%c0_8, %c0_9, %c2] : memref<1x4x384xbf16, #tpu.memory_space<vmem>>, vector<1x4x288xbf16>
    %10 = vector.shape_cast %9 : vector<1x4x288xbf16> to vector<4x288xbf16>
    %c0_10 = arith.constant 0 : index
    %c8 = arith.constant 8 : index
    %11 = vector.load %arg4[%c0_10, %c8] : memref<8x36xbf16, #tpu.memory_space<vmem>>, vector<8x4xbf16>
    %cst_11 = arith.constant dense<0.000000e+00> : vector<8x288xf32>
    %12 = tpu.matmul %11, %10, %cst_11 {dimension_numbers = #tpu.dot_dimension_numbers<[1], [0], [0], [1], [0, 0, 1, 1], [], []>} : vector<8x4xbf16>, vector<4x288xbf16>, vector<8x288xf32> -> vector<8x288xf32>
    %13 = arith.addf %8, %12 : vector<8x288xf32>
    %c0_12 = arith.constant 0 : index
    %c0_13 = arith.constant 0 : index
    %c18 = arith.constant 18 : index
    %14 = vector.load %arg2[%c0_12, %c0_13, %c18] : memref<1x4x384xbf16, #tpu.memory_space<vmem>>, vector<1x4x288xbf16>
    %15 = vector.shape_cast %14 : vector<1x4x288xbf16> to vector<4x288xbf16>
    %c0_14 = arith.constant 0 : index
    %c12 = arith.constant 12 : index
    %16 = vector.load %arg4[%c0_14, %c12] : memref<8x36xbf16, #tpu.memory_space<vmem>>, vector<8x4xbf16>
    %cst_15 = arith.constant dense<0.000000e+00> : vector<8x288xf32>
    %17 = tpu.matmul %16, %15, %cst_15 {dimension_numbers = #tpu.dot_dimension_numbers<[1], [0], [0], [1], [0, 0, 1, 1], [], []>} : vector<8x4xbf16>, vector<4x288xbf16>, vector<8x288xf32> -> vector<8x288xf32>
    %18 = arith.addf %13, %17 : vector<8x288xf32>
    %c0_16 = arith.constant 0 : index
    %c0_17 = arith.constant 0 : index
    %c19 = arith.constant 19 : index
    %19 = vector.load %arg2[%c0_16, %c0_17, %c19] : memref<1x4x384xbf16, #tpu.memory_space<vmem>>, vector<1x4x288xbf16>
    %20 = vector.shape_cast %19 : vector<1x4x288xbf16> to vector<4x288xbf16>
    %c0_18 = arith.constant 0 : index
    %c16 = arith.constant 16 : index
    %21 = vector.load %arg4[%c0_18, %c16] : memref<8x36xbf16, #tpu.memory_space<vmem>>, vector<8x4xbf16>
    %cst_19 = arith.constant dense<0.000000e+00> : vector<8x288xf32>
    %22 = tpu.matmul %21, %20, %cst_19 {dimension_numbers = #tpu.dot_dimension_numbers<[1], [0], [0], [1], [0, 0, 1, 1], [], []>} : vector<8x4xbf16>, vector<4x288xbf16>, vector<8x288xf32> -> vector<8x288xf32>
    %23 = arith.addf %18, %22 : vector<8x288xf32>
    %c0_20 = arith.constant 0 : index
    %c0_21 = arith.constant 0 : index
    %c20 = arith.constant 20 : index
    %24 = vector.load %arg2[%c0_20, %c0_21, %c20] : memref<1x4x384xbf16, #tpu.memory_space<vmem>>, vector<1x4x288xbf16>
    %25 = vector.shape_cast %24 : vector<1x4x288xbf16> to vector<4x288xbf16>
    %c0_22 = arith.constant 0 : index
    %c20_23 = arith.constant 20 : index
    %26 = vector.load %arg4[%c0_22, %c20_23] : memref<8x36xbf16, #tpu.memory_space<vmem>>, vector<8x4xbf16>
    %cst_24 = arith.constant dense<0.000000e+00> : vector<8x288xf32>
    %27 = tpu.matmul %26, %25, %cst_24 {dimension_numbers = #tpu.dot_dimension_numbers<[1], [0], [0], [1], [0, 0, 1, 1], [], []>} : vector<8x4xbf16>, vector<4x288xbf16>, vector<8x288xf32> -> vector<8x288xf32>
    %28 = arith.addf %23, %27 : vector<8x288xf32>
    %c0_25 = arith.constant 0 : index
    %c0_26 = arith.constant 0 : index
    %c36 = arith.constant 36 : index
    %29 = vector.load %arg2[%c0_25, %c0_26, %c36] : memref<1x4x384xbf16, #tpu.memory_space<vmem>>, vector<1x4x288xbf16>
    %30 = vector.shape_cast %29 : vector<1x4x288xbf16> to vector<4x288xbf16>
    %c0_27 = arith.constant 0 : index
    %c24 = arith.constant 24 : index
    %31 = vector.load %arg4[%c0_27, %c24] : memref<8x36xbf16, #tpu.memory_space<vmem>>, vector<8x4xbf16>
    %cst_28 = arith.constant dense<0.000000e+00> : vector<8x288xf32>
    %32 = tpu.matmul %31, %30, %cst_28 {dimension_numbers = #tpu.dot_dimension_numbers<[1], [0], [0], [1], [0, 0, 1, 1], [], []>} : vector<8x4xbf16>, vector<4x288xbf16>, vector<8x288xf32> -> vector<8x288xf32>
    %33 = arith.addf %28, %32 : vector<8x288xf32>
    %c0_29 = arith.constant 0 : index
    %c0_30 = arith.constant 0 : index
    %c37 = arith.constant 37 : index
    %34 = vector.load %arg2[%c0_29, %c0_30, %c37] : memref<1x4x384xbf16, #tpu.memory_space<vmem>>, vector<1x4x288xbf16>
    %35 = vector.shape_cast %34 : vector<1x4x288xbf16> to vector<4x288xbf16>
    %c0_31 = arith.constant 0 : index
    %c28 = arith.constant 28 : index
    %36 = vector.load %arg4[%c0_31, %c28] : memref<8x36xbf16, #tpu.memory_space<vmem>>, vector<8x4xbf16>
    %cst_32 = arith.constant dense<0.000000e+00> : vector<8x288xf32>
    %37 = tpu.matmul %36, %35, %cst_32 {dimension_numbers = #tpu.dot_dimension_numbers<[1], [0], [0], [1], [0, 0, 1, 1], [], []>} : vector<8x4xbf16>, vector<4x288xbf16>, vector<8x288xf32> -> vector<8x288xf32>
    %38 = arith.addf %33, %37 : vector<8x288xf32>
    %c0_33 = arith.constant 0 : index
    %c0_34 = arith.constant 0 : index
    %c38 = arith.constant 38 : index
    %39 = vector.load %arg2[%c0_33, %c0_34, %c38] : memref<1x4x384xbf16, #tpu.memory_space<vmem>>, vector<1x4x288xbf16>
    %40 = vector.shape_cast %39 : vector<1x4x288xbf16> to vector<4x288xbf16>
    %c0_35 = arith.constant 0 : index
    %c32 = arith.constant 32 : index
    %41 = vector.load %arg4[%c0_35, %c32] : memref<8x36xbf16, #tpu.memory_space<vmem>>, vector<8x4xbf16>
    %cst_36 = arith.constant dense<0.000000e+00> : vector<8x288xf32>
    %42 = tpu.matmul %41, %40, %cst_36 {dimension_numbers = #tpu.dot_dimension_numbers<[1], [0], [0], [1], [0, 0, 1, 1], [], []>} : vector<8x4xbf16>, vector<4x288xbf16>, vector<8x288xf32> -> vector<8x288xf32>
    %43 = arith.addf %38, %42 : vector<8x288xf32>
    %c0_37 = arith.constant 0 : index
    %c0_38 = arith.constant 0 : index
    %44 = vector.load %arg5[%c0_37, %c0_38] : memref<8x1xf32, #tpu.memory_space<vmem>>, vector<8x1xf32>
    %45 = vector.broadcast %44 : vector<8x1xf32> to vector<8x288xf32>
    %46 = arith.addf %43, %45 : vector<8x288xf32>
    %47 = arith.truncf %46 : vector<8x288xf32> to vector<8x288xbf16>
    %c0_39 = arith.constant 0 : index
    %c0_40 = arith.constant 0 : index
    %48 = vector.load %arg11[%c0_39, %c0_40] : memref<8x288xbf16, #tpu.memory_space<vmem>>, vector<8x288xbf16>
    tpu.vector_store %arg11[%c0_39, %c0_40], %47 {strides = array<i32>} : memref<8x288xbf16, #tpu.memory_space<vmem>>, vector<8x288xbf16>,
    %c0_41 = arith.constant 0 : index
    %c0_42 = arith.constant 0 : index
    %49 = vector.load %arg11[%c0_41, %c0_42] : memref<8x288xbf16, #tpu.memory_space<vmem>>, vector<8x16xbf16>
    %c0_43 = arith.constant 0 : index
    %c0_44 = arith.constant 0 : index
    %c0_45 = arith.constant 0 : index
    %50 = vector.load %arg12[%c0_43, %c0_44, %c0_45] : memref<8x16x16xbf16, #tpu.memory_space<vmem>>, vector<8x1x16xbf16>
    %51 = vector.shape_cast %50 : vector<8x1x16xbf16> to vector<8x16xbf16>
    %52 = vector.shape_cast %49 : vector<8x16xbf16> to vector<8x1x16xbf16>
    tpu.vector_store %arg12[%c0_43, %c0_44, %c0_45], %52 {strides = array<i32>} : memref<8x16x16xbf16, #tpu.memory_space<vmem>>, vector<8x1x16xbf16>,
    %c0_46 = arith.constant 0 : index
    %c18_47 = arith.constant 18 : index
    %53 = vector.load %arg11[%c0_46, %c18_47] : memref<8x288xbf16, #tpu.memory_space<vmem>>, vector<8x16xbf16>
    %c0_48 = arith.constant 0 : index
    %c1_49 = arith.constant 1 : index
    %c0_50 = arith.constant 0 : index
    %54 = vector.load %arg12[%c0_48, %c1_49, %c0_50] : memref<8x16x16xbf16, #tpu.memory_space<vmem>>, vector<8x1x16xbf16>
    %55 = vector.shape_cast %54 : vector<8x1x16xbf16> to vector<8x16xbf16>
    %56 = vector.shape_cast %53 : vector<8x16xbf16> to vector<8x1x16xbf16>
    tpu.vector_store %arg12[%c0_48, %c1_49, %c0_50], %56 {strides = array<i32>} : memref<8x16x16xbf16, #tpu.memory_space<vmem>>, vector<8x1x16xbf16>,
    %c0_51 = arith.constant 0 : index
    %c36_52 = arith.constant 36 : index
    %57 = vector.load %arg11[%c0_51, %c36_52] : memref<8x288xbf16, #tpu.memory_space<vmem>>, vector<8x16xbf16>
    %c0_53 = arith.constant 0 : index
    %c2_54 = arith.constant 2 : index
    %c0_55 = arith.constant 0 : index
    %58 = vector.load %arg12[%c0_53, %c2_54, %c0_55] : memref<8x16x16xbf16, #tpu.memory_space<vmem>>, vector<8x1x16xbf16>
    %59 = vector.shape_cast %58 : vector<8x1x16xbf16> to vector<8x16xbf16>
    %60 = vector.shape_cast %57 : vector<8x16xbf16> to vector<8x1x16xbf16>
    tpu.vector_store %arg12[%c0_53, %c2_54, %c0_55], %60 {strides = array<i32>} : memref<8x16x16xbf16, #tpu.memory_space<vmem>>, vector<8x1x16xbf16>,
    %c0_56 = arith.constant 0 : index
    %c54 = arith.constant 54 : index
    %61 = vector.load %arg11[%c0_56, %c54] : memref<8x288xbf16, #tpu.memory_space<vmem>>, vector<8x16xbf16>
    %c0_57 = arith.constant 0 : index
    %c3 = arith.constant 3 : index
    %c0_58 = arith.constant 0 : index
    %62 = vector.load %arg12[%c0_57, %c3, %c0_58] : memref<8x16x16xbf16, #tpu.memory_space<vmem>>, vector<8x1x16xbf16>
    %63 = vector.shape_cast %62 : vector<8x1x16xbf16> to vector<8x16xbf16>
    %64 = vector.shape_cast %61 : vector<8x16xbf16> to vector<8x1x16xbf16>
    tpu.vector_store %arg12[%c0_57, %c3, %c0_58], %64 {strides = array<i32>} : memref<8x16x16xbf16, #tpu.memory_space<vmem>>, vector<8x1x16xbf16>,
    %c0_59 = arith.constant 0 : index
    %c72 = arith.constant 72 : index
    %65 = vector.load %arg11[%c0_59, %c72] : memref<8x288xbf16, #tpu.memory_space<vmem>>, vector<8x16xbf16>
    %c0_60 = arith.constant 0 : index
    %c4_61 = arith.constant 4 : index
    %c0_62 = arith.constant 0 : index
    %66 = vector.load %arg12[%c0_60, %c4_61, %c0_62] : memref<8x16x16xbf16, #tpu.memory_space<vmem>>, vector<8x1x16xbf16>
    %67 = vector.shape_cast %66 : vector<8x1x16xbf16> to vector<8x16xbf16>
    %68 = vector.shape_cast %65 : vector<8x16xbf16> to vector<8x1x16xbf16>
    tpu.vector_store %arg12[%c0_60, %c4_61, %c0_62], %68 {strides = array<i32>} : memref<8x16x16xbf16, #tpu.memory_space<vmem>>, vector<8x1x16xbf16>,
    %c0_63 = arith.constant 0 : index
    %c90 = arith.constant 90 : index
    %69 = vector.load %arg11[%c0_63, %c90] : memref<8x288xbf16, #tpu.memory_space<vmem>>, vector<8x16xbf16>
    %c0_64 = arith.constant 0 : index
    %c5 = arith.constant 5 : index
    %c0_65 = arith.constant 0 : index
    %70 = vector.load %arg12[%c0_64, %c5, %c0_65] : memref<8x16x16xbf16, #tpu.memory_space<vmem>>, vector<8x1x16xbf16>
    %71 = vector.shape_cast %70 : vector<8x1x16xbf16> to vector<8x16xbf16>
    %72 = vector.shape_cast %69 : vector<8x16xbf16> to vector<8x1x16xbf16>
    tpu.vector_store %arg12[%c0_64, %c5, %c0_65], %72 {strides = array<i32>} : memref<8x16x16xbf16, #tpu.memory_space<vmem>>, vector<8x1x16xbf16>,
    %c0_66 = arith.constant 0 : index
    %c108 = arith.constant 108 : index
    %73 = vector.load %arg11[%c0_66, %c108] : memref<8x288xbf16, #tpu.memory_space<vmem>>, vector<8x16xbf16>
    %c0_67 = arith.constant 0 : index
    %c6 = arith.constant 6 : index
    %c0_68 = arith.constant 0 : index
    %74 = vector.load %arg12[%c0_67, %c6, %c0_68] : memref<8x16x16xbf16, #tpu.memory_space<vmem>>, vector<8x1x16xbf16>
    %75 = vector.shape_cast %74 : vector<8x1x16xbf16> to vector<8x16xbf16>
    %76 = vector.shape_cast %73 : vector<8x16xbf16> to vector<8x1x16xbf16>
    tpu.vector_store %arg12[%c0_67, %c6, %c0_68], %76 {strides = array<i32>} : memref<8x16x16xbf16, #tpu.memory_space<vmem>>, vector<8x1x16xbf16>,
    %c0_69 = arith.constant 0 : index
    %c126 = arith.constant 126 : index
    %77 = vector.load %arg11[%c0_69, %c126] : memref<8x288xbf16, #tpu.memory_space<vmem>>, vector<8x16xbf16>
    %c0_70 = arith.constant 0 : index
    %c7 = arith.constant 7 : index
    %c0_71 = arith.constant 0 : index
    %78 = vector.load %arg12[%c0_70, %c7, %c0_71] : memref<8x16x16xbf16, #tpu.memory_space<vmem>>, vector<8x1x16xbf16>
    %79 = vector.shape_cast %78 : vector<8x1x16xbf16> to vector<8x16xbf16>
    %80 = vector.shape_cast %77 : vector<8x16xbf16> to vector<8x1x16xbf16>
    tpu.vector_store %arg12[%c0_70, %c7, %c0_71], %80 {strides = array<i32>} : memref<8x16x16xbf16, #tpu.memory_space<vmem>>, vector<8x1x16xbf16>,
    %c0_72 = arith.constant 0 : index
    %c144 = arith.constant 144 : index
    %81 = vector.load %arg11[%c0_72, %c144] : memref<8x288xbf16, #tpu.memory_space<vmem>>, vector<8x16xbf16>
    %c0_73 = arith.constant 0 : index
    %c8_74 = arith.constant 8 : index
    %c0_75 = arith.constant 0 : index
    %82 = vector.load %arg12[%c0_73, %c8_74, %c0_75] : memref<8x16x16xbf16, #tpu.memory_space<vmem>>, vector<8x1x16xbf16>
    %83 = vector.shape_cast %82 : vector<8x1x16xbf16> to vector<8x16xbf16>
    %84 = vector.shape_cast %81 : vector<8x16xbf16> to vector<8x1x16xbf16>
    tpu.vector_store %arg12[%c0_73, %c8_74, %c0_75], %84 {strides = array<i32>} : memref<8x16x16xbf16, #tpu.memory_space<vmem>>, vector<8x1x16xbf16>,
    %c0_76 = arith.constant 0 : index
    %c162 = arith.constant 162 : index
    %85 = vector.load %arg11[%c0_76, %c162] : memref<8x288xbf16, #tpu.memory_space<vmem>>, vector<8x16xbf16>
    %c0_77 = arith.constant 0 : index
    %c9 = arith.constant 9 : index
    %c0_78 = arith.constant 0 : index
    %86 = vector.load %arg12[%c0_77, %c9, %c0_78] : memref<8x16x16xbf16, #tpu.memory_space<vmem>>, vector<8x1x16xbf16>
    %87 = vector.shape_cast %86 : vector<8x1x16xbf16> to vector<8x16xbf16>
    %88 = vector.shape_cast %85 : vector<8x16xbf16> to vector<8x1x16xbf16>
    tpu.vector_store %arg12[%c0_77, %c9, %c0_78], %88 {strides = array<i32>} : memref<8x16x16xbf16, #tpu.memory_space<vmem>>, vector<8x1x16xbf16>,
    %c0_79 = arith.constant 0 : index
    %c180 = arith.constant 180 : index
    %89 = vector.load %arg11[%c0_79, %c180] : memref<8x288xbf16, #tpu.memory_space<vmem>>, vector<8x16xbf16>
    %c0_80 = arith.constant 0 : index
    %c10 = arith.constant 10 : index
    %c0_81 = arith.constant 0 : index
    %90 = vector.load %arg12[%c0_80, %c10, %c0_81] : memref<8x16x16xbf16, #tpu.memory_space<vmem>>, vector<8x1x16xbf16>
    %91 = vector.shape_cast %90 : vector<8x1x16xbf16> to vector<8x16xbf16>
    %92 = vector.shape_cast %89 : vector<8x16xbf16> to vector<8x1x16xbf16>
    tpu.vector_store %arg12[%c0_80, %c10, %c0_81], %92 {strides = array<i32>} : memref<8x16x16xbf16, #tpu.memory_space<vmem>>, vector<8x1x16xbf16>,
    %c0_82 = arith.constant 0 : index
    %c198 = arith.constant 198 : index
    %93 = vector.load %arg11[%c0_82, %c198] : memref<8x288xbf16, #tpu.memory_space<vmem>>, vector<8x16xbf16>
    %c0_83 = arith.constant 0 : index
    %c11 = arith.constant 11 : index
    %c0_84 = arith.constant 0 : index
    %94 = vector.load %arg12[%c0_83, %c11, %c0_84] : memref<8x16x16xbf16, #tpu.memory_space<vmem>>, vector<8x1x16xbf16>
    %95 = vector.shape_cast %94 : vector<8x1x16xbf16> to vector<8x16xbf16>
    %96 = vector.shape_cast %93 : vector<8x16xbf16> to vector<8x1x16xbf16>
    tpu.vector_store %arg12[%c0_83, %c11, %c0_84], %96 {strides = array<i32>} : memref<8x16x16xbf16, #tpu.memory_space<vmem>>, vector<8x1x16xbf16>,
    %c0_85 = arith.constant 0 : index
    %c216 = arith.constant 216 : index
    %97 = vector.load %arg11[%c0_85, %c216] : memref<8x288xbf16, #tpu.memory_space<vmem>>, vector<8x16xbf16>
    %c0_86 = arith.constant 0 : index
    %c12_87 = arith.constant 12 : index
    %c0_88 = arith.constant 0 : index
    %98 = vector.load %arg12[%c0_86, %c12_87, %c0_88] : memref<8x16x16xbf16, #tpu.memory_space<vmem>>, vector<8x1x16xbf16>
    %99 = vector.shape_cast %98 : vector<8x1x16xbf16> to vector<8x16xbf16>
    %100 = vector.shape_cast %97 : vector<8x16xbf16> to vector<8x1x16xbf16>
    tpu.vector_store %arg12[%c0_86, %c12_87, %c0_88], %100 {strides = array<i32>} : memref<8x16x16xbf16, #tpu.memory_space<vmem>>, vector<8x1x16xbf16>,
    %c0_89 = arith.constant 0 : index
    %c234 = arith.constant 234 : index
    %101 = vector.load %arg11[%c0_89, %c234] : memref<8x288xbf16, #tpu.memory_space<vmem>>, vector<8x16xbf16>
    %c0_90 = arith.constant 0 : index
    %c13 = arith.constant 13 : index
    %c0_91 = arith.constant 0 : index
    %102 = vector.load %arg12[%c0_90, %c13, %c0_91] : memref<8x16x16xbf16, #tpu.memory_space<vmem>>, vector<8x1x16xbf16>
    %103 = vector.shape_cast %102 : vector<8x1x16xbf16> to vector<8x16xbf16>
    %104 = vector.shape_cast %101 : vector<8x16xbf16> to vector<8x1x16xbf16>
    tpu.vector_store %arg12[%c0_90, %c13, %c0_91], %104 {strides = array<i32>} : memref<8x16x16xbf16, #tpu.memory_space<vmem>>, vector<8x1x16xbf16>,
    %c0_92 = arith.constant 0 : index
    %c252 = arith.constant 252 : index
    %105 = vector.load %arg11[%c0_92, %c252] : memref<8x288xbf16, #tpu.memory_space<vmem>>, vector<8x16xbf16>
    %c0_93 = arith.constant 0 : index
    %c14 = arith.constant 14 : index
    %c0_94 = arith.constant 0 : index
    %106 = vector.load %arg12[%c0_93, %c14, %c0_94] : memref<8x16x16xbf16, #tpu.memory_space<vmem>>, vector<8x1x16xbf16>
    %107 = vector.shape_cast %106 : vector<8x1x16xbf16> to vector<8x16xbf16>
    %108 = vector.shape_cast %105 : vector<8x16xbf16> to vector<8x1x16xbf16>
    tpu.vector_store %arg12[%c0_93, %c14, %c0_94], %108 {strides = array<i32>} : memref<8x16x16xbf16, #tpu.memory_space<vmem>>, vector<8x1x16xbf16>,
    %c0_95 = arith.constant 0 : index
    %c270 = arith.constant 270 : index
    %109 = vector.load %arg11[%c0_95, %c270] : memref<8x288xbf16, #tpu.memory_space<vmem>>, vector<8x16xbf16>
    %c0_96 = arith.constant 0 : index
    %c15 = arith.constant 15 : index
    %c0_97 = arith.constant 0 : index
    %110 = vector.load %arg12[%c0_96, %c15, %c0_97] : memref<8x16x16xbf16, #tpu.memory_space<vmem>>, vector<8x1x16xbf16>
    %111 = vector.shape_cast %110 : vector<8x1x16xbf16> to vector<8x16xbf16>
    %112 = vector.shape_cast %109 : vector<8x16xbf16> to vector<8x1x16xbf16>
    tpu.vector_store %arg12[%c0_96, %c15, %c0_97], %112 {strides = array<i32>} : memref<8x16x16xbf16, #tpu.memory_space<vmem>>, vector<8x1x16xbf16>,
    %c0_98 = arith.constant 0 : index
    %c0_99 = arith.constant 0 : index
    %113 = vector.load %arg8[%c0_98, %c0_99] : memref<32x16xbf16, #tpu.memory_space<vmem>>, vector<32x16xbf16>
    %114 = vector.shape_cast %113 : vector<32x16xbf16> to vector<1x32x16xbf16>
    %115 = vector.broadcast %114 : vector<1x32x16xbf16> to vector<8x32x16xbf16>
    %c0_100 = arith.constant 0 : index
    %c0_101 = arith.constant 0 : index
    %c0_102 = arith.constant 0 : index
    %116 = vector.load %arg12[%c0_100, %c0_101, %c0_102] : memref<8x16x16xbf16, #tpu.memory_space<vmem>>, vector<8x16x16xbf16>
    "tpu.trace_start"() <{level = 10 : i32, message = "coh,chw->cow"}> : () -> ()
    %cst_103 = arith.constant dense<0.000000e+00> : vector<8x32x16xf32>
    %117 = tpu.matmul %115, %116, %cst_103 {dimension_numbers = #tpu.dot_dimension_numbers<[2], [1], [1], [2], [0, 0, 0, 1, 1, 2], [0], [0]>} : vector<8x32x16xbf16>, vector<8x16x16xbf16>, vector<8x32x16xf32> -> vector<8x32x16xf32>
    "tpu.trace_stop"() : () -> ()
    %c0_104 = arith.constant 0 : index
    %c0_105 = arith.constant 0 : index
    %118 = vector.load %arg9[%c0_104, %c0_105] : memref<16x32xbf16, #tpu.memory_space<vmem>>, vector<16x32xbf16>
    %119 = vector.shape_cast %118 : vector<16x32xbf16> to vector<1x16x32xbf16>
    %120 = vector.broadcast %119 : vector<1x16x32xbf16> to vector<8x16x32xbf16>
    %121 = arith.truncf %117 : vector<8x32x16xf32> to vector<8x32x16xbf16>
    "tpu.trace_start"() <{level = 10 : i32, message = "cow,cwp->cop"}> : () -> ()
    %cst_106 = arith.constant dense<0.000000e+00> : vector<8x32x32xf32>
    %122 = tpu.matmul %121, %120, %cst_106 {dimension_numbers = #tpu.dot_dimension_numbers<[2], [1], [1], [2], [0, 0, 0, 1, 1, 2], [0], [0]>} : vector<8x32x16xbf16>, vector<8x16x32xbf16>, vector<8x32x32xf32> -> vector<8x32x32xf32>
    "tpu.trace_stop"() : () -> ()
    %c0_107 = arith.constant 0 : index
    %c0_108 = arith.constant 0 : index
    %c0_109 = arith.constant 0 : index
    %123 = vector.load %arg13[%c0_107, %c0_108, %c0_109] : memref<8x32x32xf32, #tpu.memory_space<vmem>>, vector<8x32x32xf32>
    tpu.vector_store %arg13[%c0_107, %c0_108, %c0_109], %122 {strides = array<i32>} : memref<8x32x32xf32, #tpu.memory_space<vmem>>, vector<8x32x32xf32>,
    %c0_110 = arith.constant 0 : index
    %c0_111 = arith.constant 0 : index
    %124 = vector.load %arg6[%c0_110, %c0_111] : memref<8x6xbf16, #tpu.memory_space<vmem>>, vector<8x6xbf16>
    %c0_112 = arith.constant 0 : index
    %c0_113 = arith.constant 0 : index
    %c0_114 = arith.constant 0 : index
    %125 = vector.load %arg3[%c0_112, %c0_113, %c0_114] : memref<1x6x1024xbf16, #tpu.memory_space<vmem>>, vector<1x6x1024xbf16>
    %126 = vector.shape_cast %125 : vector<1x6x1024xbf16> to vector<6x1024xbf16>
    %cst_115 = arith.constant dense<0.000000e+00> : vector<8x1024xf32>
    %127 = tpu.matmul %124, %126, %cst_115 {dimension_numbers = #tpu.dot_dimension_numbers<[1], [0], [0], [1], [0, 0, 1, 1], [], []>} : vector<8x6xbf16>, vector<6x1024xbf16>, vector<8x1024xf32> -> vector<8x1024xf32>
    %c0_116 = arith.constant 0 : index
    %c0_117 = arith.constant 0 : index
    %128 = vector.load %arg7[%c0_116, %c0_117] : memref<8x1xf32, #tpu.memory_space<vmem>>, vector<8x1xf32>
    %129 = vector.broadcast %128 : vector<8x1xf32> to vector<8x1024xf32>
    %130 = arith.addf %127, %129 : vector<8x1024xf32>
    %c0_118 = arith.constant 0 : index
    %c0_119 = arith.constant 0 : index
    %c0_120 = arith.constant 0 : index
    %131 = vector.load %arg13[%c0_118, %c0_119, %c0_120] : memref<8x32x32xf32, #tpu.memory_space<vmem>>, vector<8x1x32xf32>
    %132 = vector.shape_cast %131 : vector<8x1x32xf32> to vector<8x32xf32>
    %133 = vector.extract_strided_slice %130 {offsets = [0, 0], sizes = [8, 32], strides = [1, 1]} : vector<8x1024xf32> to vector<8x32xf32>
    %134 = arith.mulf %132, %133 : vector<8x32xf32>
    %c0_121 = arith.constant 0 : index
    %c0_122 = arith.constant 0 : index
    %c0_123 = arith.constant 0 : index
    %135 = vector.load %arg10[%c0_121, %c0_122, %c0_123] : memref<1x8x1024xf32, #tpu.memory_space<vmem>>, vector<1x8x32xf32>
    %136 = vector.shape_cast %135 : vector<1x8x32xf32> to vector<8x32xf32>
    %137 = vector.shape_cast %134 : vector<8x32xf32> to vector<1x8x32xf32>
    tpu.vector_store %arg10[%c0_121, %c0_122, %c0_123], %137 {strides = array<i32>} : memref<1x8x1024xf32, #tpu.memory_space<vmem>>, vector<1x8x32xf32>,
    %c0_124 = arith.constant 0 : index
    %c1_125 = arith.constant 1 : index
    %c0_126 = arith.constant 0 : index
    %138 = vector.load %arg13[%c0_124, %c1_125, %c0_126] : memref<8x32x32xf32, #tpu.memory_space<vmem>>, vector<8x1x32xf32>
    %139 = vector.shape_cast %138 : vector<8x1x32xf32> to vector<8x32xf32>
    %140 = vector.extract_strided_slice %130 {offsets = [0, 32], sizes = [8, 32], strides = [1, 1]} : vector<8x1024xf32> to vector<8x32xf32>
    %141 = arith.mulf %139, %140 : vector<8x32xf32>
    %c0_127 = arith.constant 0 : index
    %c0_128 = arith.constant 0 : index
    %c32_129 = arith.constant 32 : index
    %142 = vector.load %arg10[%c0_127, %c0_128, %c32_129] : memref<1x8x1024xf32, #tpu.memory_space<vmem>>, vector<1x8x32xf32>
    %143 = vector.shape_cast %142 : vector<1x8x32xf32> to vector<8x32xf32>
    %144 = vector.shape_cast %141 : vector<8x32xf32> to vector<1x8x32xf32>
    tpu.vector_store %arg10[%c0_127, %c0_128, %c32_129], %144 {strides = array<i32>} : memref<1x8x1024xf32, #tpu.memory_space<vmem>>, vector<1x8x32xf32>,
    %c0_130 = arith.constant 0 : index
    %c2_131 = arith.constant 2 : index
    %c0_132 = arith.constant 0 : index
    %145 = vector.load %arg13[%c0_130, %c2_131, %c0_132] : memref<8x32x32xf32, #tpu.memory_space<vmem>>, vector<8x1x32xf32>
    %146 = vector.shape_cast %145 : vector<8x1x32xf32> to vector<8x32xf32>
    %147 = vector.extract_strided_slice %130 {offsets = [0, 64], sizes = [8, 32], strides = [1, 1]} : vector<8x1024xf32> to vector<8x32xf32>
    %148 = arith.mulf %146, %147 : vector<8x32xf32>
    %c0_133 = arith.constant 0 : index
    %c0_134 = arith.constant 0 : index
    %c64 = arith.constant 64 : index
    %149 = vector.load %arg10[%c0_133, %c0_134, %c64] : memref<1x8x1024xf32, #tpu.memory_space<vmem>>, vector<1x8x32xf32>
    %150 = vector.shape_cast %149 : vector<1x8x32xf32> to vector<8x32xf32>
    %151 = vector.shape_cast %148 : vector<8x32xf32> to vector<1x8x32xf32>
    tpu.vector_store %arg10[%c0_133, %c0_134, %c64], %151 {strides = array<i32>} : memref<1x8x1024xf32, #tpu.memory_space<vmem>>, vector<1x8x32xf32>,
    %c0_135 = arith.constant 0 : index
    %c3_136 = arith.constant 3 : index
    %c0_137 = arith.constant 0 : index
    %152 = vector.load %arg13[%c0_135, %c3_136, %c0_137] : memref<8x32x32xf32, #tpu.memory_space<vmem>>, vector<8x1x32xf32>
    %153 = vector.shape_cast %152 : vector<8x1x32xf32> to vector<8x32xf32>
    %154 = vector.extract_strided_slice %130 {offsets = [0, 96], sizes = [8, 32], strides = [1, 1]} : vector<8x1024xf32> to vector<8x32xf32>
    %155 = arith.mulf %153, %154 : vector<8x32xf32>
    %c0_138 = arith.constant 0 : index
    %c0_139 = arith.constant 0 : index
    %c96 = arith.constant 96 : index
    %156 = vector.load %arg10[%c0_138, %c0_139, %c96] : memref<1x8x1024xf32, #tpu.memory_space<vmem>>, vector<1x8x32xf32>
    %157 = vector.shape_cast %156 : vector<1x8x32xf32> to vector<8x32xf32>
    %158 = vector.shape_cast %155 : vector<8x32xf32> to vector<1x8x32xf32>
    tpu.vector_store %arg10[%c0_138, %c0_139, %c96], %158 {strides = array<i32>} : memref<1x8x1024xf32, #tpu.memory_space<vmem>>, vector<1x8x32xf32>,
    %c0_140 = arith.constant 0 : index
    %c4_141 = arith.constant 4 : index
    %c0_142 = arith.constant 0 : index
    %159 = vector.load %arg13[%c0_140, %c4_141, %c0_142] : memref<8x32x32xf32, #tpu.memory_space<vmem>>, vector<8x1x32xf32>
    %160 = vector.shape_cast %159 : vector<8x1x32xf32> to vector<8x32xf32>
    %161 = vector.extract_strided_slice %130 {offsets = [0, 128], sizes = [8, 32], strides = [1, 1]} : vector<8x1024xf32> to vector<8x32xf32>
    %162 = arith.mulf %160, %161 : vector<8x32xf32>
    %c0_143 = arith.constant 0 : index
    %c0_144 = arith.constant 0 : index
    %c128 = arith.constant 128 : index
    %163 = vector.load %arg10[%c0_143, %c0_144, %c128] : memref<1x8x1024xf32, #tpu.memory_space<vmem>>, vector<1x8x32xf32>
    %164 = vector.shape_cast %163 : vector<1x8x32xf32> to vector<8x32xf32>
    %165 = vector.shape_cast %162 : vector<8x32xf32> to vector<1x8x32xf32>
    tpu.vector_store %arg10[%c0_143, %c0_144, %c128], %165 {strides = array<i32>} : memref<1x8x1024xf32, #tpu.memory_space<vmem>>, vector<1x8x32xf32>,
    %c0_145 = arith.constant 0 : index
    %c5_146 = arith.constant 5 : index
    %c0_147 = arith.constant 0 : index
    %166 = vector.load %arg13[%c0_145, %c5_146, %c0_147] : memref<8x32x32xf32, #tpu.memory_space<vmem>>, vector<8x1x32xf32>
    %167 = vector.shape_cast %166 : vector<8x1x32xf32> to vector<8x32xf32>
    %168 = vector.extract_strided_slice %130 {offsets = [0, 160], sizes = [8, 32], strides = [1, 1]} : vector<8x1024xf32> to vector<8x32xf32>
    %169 = arith.mulf %167, %168 : vector<8x32xf32>
    %c0_148 = arith.constant 0 : index
    %c0_149 = arith.constant 0 : index
    %c160 = arith.constant 160 : index
    %170 = vector.load %arg10[%c0_148, %c0_149, %c160] : memref<1x8x1024xf32, #tpu.memory_space<vmem>>, vector<1x8x32xf32>
    %171 = vector.shape_cast %170 : vector<1x8x32xf32> to vector<8x32xf32>
    %172 = vector.shape_cast %169 : vector<8x32xf32> to vector<1x8x32xf32>
    tpu.vector_store %arg10[%c0_148, %c0_149, %c160], %172 {strides = array<i32>} : memref<1x8x1024xf32, #tpu.memory_space<vmem>>, vector<1x8x32xf32>,
    %c0_150 = arith.constant 0 : index
    %c6_151 = arith.constant 6 : index
    %c0_152 = arith.constant 0 : index
    %173 = vector.load %arg13[%c0_150, %c6_151, %c0_152] : memref<8x32x32xf32, #tpu.memory_space<vmem>>, vector<8x1x32xf32>
    %174 = vector.shape_cast %173 : vector<8x1x32xf32> to vector<8x32xf32>
    %175 = vector.extract_strided_slice %130 {offsets = [0, 192], sizes = [8, 32], strides = [1, 1]} : vector<8x1024xf32> to vector<8x32xf32>
    %176 = arith.mulf %174, %175 : vector<8x32xf32>
    %c0_153 = arith.constant 0 : index
    %c0_154 = arith.constant 0 : index
    %c192 = arith.constant 192 : index
    %177 = vector.load %arg10[%c0_153, %c0_154, %c192] : memref<1x8x1024xf32, #tpu.memory_space<vmem>>, vector<1x8x32xf32>
    %178 = vector.shape_cast %177 : vector<1x8x32xf32> to vector<8x32xf32>
    %179 = vector.shape_cast %176 : vector<8x32xf32> to vector<1x8x32xf32>
    tpu.vector_store %arg10[%c0_153, %c0_154, %c192], %179 {strides = array<i32>} : memref<1x8x1024xf32, #tpu.memory_space<vmem>>, vector<1x8x32xf32>,
    %c0_155 = arith.constant 0 : index
    %c7_156 = arith.constant 7 : index
    %c0_157 = arith.constant 0 : index
    %180 = vector.load %arg13[%c0_155, %c7_156, %c0_157] : memref<8x32x32xf32, #tpu.memory_space<vmem>>, vector<8x1x32xf32>
    %181 = vector.shape_cast %180 : vector<8x1x32xf32> to vector<8x32xf32>
    %182 = vector.extract_strided_slice %130 {offsets = [0, 224], sizes = [8, 32], strides = [1, 1]} : vector<8x1024xf32> to vector<8x32xf32>
    %183 = arith.mulf %181, %182 : vector<8x32xf32>
    %c0_158 = arith.constant 0 : index
    %c0_159 = arith.constant 0 : index
    %c224 = arith.constant 224 : index
    %184 = vector.load %arg10[%c0_158, %c0_159, %c224] : memref<1x8x1024xf32, #tpu.memory_space<vmem>>, vector<1x8x32xf32>
    %185 = vector.shape_cast %184 : vector<1x8x32xf32> to vector<8x32xf32>
    %186 = vector.shape_cast %183 : vector<8x32xf32> to vector<1x8x32xf32>
    tpu.vector_store %arg10[%c0_158, %c0_159, %c224], %186 {strides = array<i32>} : memref<1x8x1024xf32, #tpu.memory_space<vmem>>, vector<1x8x32xf32>,
    %c0_160 = arith.constant 0 : index
    %c8_161 = arith.constant 8 : index
    %c0_162 = arith.constant 0 : index
    %187 = vector.load %arg13[%c0_160, %c8_161, %c0_162] : memref<8x32x32xf32, #tpu.memory_space<vmem>>, vector<8x1x32xf32>
    %188 = vector.shape_cast %187 : vector<8x1x32xf32> to vector<8x32xf32>
    %189 = vector.extract_strided_slice %130 {offsets = [0, 256], sizes = [8, 32], strides = [1, 1]} : vector<8x1024xf32> to vector<8x32xf32>
    %190 = arith.mulf %188, %189 : vector<8x32xf32>
    %c0_163 = arith.constant 0 : index
    %c0_164 = arith.constant 0 : index
    %c256 = arith.constant 256 : index
    %191 = vector.load %arg10[%c0_163, %c0_164, %c256] : memref<1x8x1024xf32, #tpu.memory_space<vmem>>, vector<1x8x32xf32>
    %192 = vector.shape_cast %191 : vector<1x8x32xf32> to vector<8x32xf32>
    %193 = vector.shape_cast %190 : vector<8x32xf32> to vector<1x8x32xf32>
    tpu.vector_store %arg10[%c0_163, %c0_164, %c256], %193 {strides = array<i32>} : memref<1x8x1024xf32, #tpu.memory_space<vmem>>, vector<1x8x32xf32>,
    %c0_165 = arith.constant 0 : index
    %c9_166 = arith.constant 9 : index
    %c0_167 = arith.constant 0 : index
    %194 = vector.load %arg13[%c0_165, %c9_166, %c0_167] : memref<8x32x32xf32, #tpu.memory_space<vmem>>, vector<8x1x32xf32>
    %195 = vector.shape_cast %194 : vector<8x1x32xf32> to vector<8x32xf32>
    %196 = vector.extract_strided_slice %130 {offsets = [0, 288], sizes = [8, 32], strides = [1, 1]} : vector<8x1024xf32> to vector<8x32xf32>
    %197 = arith.mulf %195, %196 : vector<8x32xf32>
    %c0_168 = arith.constant 0 : index
    %c0_169 = arith.constant 0 : index
    %c288 = arith.constant 288 : index
    %198 = vector.load %arg10[%c0_168, %c0_169, %c288] : memref<1x8x1024xf32, #tpu.memory_space<vmem>>, vector<1x8x32xf32>
    %199 = vector.shape_cast %198 : vector<1x8x32xf32> to vector<8x32xf32>
    %200 = vector.shape_cast %197 : vector<8x32xf32> to vector<1x8x32xf32>
    tpu.vector_store %arg10[%c0_168, %c0_169, %c288], %200 {strides = array<i32>} : memref<1x8x1024xf32, #tpu.memory_space<vmem>>, vector<1x8x32xf32>,
    %c0_170 = arith.constant 0 : index
    %c10_171 = arith.constant 10 : index
    %c0_172 = arith.constant 0 : index
    %201 = vector.load %arg13[%c0_170, %c10_171, %c0_172] : memref<8x32x32xf32, #tpu.memory_space<vmem>>, vector<8x1x32xf32>
    %202 = vector.shape_cast %201 : vector<8x1x32xf32> to vector<8x32xf32>
    %203 = vector.extract_strided_slice %130 {offsets = [0, 320], sizes = [8, 32], strides = [1, 1]} : vector<8x1024xf32> to vector<8x32xf32>
    %204 = arith.mulf %202, %203 : vector<8x32xf32>
    %c0_173 = arith.constant 0 : index
    %c0_174 = arith.constant 0 : index
    %c320 = arith.constant 320 : index
    %205 = vector.load %arg10[%c0_173, %c0_174, %c320] : memref<1x8x1024xf32, #tpu.memory_space<vmem>>, vector<1x8x32xf32>
    %206 = vector.shape_cast %205 : vector<1x8x32xf32> to vector<8x32xf32>
    %207 = vector.shape_cast %204 : vector<8x32xf32> to vector<1x8x32xf32>
    tpu.vector_store %arg10[%c0_173, %c0_174, %c320], %207 {strides = array<i32>} : memref<1x8x1024xf32, #tpu.memory_space<vmem>>, vector<1x8x32xf32>,
    %c0_175 = arith.constant 0 : index
    %c11_176 = arith.constant 11 : index
    %c0_177 = arith.constant 0 : index
    %208 = vector.load %arg13[%c0_175, %c11_176, %c0_177] : memref<8x32x32xf32, #tpu.memory_space<vmem>>, vector<8x1x32xf32>
    %209 = vector.shape_cast %208 : vector<8x1x32xf32> to vector<8x32xf32>
    %210 = vector.extract_strided_slice %130 {offsets = [0, 352], sizes = [8, 32], strides = [1, 1]} : vector<8x1024xf32> to vector<8x32xf32>
    %211 = arith.mulf %209, %210 : vector<8x32xf32>
    %c0_178 = arith.constant 0 : index
    %c0_179 = arith.constant 0 : index
    %c352 = arith.constant 352 : index
    %212 = vector.load %arg10[%c0_178, %c0_179, %c352] : memref<1x8x1024xf32, #tpu.memory_space<vmem>>, vector<1x8x32xf32>
    %213 = vector.shape_cast %212 : vector<1x8x32xf32> to vector<8x32xf32>
    %214 = vector.shape_cast %211 : vector<8x32xf32> to vector<1x8x32xf32>
    tpu.vector_store %arg10[%c0_178, %c0_179, %c352], %214 {strides = array<i32>} : memref<1x8x1024xf32, #tpu.memory_space<vmem>>, vector<1x8x32xf32>,
    %c0_180 = arith.constant 0 : index
    %c12_181 = arith.constant 12 : index
    %c0_182 = arith.constant 0 : index
    %215 = vector.load %arg13[%c0_180, %c12_181, %c0_182] : memref<8x32x32xf32, #tpu.memory_space<vmem>>, vector<8x1x32xf32>
    %216 = vector.shape_cast %215 : vector<8x1x32xf32> to vector<8x32xf32>
    %217 = vector.extract_strided_slice %130 {offsets = [0, 384], sizes = [8, 32], strides = [1, 1]} : vector<8x1024xf32> to vector<8x32xf32>
    %218 = arith.mulf %216, %217 : vector<8x32xf32>
    %c0_183 = arith.constant 0 : index
    %c0_184 = arith.constant 0 : index
    %c384 = arith.constant 384 : index
    %219 = vector.load %arg10[%c0_183, %c0_184, %c384] : memref<1x8x1024xf32, #tpu.memory_space<vmem>>, vector<1x8x32xf32>
    %220 = vector.shape_cast %219 : vector<1x8x32xf32> to vector<8x32xf32>
    %221 = vector.shape_cast %218 : vector<8x32xf32> to vector<1x8x32xf32>
    tpu.vector_store %arg10[%c0_183, %c0_184, %c384], %221 {strides = array<i32>} : memref<1x8x1024xf32, #tpu.memory_space<vmem>>, vector<1x8x32xf32>,
    %c0_185 = arith.constant 0 : index
    %c13_186 = arith.constant 13 : index
    %c0_187 = arith.constant 0 : index
    %222 = vector.load %arg13[%c0_185, %c13_186, %c0_187] : memref<8x32x32xf32, #tpu.memory_space<vmem>>, vector<8x1x32xf32>
    %223 = vector.shape_cast %222 : vector<8x1x32xf32> to vector<8x32xf32>
    %224 = vector.extract_strided_slice %130 {offsets = [0, 416], sizes = [8, 32], strides = [1, 1]} : vector<8x1024xf32> to vector<8x32xf32>
    %225 = arith.mulf %223, %224 : vector<8x32xf32>
    %c0_188 = arith.constant 0 : index
    %c0_189 = arith.constant 0 : index
    %c416 = arith.constant 416 : index
    %226 = vector.load %arg10[%c0_188, %c0_189, %c416] : memref<1x8x1024xf32, #tpu.memory_space<vmem>>, vector<1x8x32xf32>
    %227 = vector.shape_cast %226 : vector<1x8x32xf32> to vector<8x32xf32>
    %228 = vector.shape_cast %225 : vector<8x32xf32> to vector<1x8x32xf32>
    tpu.vector_store %arg10[%c0_188, %c0_189, %c416], %228 {strides = array<i32>} : memref<1x8x1024xf32, #tpu.memory_space<vmem>>, vector<1x8x32xf32>,
    %c0_190 = arith.constant 0 : index
    %c14_191 = arith.constant 14 : index
    %c0_192 = arith.constant 0 : index
    %229 = vector.load %arg13[%c0_190, %c14_191, %c0_192] : memref<8x32x32xf32, #tpu.memory_space<vmem>>, vector<8x1x32xf32>
    %230 = vector.shape_cast %229 : vector<8x1x32xf32> to vector<8x32xf32>
    %231 = vector.extract_strided_slice %130 {offsets = [0, 448], sizes = [8, 32], strides = [1, 1]} : vector<8x1024xf32> to vector<8x32xf32>
    %232 = arith.mulf %230, %231 : vector<8x32xf32>
    %c0_193 = arith.constant 0 : index
    %c0_194 = arith.constant 0 : index
    %c448 = arith.constant 448 : index
    %233 = vector.load %arg10[%c0_193, %c0_194, %c448] : memref<1x8x1024xf32, #tpu.memory_space<vmem>>, vector<1x8x32xf32>
    %234 = vector.shape_cast %233 : vector<1x8x32xf32> to vector<8x32xf32>
    %235 = vector.shape_cast %232 : vector<8x32xf32> to vector<1x8x32xf32>
    tpu.vector_store %arg10[%c0_193, %c0_194, %c448], %235 {strides = array<i32>} : memref<1x8x1024xf32, #tpu.memory_space<vmem>>, vector<1x8x32xf32>,
    %c0_195 = arith.constant 0 : index
    %c15_196 = arith.constant 15 : index
    %c0_197 = arith.constant 0 : index
    %236 = vector.load %arg13[%c0_195, %c15_196, %c0_197] : memref<8x32x32xf32, #tpu.memory_space<vmem>>, vector<8x1x32xf32>
    %237 = vector.shape_cast %236 : vector<8x1x32xf32> to vector<8x32xf32>
    %238 = vector.extract_strided_slice %130 {offsets = [0, 480], sizes = [8, 32], strides = [1, 1]} : vector<8x1024xf32> to vector<8x32xf32>
    %239 = arith.mulf %237, %238 : vector<8x32xf32>
    %c0_198 = arith.constant 0 : index
    %c0_199 = arith.constant 0 : index
    %c480 = arith.constant 480 : index
    %240 = vector.load %arg10[%c0_198, %c0_199, %c480] : memref<1x8x1024xf32, #tpu.memory_space<vmem>>, vector<1x8x32xf32>
    %241 = vector.shape_cast %240 : vector<1x8x32xf32> to vector<8x32xf32>
    %242 = vector.shape_cast %239 : vector<8x32xf32> to vector<1x8x32xf32>
    tpu.vector_store %arg10[%c0_198, %c0_199, %c480], %242 {strides = array<i32>} : memref<1x8x1024xf32, #tpu.memory_space<vmem>>, vector<1x8x32xf32>,
    %c0_200 = arith.constant 0 : index
    %c16_201 = arith.constant 16 : index
    %c0_202 = arith.constant 0 : index
    %243 = vector.load %arg13[%c0_200, %c16_201, %c0_202] : memref<8x32x32xf32, #tpu.memory_space<vmem>>, vector<8x1x32xf32>
    %244 = vector.shape_cast %243 : vector<8x1x32xf32> to vector<8x32xf32>
    %245 = vector.extract_strided_slice %130 {offsets = [0, 512], sizes = [8, 32], strides = [1, 1]} : vector<8x1024xf32> to vector<8x32xf32>
    %246 = arith.mulf %244, %245 : vector<8x32xf32>
    %c0_203 = arith.constant 0 : index
    %c0_204 = arith.constant 0 : index
    %c512 = arith.constant 512 : index
    %247 = vector.load %arg10[%c0_203, %c0_204, %c512] : memref<1x8x1024xf32, #tpu.memory_space<vmem>>, vector<1x8x32xf32>
    %248 = vector.shape_cast %247 : vector<1x8x32xf32> to vector<8x32xf32>
    %249 = vector.shape_cast %246 : vector<8x32xf32> to vector<1x8x32xf32>
    tpu.vector_store %arg10[%c0_203, %c0_204, %c512], %249 {strides = array<i32>} : memref<1x8x1024xf32, #tpu.memory_space<vmem>>, vector<1x8x32xf32>,
    %c0_205 = arith.constant 0 : index
    %c17 = arith.constant 17 : index
    %c0_206 = arith.constant 0 : index
    %250 = vector.load %arg13[%c0_205, %c17, %c0_206] : memref<8x32x32xf32, #tpu.memory_space<vmem>>, vector<8x1x32xf32>
    %251 = vector.shape_cast %250 : vector<8x1x32xf32> to vector<8x32xf32>
    %252 = vector.extract_strided_slice %130 {offsets = [0, 544], sizes = [8, 32], strides = [1, 1]} : vector<8x1024xf32> to vector<8x32xf32>
    %253 = arith.mulf %251, %252 : vector<8x32xf32>
    %c0_207 = arith.constant 0 : index
    %c0_208 = arith.constant 0 : index
    %c544 = arith.constant 544 : index
    %254 = vector.load %arg10[%c0_207, %c0_208, %c544] : memref<1x8x1024xf32, #tpu.memory_space<vmem>>, vector<1x8x32xf32>
    %255 = vector.shape_cast %254 : vector<1x8x32xf32> to vector<8x32xf32>
    %256 = vector.shape_cast %253 : vector<8x32xf32> to vector<1x8x32xf32>
    tpu.vector_store %arg10[%c0_207, %c0_208, %c544], %256 {strides = array<i32>} : memref<1x8x1024xf32, #tpu.memory_space<vmem>>, vector<1x8x32xf32>,
    %c0_209 = arith.constant 0 : index
    %c18_210 = arith.constant 18 : index
    %c0_211 = arith.constant 0 : index
    %257 = vector.load %arg13[%c0_209, %c18_210, %c0_211] : memref<8x32x32xf32, #tpu.memory_space<vmem>>, vector<8x1x32xf32>
    %258 = vector.shape_cast %257 : vector<8x1x32xf32> to vector<8x32xf32>
    %259 = vector.extract_strided_slice %130 {offsets = [0, 576], sizes = [8, 32], strides = [1, 1]} : vector<8x1024xf32> to vector<8x32xf32>
    %260 = arith.mulf %258, %259 : vector<8x32xf32>
    %c0_212 = arith.constant 0 : index
    %c0_213 = arith.constant 0 : index
    %c576 = arith.constant 576 : index
    %261 = vector.load %arg10[%c0_212, %c0_213, %c576] : memref<1x8x1024xf32, #tpu.memory_space<vmem>>, vector<1x8x32xf32>
    %262 = vector.shape_cast %261 : vector<1x8x32xf32> to vector<8x32xf32>
    %263 = vector.shape_cast %260 : vector<8x32xf32> to vector<1x8x32xf32>
    tpu.vector_store %arg10[%c0_212, %c0_213, %c576], %263 {strides = array<i32>} : memref<1x8x1024xf32, #tpu.memory_space<vmem>>, vector<1x8x32xf32>,
    %c0_214 = arith.constant 0 : index
    %c19_215 = arith.constant 19 : index
    %c0_216 = arith.constant 0 : index
    %264 = vector.load %arg13[%c0_214, %c19_215, %c0_216] : memref<8x32x32xf32, #tpu.memory_space<vmem>>, vector<8x1x32xf32>
    %265 = vector.shape_cast %264 : vector<8x1x32xf32> to vector<8x32xf32>
    %266 = vector.extract_strided_slice %130 {offsets = [0, 608], sizes = [8, 32], strides = [1, 1]} : vector<8x1024xf32> to vector<8x32xf32>
    %267 = arith.mulf %265, %266 : vector<8x32xf32>
    %c0_217 = arith.constant 0 : index
    %c0_218 = arith.constant 0 : index
    %c608 = arith.constant 608 : index
    %268 = vector.load %arg10[%c0_217, %c0_218, %c608] : memref<1x8x1024xf32, #tpu.memory_space<vmem>>, vector<1x8x32xf32>
    %269 = vector.shape_cast %268 : vector<1x8x32xf32> to vector<8x32xf32>
    %270 = vector.shape_cast %267 : vector<8x32xf32> to vector<1x8x32xf32>
    tpu.vector_store %arg10[%c0_217, %c0_218, %c608], %270 {strides = array<i32>} : memref<1x8x1024xf32, #tpu.memory_space<vmem>>, vector<1x8x32xf32>,
    %c0_219 = arith.constant 0 : index
    %c20_220 = arith.constant 20 : index
    %c0_221 = arith.constant 0 : index
    %271 = vector.load %arg13[%c0_219, %c20_220, %c0_221] : memref<8x32x32xf32, #tpu.memory_space<vmem>>, vector<8x1x32xf32>
    %272 = vector.shape_cast %271 : vector<8x1x32xf32> to vector<8x32xf32>
    %273 = vector.extract_strided_slice %130 {offsets = [0, 640], sizes = [8, 32], strides = [1, 1]} : vector<8x1024xf32> to vector<8x32xf32>
    %274 = arith.mulf %272, %273 : vector<8x32xf32>
    %c0_222 = arith.constant 0 : index
    %c0_223 = arith.constant 0 : index
    %c640 = arith.constant 640 : index
    %275 = vector.load %arg10[%c0_222, %c0_223, %c640] : memref<1x8x1024xf32, #tpu.memory_space<vmem>>, vector<1x8x32xf32>
    %276 = vector.shape_cast %275 : vector<1x8x32xf32> to vector<8x32xf32>
    %277 = vector.shape_cast %274 : vector<8x32xf32> to vector<1x8x32xf32>
    tpu.vector_store %arg10[%c0_222, %c0_223, %c640], %277 {strides = array<i32>} : memref<1x8x1024xf32, #tpu.memory_space<vmem>>, vector<1x8x32xf32>,
    %c0_224 = arith.constant 0 : index
    %c21 = arith.constant 21 : index
    %c0_225 = arith.constant 0 : index
    %278 = vector.load %arg13[%c0_224, %c21, %c0_225] : memref<8x32x32xf32, #tpu.memory_space<vmem>>, vector<8x1x32xf32>
    %279 = vector.shape_cast %278 : vector<8x1x32xf32> to vector<8x32xf32>
    %280 = vector.extract_strided_slice %130 {offsets = [0, 672], sizes = [8, 32], strides = [1, 1]} : vector<8x1024xf32> to vector<8x32xf32>
    %281 = arith.mulf %279, %280 : vector<8x32xf32>
    %c0_226 = arith.constant 0 : index
    %c0_227 = arith.constant 0 : index
    %c672 = arith.constant 672 : index
    %282 = vector.load %arg10[%c0_226, %c0_227, %c672] : memref<1x8x1024xf32, #tpu.memory_space<vmem>>, vector<1x8x32xf32>
    %283 = vector.shape_cast %282 : vector<1x8x32xf32> to vector<8x32xf32>
    %284 = vector.shape_cast %281 : vector<8x32xf32> to vector<1x8x32xf32>
    tpu.vector_store %arg10[%c0_226, %c0_227, %c672], %284 {strides = array<i32>} : memref<1x8x1024xf32, #tpu.memory_space<vmem>>, vector<1x8x32xf32>,
    %c0_228 = arith.constant 0 : index
    %c22 = arith.constant 22 : index
    %c0_229 = arith.constant 0 : index
    %285 = vector.load %arg13[%c0_228, %c22, %c0_229] : memref<8x32x32xf32, #tpu.memory_space<vmem>>, vector<8x1x32xf32>
    %286 = vector.shape_cast %285 : vector<8x1x32xf32> to vector<8x32xf32>
    %287 = vector.extract_strided_slice %130 {offsets = [0, 704], sizes = [8, 32], strides = [1, 1]} : vector<8x1024xf32> to vector<8x32xf32>
    %288 = arith.mulf %286, %287 : vector<8x32xf32>
    %c0_230 = arith.constant 0 : index
    %c0_231 = arith.constant 0 : index
    %c704 = arith.constant 704 : index
    %289 = vector.load %arg10[%c0_230, %c0_231, %c704] : memref<1x8x1024xf32, #tpu.memory_space<vmem>>, vector<1x8x32xf32>
    %290 = vector.shape_cast %289 : vector<1x8x32xf32> to vector<8x32xf32>
    %291 = vector.shape_cast %288 : vector<8x32xf32> to vector<1x8x32xf32>
    tpu.vector_store %arg10[%c0_230, %c0_231, %c704], %291 {strides = array<i32>} : memref<1x8x1024xf32, #tpu.memory_space<vmem>>, vector<1x8x32xf32>,
    %c0_232 = arith.constant 0 : index
    %c23 = arith.constant 23 : index
    %c0_233 = arith.constant 0 : index
    %292 = vector.load %arg13[%c0_232, %c23, %c0_233] : memref<8x32x32xf32, #tpu.memory_space<vmem>>, vector<8x1x32xf32>
    %293 = vector.shape_cast %292 : vector<8x1x32xf32> to vector<8x32xf32>
    %294 = vector.extract_strided_slice %130 {offsets = [0, 736], sizes = [8, 32], strides = [1, 1]} : vector<8x1024xf32> to vector<8x32xf32>
    %295 = arith.mulf %293, %294 : vector<8x32xf32>
    %c0_234 = arith.constant 0 : index
    %c0_235 = arith.constant 0 : index
    %c736 = arith.constant 736 : index
    %296 = vector.load %arg10[%c0_234, %c0_235, %c736] : memref<1x8x1024xf32, #tpu.memory_space<vmem>>, vector<1x8x32xf32>
    %297 = vector.shape_cast %296 : vector<1x8x32xf32> to vector<8x32xf32>
    %298 = vector.shape_cast %295 : vector<8x32xf32> to vector<1x8x32xf32>
    tpu.vector_store %arg10[%c0_234, %c0_235, %c736], %298 {strides = array<i32>} : memref<1x8x1024xf32, #tpu.memory_space<vmem>>, vector<1x8x32xf32>,
    %c0_236 = arith.constant 0 : index
    %c24_237 = arith.constant 24 : index
    %c0_238 = arith.constant 0 : index
    %299 = vector.load %arg13[%c0_236, %c24_237, %c0_238] : memref<8x32x32xf32, #tpu.memory_space<vmem>>, vector<8x1x32xf32>
    %300 = vector.shape_cast %299 : vector<8x1x32xf32> to vector<8x32xf32>
    %301 = vector.extract_strided_slice %130 {offsets = [0, 768], sizes = [8, 32], strides = [1, 1]} : vector<8x1024xf32> to vector<8x32xf32>
    %302 = arith.mulf %300, %301 : vector<8x32xf32>
    %c0_239 = arith.constant 0 : index
    %c0_240 = arith.constant 0 : index
    %c768 = arith.constant 768 : index
    %303 = vector.load %arg10[%c0_239, %c0_240, %c768] : memref<1x8x1024xf32, #tpu.memory_space<vmem>>, vector<1x8x32xf32>
    %304 = vector.shape_cast %303 : vector<1x8x32xf32> to vector<8x32xf32>
    %305 = vector.shape_cast %302 : vector<8x32xf32> to vector<1x8x32xf32>
    tpu.vector_store %arg10[%c0_239, %c0_240, %c768], %305 {strides = array<i32>} : memref<1x8x1024xf32, #tpu.memory_space<vmem>>, vector<1x8x32xf32>,
    %c0_241 = arith.constant 0 : index
    %c25 = arith.constant 25 : index
    %c0_242 = arith.constant 0 : index
    %306 = vector.load %arg13[%c0_241, %c25, %c0_242] : memref<8x32x32xf32, #tpu.memory_space<vmem>>, vector<8x1x32xf32>
    %307 = vector.shape_cast %306 : vector<8x1x32xf32> to vector<8x32xf32>
    %308 = vector.extract_strided_slice %130 {offsets = [0, 800], sizes = [8, 32], strides = [1, 1]} : vector<8x1024xf32> to vector<8x32xf32>
    %309 = arith.mulf %307, %308 : vector<8x32xf32>
    %c0_243 = arith.constant 0 : index
    %c0_244 = arith.constant 0 : index
    %c800 = arith.constant 800 : index
    %310 = vector.load %arg10[%c0_243, %c0_244, %c800] : memref<1x8x1024xf32, #tpu.memory_space<vmem>>, vector<1x8x32xf32>
    %311 = vector.shape_cast %310 : vector<1x8x32xf32> to vector<8x32xf32>
    %312 = vector.shape_cast %309 : vector<8x32xf32> to vector<1x8x32xf32>
    tpu.vector_store %arg10[%c0_243, %c0_244, %c800], %312 {strides = array<i32>} : memref<1x8x1024xf32, #tpu.memory_space<vmem>>, vector<1x8x32xf32>,
    %c0_245 = arith.constant 0 : index
    %c26 = arith.constant 26 : index
    %c0_246 = arith.constant 0 : index
    %313 = vector.load %arg13[%c0_245, %c26, %c0_246] : memref<8x32x32xf32, #tpu.memory_space<vmem>>, vector<8x1x32xf32>
    %314 = vector.shape_cast %313 : vector<8x1x32xf32> to vector<8x32xf32>
    %315 = vector.extract_strided_slice %130 {offsets = [0, 832], sizes = [8, 32], strides = [1, 1]} : vector<8x1024xf32> to vector<8x32xf32>
    %316 = arith.mulf %314, %315 : vector<8x32xf32>
    %c0_247 = arith.constant 0 : index
    %c0_248 = arith.constant 0 : index
    %c832 = arith.constant 832 : index
    %317 = vector.load %arg10[%c0_247, %c0_248, %c832] : memref<1x8x1024xf32, #tpu.memory_space<vmem>>, vector<1x8x32xf32>
    %318 = vector.shape_cast %317 : vector<1x8x32xf32> to vector<8x32xf32>
    %319 = vector.shape_cast %316 : vector<8x32xf32> to vector<1x8x32xf32>
    tpu.vector_store %arg10[%c0_247, %c0_248, %c832], %319 {strides = array<i32>} : memref<1x8x1024xf32, #tpu.memory_space<vmem>>, vector<1x8x32xf32>,
    %c0_249 = arith.constant 0 : index
    %c27 = arith.constant 27 : index
    %c0_250 = arith.constant 0 : index
    %320 = vector.load %arg13[%c0_249, %c27, %c0_250] : memref<8x32x32xf32, #tpu.memory_space<vmem>>, vector<8x1x32xf32>
    %321 = vector.shape_cast %320 : vector<8x1x32xf32> to vector<8x32xf32>
    %322 = vector.extract_strided_slice %130 {offsets = [0, 864], sizes = [8, 32], strides = [1, 1]} : vector<8x1024xf32> to vector<8x32xf32>
    %323 = arith.mulf %321, %322 : vector<8x32xf32>
    %c0_251 = arith.constant 0 : index
    %c0_252 = arith.constant 0 : index
    %c864 = arith.constant 864 : index
    %324 = vector.load %arg10[%c0_251, %c0_252, %c864] : memref<1x8x1024xf32, #tpu.memory_space<vmem>>, vector<1x8x32xf32>
    %325 = vector.shape_cast %324 : vector<1x8x32xf32> to vector<8x32xf32>
    %326 = vector.shape_cast %323 : vector<8x32xf32> to vector<1x8x32xf32>
    tpu.vector_store %arg10[%c0_251, %c0_252, %c864], %326 {strides = array<i32>} : memref<1x8x1024xf32, #tpu.memory_space<vmem>>, vector<1x8x32xf32>,
    %c0_253 = arith.constant 0 : index
    %c28_254 = arith.constant 28 : index
    %c0_255 = arith.constant 0 : index
    %327 = vector.load %arg13[%c0_253, %c28_254, %c0_255] : memref<8x32x32xf32, #tpu.memory_space<vmem>>, vector<8x1x32xf32>
    %328 = vector.shape_cast %327 : vector<8x1x32xf32> to vector<8x32xf32>
    %329 = vector.extract_strided_slice %130 {offsets = [0, 896], sizes = [8, 32], strides = [1, 1]} : vector<8x1024xf32> to vector<8x32xf32>
    %330 = arith.mulf %328, %329 : vector<8x32xf32>
    %c0_256 = arith.constant 0 : index
    %c0_257 = arith.constant 0 : index
    %c896 = arith.constant 896 : index
    %331 = vector.load %arg10[%c0_256, %c0_257, %c896] : memref<1x8x1024xf32, #tpu.memory_space<vmem>>, vector<1x8x32xf32>
    %332 = vector.shape_cast %331 : vector<1x8x32xf32> to vector<8x32xf32>
    %333 = vector.shape_cast %330 : vector<8x32xf32> to vector<1x8x32xf32>
    tpu.vector_store %arg10[%c0_256, %c0_257, %c896], %333 {strides = array<i32>} : memref<1x8x1024xf32, #tpu.memory_space<vmem>>, vector<1x8x32xf32>,
    %c0_258 = arith.constant 0 : index
    %c29 = arith.constant 29 : index
    %c0_259 = arith.constant 0 : index
    %334 = vector.load %arg13[%c0_258, %c29, %c0_259] : memref<8x32x32xf32, #tpu.memory_space<vmem>>, vector<8x1x32xf32>
    %335 = vector.shape_cast %334 : vector<8x1x32xf32> to vector<8x32xf32>
    %336 = vector.extract_strided_slice %130 {offsets = [0, 928], sizes = [8, 32], strides = [1, 1]} : vector<8x1024xf32> to vector<8x32xf32>
    %337 = arith.mulf %335, %336 : vector<8x32xf32>
    %c0_260 = arith.constant 0 : index
    %c0_261 = arith.constant 0 : index
    %c928 = arith.constant 928 : index
    %338 = vector.load %arg10[%c0_260, %c0_261, %c928] : memref<1x8x1024xf32, #tpu.memory_space<vmem>>, vector<1x8x32xf32>
    %339 = vector.shape_cast %338 : vector<1x8x32xf32> to vector<8x32xf32>
    %340 = vector.shape_cast %337 : vector<8x32xf32> to vector<1x8x32xf32>
    tpu.vector_store %arg10[%c0_260, %c0_261, %c928], %340 {strides = array<i32>} : memref<1x8x1024xf32, #tpu.memory_space<vmem>>, vector<1x8x32xf32>,
    %c0_262 = arith.constant 0 : index
    %c30 = arith.constant 30 : index
    %c0_263 = arith.constant 0 : index
    %341 = vector.load %arg13[%c0_262, %c30, %c0_263] : memref<8x32x32xf32, #tpu.memory_space<vmem>>, vector<8x1x32xf32>
    %342 = vector.shape_cast %341 : vector<8x1x32xf32> to vector<8x32xf32>
    %343 = vector.extract_strided_slice %130 {offsets = [0, 960], sizes = [8, 32], strides = [1, 1]} : vector<8x1024xf32> to vector<8x32xf32>
    %344 = arith.mulf %342, %343 : vector<8x32xf32>
    %c0_264 = arith.constant 0 : index
    %c0_265 = arith.constant 0 : index
    %c960 = arith.constant 960 : index
    %345 = vector.load %arg10[%c0_264, %c0_265, %c960] : memref<1x8x1024xf32, #tpu.memory_space<vmem>>, vector<1x8x32xf32>
    %346 = vector.shape_cast %345 : vector<1x8x32xf32> to vector<8x32xf32>
    %347 = vector.shape_cast %344 : vector<8x32xf32> to vector<1x8x32xf32>
    tpu.vector_store %arg10[%c0_264, %c0_265, %c960], %347 {strides = array<i32>} : memref<1x8x1024xf32, #tpu.memory_space<vmem>>, vector<1x8x32xf32>,
    %c0_266 = arith.constant 0 : index
    %c31 = arith.constant 31 : index
    %c0_267 = arith.constant 0 : index
    %348 = vector.load %arg13[%c0_266, %c31, %c0_267] : memref<8x32x32xf32, #tpu.memory_space<vmem>>, vector<8x1x32xf32>
    %349 = vector.shape_cast %348 : vector<8x1x32xf32> to vector<8x32xf32>
    %350 = vector.extract_strided_slice %130 {offsets = [0, 992], sizes = [8, 32], strides = [1, 1]} : vector<8x1024xf32> to vector<8x32xf32>
    %351 = arith.mulf %349, %350 : vector<8x32xf32>
    %c0_268 = arith.constant 0 : index
    %c0_269 = arith.constant 0 : index
    %c992 = arith.constant 992 : index
    %352 = vector.load %arg10[%c0_268, %c0_269, %c992] : memref<1x8x1024xf32, #tpu.memory_space<vmem>>, vector<1x8x32xf32>
    %353 = vector.shape_cast %352 : vector<1x8x32xf32> to vector<8x32xf32>
    %354 = vector.shape_cast %351 : vector<8x32xf32> to vector<1x8x32xf32>
    tpu.vector_store %arg10[%c0_268, %c0_269, %c992], %354 {strides = array<i32>} : memref<1x8x1024xf32, #tpu.memory_space<vmem>>, vector<1x8x32xf32>,
    return
  }
  func.func @transform_0(%arg0: i32, %arg1: i32) -> (i32, i32, i32) {
    %c0_i32 = arith.constant 0 : i32
    %c0_i32_0 = arith.constant 0 : i32
    %c0_i32_1 = arith.constant 0 : i32
    return %arg0, %c0_i32, %c0_i32_0 : i32, i32, i32
  }
  func.func @transform_1(%arg0: i32, %arg1: i32) -> (i32, i32, i32) {
    %c0_i32 = arith.constant 0 : i32
    %c0_i32_0 = arith.constant 0 : i32
    %c0_i32_1 = arith.constant 0 : i32
    return %arg0, %c0_i32, %c0_i32_0 : i32, i32, i32
  }
  func.func @transform_2(%arg0: i32, %arg1: i32) -> (i32, i32) {
    %c0_i32 = arith.constant 0 : i32
    %c0_i32_0 = arith.constant 0 : i32
    return %arg1, %c0_i32 : i32, i32
  }
  func.func @transform_3(%arg0: i32, %arg1: i32) -> (i32, i32) {
    %c0_i32 = arith.constant 0 : i32
    %c0_i32_0 = arith.constant 0 : i32
    return %arg1, %c0_i32 : i32, i32
  }
  func.func @transform_4(%arg0: i32, %arg1: i32) -> (i32, i32) {
    %c0_i32 = arith.constant 0 : i32
    %c0_i32_0 = arith.constant 0 : i32
    return %arg1, %c0_i32 : i32, i32
  }
  func.func @transform_5(%arg0: i32, %arg1: i32) -> (i32, i32) {
    %c0_i32 = arith.constant 0 : i32
    %c0_i32_0 = arith.constant 0 : i32
    return %arg1, %c0_i32 : i32, i32
  }
  func.func @transform_6(%arg0: i32, %arg1: i32) -> (i32, i32) {
    %c0_i32 = arith.constant 0 : i32
    %c0_i32_0 = arith.constant 0 : i32
    %c0_i32_1 = arith.constant 0 : i32
    return %c0_i32, %c0_i32_0 : i32, i32
  }
  func.func @transform_7(%arg0: i32, %arg1: i32) -> (i32, i32) {
    %c0_i32 = arith.constant 0 : i32
    %c0_i32_0 = arith.constant 0 : i32
    %c0_i32_1 = arith.constant 0 : i32
    return %c0_i32, %c0_i32_0 : i32, i32
  }
  func.func @transform_8(%arg0: i32, %arg1: i32) -> (i32, i32, i32) {
    %c0_i32 = arith.constant 0 : i32
    %c0_i32_0 = arith.constant 0 : i32
    return %arg0, %arg1, %c0_i32 : i32, i32, i32
  }
}

</mosaic_0001>

<llo_original>
// kernel: tpu_custom_call.1
$region0: #{tpu_custom_call.1}
  #allocation0 [shape = 'u32[]', space=smem, size = 0x4, offset = 0x4, fixed_abs, tag = 'smem constant byte address 0x4 - core index']
  #allocation1 [shape = 'u32[72,128]{1,0:T(1,128)}', space=vmem, size = 0x9000, scoped, tag = 'internal scratch']
  #allocation2 [shape = 'bf16[8,288]{1,0:T(8,128)(2,1)}', space=vmem, size = 0x1800, scoped, tag = 'scratch operand']
  #allocation3 [shape = 'bf16[8,16,16]{2,1,0:T(8,128)(2,1)}', space=vmem, size = 0x8000, scoped, tag = 'scratch operand']
  #allocation4 [shape = 'f32[8,32,32]{2,1,0:T(8,128)}', space=vmem, size = 0x20000, scoped, tag = 'scratch operand']
  %s0 = inlined_call_operand.vmem [shape: bf16[2,4,384], index: 0, kind: input, shape index: {}]
  %s1 = inlined_call_operand.vmem [shape: bf16[2,6,1024], index: 1, kind: input, shape index: {}]
  %s2 = inlined_call_operand.vmem [shape: bf16[8,36], index: 2, kind: input, shape index: {}]
  %s3 = inlined_call_operand.vmem [shape: f32[8,1], index: 3, kind: input, shape index: {}]
  %s4 = inlined_call_operand.vmem [shape: bf16[8,6], index: 4, kind: input, shape index: {}]
  %s5 = inlined_call_operand.vmem [shape: f32[8,1], index: 5, kind: input, shape index: {}]
  %s6 = inlined_call_operand.vmem [shape: bf16[32,16], index: 6, kind: input, shape index: {}]
  %s7 = inlined_call_operand.vmem [shape: bf16[16,32], index: 7, kind: input, shape index: {}]
  %s8 = inlined_call_operand.hbm [shape: f32[2,8,1024], index: 8, kind: output, shape index: {}]
  %s9 = sld [smem:[#allocation0]]
  $region65: #{tpu_custom_call.1} parent=0
    _
  %s11 = ssub.s32 1, %s9
  %s12 = scalar_select 0, %s11, %s9
  $region1: #{tpu_custom_call.1} parent=0
    #allocation5 [shape = 'u8[65536]{0}', space=vmem, size = 0x10000, scoped, tag = 'output window, operand 0']
    #allocation6 [shape = 's32[2]{0}', space=sflag, size = 0x8, scoped, tag = 'scoped memory for tpu_custom_call.1']
    %13 = vsyncpa [#allocation6], 0
    %s14 = scalar_lea.sflag [#allocation6], 1
    %15 = vsyncpa %s14, 0
    loop: start=0, step=1, limit=4
    $region2: #{tpu_custom_call.1} parent=1 // loop_pre_header
      _
    $region3: #{tpu_custom_call.1} parent=1 // loop_header
      %s17 = sphi 0, %s21
      %p18 = scmp.ge.s32.totalorder %s17, 4
      %s24 = sphi 0, %s36
      %s25 = sphi 0, %s32
      %s26 = sphi 0, %s24
      %s27 = sphi 0, %s25
      %s28 = sphi 0, %s26
      %s29 = sphi 0, %s27
      %s39 = sphi 0, %s41
      %s42 = sphi 0, %s39
      %s43 = sphi 0, %s42
      %s59 = sphi 0, %s43
      %s65 = sphi 0, %s67
      %s68 = sphi 0, %s65
      %s69 = sphi 0, %s68
      %s85 = sphi 0, %s69
      %s91 = sphi 0, %s93
      %s94 = sphi 0, %s91
      %s95 = sphi 0, %s94
      %s111 = sphi 0, %s95
      %s117 = sphi 0, %s119
      %s120 = sphi 0, %s117
      %s121 = sphi 0, %s120
      %s137 = sphi 0, %s121
      %s143 = sphi 0, %s145
      %s146 = sphi 0, %s143
      %s147 = sphi 0, %s146
      %s163 = sphi 0, %s147
      %s169 = sphi 0, %s171
      %s172 = sphi 0, %s169
      %s173 = sphi 0, %s172
      %s189 = sphi 0, %s173
      %s193 = sphi 0, %s193
      %s195 = sphi 0, %s193
      %s196 = sphi 0, %s195
      %s210 = sphi 0, %s196
      %s214 = sphi 0, %s214
      %s216 = sphi 0, %s214
      %s217 = sphi 0, %s216
      %s231 = sphi 0, %s217
      %s239 = sphi 0, %s241
      %s242 = sphi 0, %s239
      %s243 = sphi 0, %s242
      %s259 = sphi 0, %s243
    $region4: #{tpu_custom_call.1} parent=1 // loop_header_branch
      %20 = sbr.rel (%p18) target = $region8
    $region5: #{tpu_custom_call.1} parent=1 // loop_body
      %s22 = ssub.s32 %s17, 1
      %s23 = ssub.s32 %s17, 2
      %s30 = sadd.s32 1, %s25
      %p31 = scmp.ge.s32.totalorder %s30, 1
      %s32 = scalar_select %p31, 0, %s30
      %s33 = sadd.s32 1, %s24
      %s34 = scalar_select %p31, %s33, %s24
      %p35 = scmp.ge.s32.totalorder %s34, 2
      %s36 = scalar_select %p35, 0, %s34
      %s37 = ssub.s32 %s24, %s36
      %p38 = scmp.eq.s32.totalorder %s37, 0
      %s40 = sadd.s32 %s39, 1
      %s41 = scalar_select %p38, %s39, %s40
      %p44 = pneg %p38
      %p45 = scmp.eq.s32.totalorder %s17, 1
      %p46 = por %p44, %p45
      %p47 = scmp.ne.s32.totalorder %s39, %s42
      %p48 = scmp.eq.s32.totalorder %s17, 0
      %p49 = por %p47, %p48
      %p50 = scmp.ne.s32.totalorder %s39, %s42
      %p51 = scmp.eq.s32.totalorder %s22, 1
      %p52 = por %p50, %p51
      %p53 = scmp.ne.s32.totalorder %s42, %s43
      %p54 = scmp.eq.s32.totalorder %s22, 0
      %p55 = por %p53, %p54
      %p56 = scmp.ne.s32.totalorder %s42, %s43
      %p57 = scmp.eq.s32.totalorder %s23, 1
      %p58 = por %p56, %p57
      %p60 = scmp.ne.s32.totalorder %s43, %s59
      %p61 = scmp.eq.s32.totalorder %s23, 0
      %p62 = por %p60, %p61
      %s63 = ssub.s32 %s24, %s36
      %p64 = scmp.eq.s32.totalorder %s63, 0
      %s66 = sadd.s32 %s65, 1
      %s67 = scalar_select %p64, %s65, %s66
      %p70 = pneg %p64
      %p71 = scmp.eq.s32.totalorder %s17, 1
      %p72 = por %p70, %p71
      %p73 = scmp.ne.s32.totalorder %s65, %s68
      %p74 = scmp.eq.s32.totalorder %s17, 0
      %p75 = por %p73, %p74
      %p76 = scmp.ne.s32.totalorder %s65, %s68
      %p77 = scmp.eq.s32.totalorder %s22, 1
      %p78 = por %p76, %p77
      %p79 = scmp.ne.s32.totalorder %s68, %s69
      %p80 = scmp.eq.s32.totalorder %s22, 0
      %p81 = por %p79, %p80
      %p82 = scmp.ne.s32.totalorder %s68, %s69
      %p83 = scmp.eq.s32.totalorder %s23, 1
      %p84 = por %p82, %p83
      %p86 = scmp.ne.s32.totalorder %s69, %s85
      %p87 = scmp.eq.s32.totalorder %s23, 0
      %p88 = por %p86, %p87
      %s89 = ssub.s32 %s25, %s32
      %p90 = scmp.eq.s32.totalorder %s89, 0
      %s92 = sadd.s32 %s91, 1
      %s93 = scalar_select %p90, %s91, %s92
      %p96 = pneg %p90
      %p97 = scmp.eq.s32.totalorder %s17, 1
      %p98 = por %p96, %p97
      %p99 = scmp.ne.s32.totalorder %s91, %s94
      %p100 = scmp.eq.s32.totalorder %s17, 0
      %p101 = por %p99, %p100
      %p102 = scmp.ne.s32.totalorder %s91, %s94
      %p103 = scmp.eq.s32.totalorder %s22, 1
      %p104 = por %p102, %p103
      %p105 = scmp.ne.s32.totalorder %s94, %s95
      %p106 = scmp.eq.s32.totalorder %s22, 0
      %p107 = por %p105, %p106
      %p108 = scmp.ne.s32.totalorder %s94, %s95
      %p109 = scmp.eq.s32.totalorder %s23, 1
      %p110 = por %p108, %p109
      %p112 = scmp.ne.s32.totalorder %s95, %s111
      %p113 = scmp.eq.s32.totalorder %s23, 0
      %p114 = por %p112, %p113
      %s115 = ssub.s32 %s25, %s32
      %p116 = scmp.eq.s32.totalorder %s115, 0
      %s118 = sadd.s32 %s117, 1
      %s119 = scalar_select %p116, %s117, %s118
      %p122 = pneg %p116
      %p123 = scmp.eq.s32.totalorder %s17, 1
      %p124 = por %p122, %p123
      %p125 = scmp.ne.s32.totalorder %s117, %s120
      %p126 = scmp.eq.s32.totalorder %s17, 0
      %p127 = por %p125, %p126
      %p128 = scmp.ne.s32.totalorder %s117, %s120
      %p129 = scmp.eq.s32.totalorder %s22, 1
      %p130 = por %p128, %p129
      %p131 = scmp.ne.s32.totalorder %s120, %s121
      %p132 = scmp.eq.s32.totalorder %s22, 0
      %p133 = por %p131, %p132
      %p134 = scmp.ne.s32.totalorder %s120, %s121
      %p135 = scmp.eq.s32.totalorder %s23, 1
      %p136 = por %p134, %p135
      %p138 = scmp.ne.s32.totalorder %s121, %s137
      %p139 = scmp.eq.s32.totalorder %s23, 0
      %p140 = por %p138, %p139
      %s141 = ssub.s32 %s25, %s32
      %p142 = scmp.eq.s32.totalorder %s141, 0
      %s144 = sadd.s32 %s143, 1
      %s145 = scalar_select %p142, %s143, %s144
      %p148 = pneg %p142
      %p149 = scmp.eq.s32.totalorder %s17, 1
      %p150 = por %p148, %p149
      %p151 = scmp.ne.s32.totalorder %s143, %s146
      %p152 = scmp.eq.s32.totalorder %s17, 0
      %p153 = por %p151, %p152
      %p154 = scmp.ne.s32.totalorder %s143, %s146
      %p155 = scmp.eq.s32.totalorder %s22, 1
      %p156 = por %p154, %p155
      %p157 = scmp.ne.s32.totalorder %s146, %s147
      %p158 = scmp.eq.s32.totalorder %s22, 0
      %p159 = por %p157, %p158
      %p160 = scmp.ne.s32.totalorder %s146, %s147
      %p161 = scmp.eq.s32.totalorder %s23, 1
      %p162 = por %p160, %p161
      %p164 = scmp.ne.s32.totalorder %s147, %s163
      %p165 = scmp.eq.s32.totalorder %s23, 0
      %p166 = por %p164, %p165
      %s167 = ssub.s32 %s25, %s32
      %p168 = scmp.eq.s32.totalorder %s167, 0
      %s170 = sadd.s32 %s169, 1
      %s171 = scalar_select %p168, %s169, %s170
      %p174 = pneg %p168
      %p175 = scmp.eq.s32.totalorder %s17, 1
      %p176 = por %p174, %p175
      %p177 = scmp.ne.s32.totalorder %s169, %s172
      %p178 = scmp.eq.s32.totalorder %s17, 0
      %p179 = por %p177, %p178
      %p180 = scmp.ne.s32.totalorder %s169, %s172
      %p181 = scmp.eq.s32.totalorder %s22, 1
      %p182 = por %p180, %p181
      %p183 = scmp.ne.s32.totalorder %s172, %s173
      %p184 = scmp.eq.s32.totalorder %s22, 0
      %p185 = por %p183, %p184
      %p186 = scmp.ne.s32.totalorder %s172, %s173
      %p187 = scmp.eq.s32.totalorder %s23, 1
      %p188 = por %p186, %p187
      %p190 = scmp.ne.s32.totalorder %s173, %s189
      %p191 = scmp.eq.s32.totalorder %s23, 0
      %p192 = por %p190, %p191
      %s194 = sadd.s32 %s193, 1
      %p197 = scmp.eq.s32.totalorder %s17, 1
      %p198 = scmp.ne.s32.totalorder %s193, %s195
      %p199 = scmp.eq.s32.totalorder %s17, 0
      %p200 = por %p198, %p199
      %p201 = scmp.ne.s32.totalorder %s193, %s195
      %p202 = scmp.eq.s32.totalorder %s22, 1
      %p203 = por %p201, %p202
      %p204 = scmp.ne.s32.totalorder %s195, %s196
      %p205 = scmp.eq.s32.totalorder %s22, 0
      %p206 = por %p204, %p205
      %p207 = scmp.ne.s32.totalorder %s195, %s196
      %p208 = scmp.eq.s32.totalorder %s23, 1
      %p209 = por %p207, %p208
      %p211 = scmp.ne.s32.totalorder %s196, %s210
      %p212 = scmp.eq.s32.totalorder %s23, 0
      %p213 = por %p211, %p212
      %s215 = sadd.s32 %s214, 1
      %p218 = scmp.eq.s32.totalorder %s17, 1
      %p219 = scmp.ne.s32.totalorder %s214, %s216
      %p220 = scmp.eq.s32.totalorder %s17, 0
      %p221 = por %p219, %p220
      %p222 = scmp.ne.s32.totalorder %s214, %s216
      %p223 = scmp.eq.s32.totalorder %s22, 1
      %p224 = por %p222, %p223
      %p225 = scmp.ne.s32.totalorder %s216, %s217
      %p226 = scmp.eq.s32.totalorder %s22, 0
      %p227 = por %p225, %p226
      %p228 = scmp.ne.s32.totalorder %s216, %s217
      %p229 = scmp.eq.s32.totalorder %s23, 1
      %p230 = por %p228, %p229
      %p232 = scmp.ne.s32.totalorder %s217, %s231
      %p233 = scmp.eq.s32.totalorder %s23, 0
      %p234 = por %p232, %p233
      %s235 = ssub.s32 %s24, %s36
      %s236 = ssub.s32 %s25, %s32
      %s237 = sor.u32 %s235, %s236
      %p238 = scmp.eq.s32.totalorder %s237, 0
      %s240 = sadd.s32 %s239, 1
      %s241 = scalar_select %p238, %s239, %s240
      %p244 = pneg %p238
      %p245 = scmp.eq.s32.totalorder %s17, 1
      %p246 = por %p244, %p245
      %p247 = scmp.ne.s32.totalorder %s239, %s242
      %p248 = scmp.eq.s32.totalorder %s17, 0
      %p249 = por %p247, %p248
      %p250 = scmp.ne.s32.totalorder %s239, %s242
      %p251 = scmp.eq.s32.totalorder %s22, 1
      %p252 = por %p250, %p251
      %p253 = scmp.ne.s32.totalorder %s242, %s243
      %p254 = scmp.eq.s32.totalorder %s22, 0
      %p255 = por %p253, %p254
      %p256 = scmp.ne.s32.totalorder %s242, %s243
      %p257 = scmp.eq.s32.totalorder %s23, 1
      %p258 = por %p256, %p257
      %p260 = scmp.ne.s32.totalorder %s243, %s259
      %p261 = scmp.eq.s32.totalorder %s23, 0
      %p262 = por %p260, %p261
      %p263 = scmp.le.s32.totalorder 1, %s17
      %p264 = scmp.lt.s32.totalorder %s17, 3
      %p265 = pnand %p263, %p264
      %p266 = pneg %p265
      // Predicated region
      $region9: #{tpu_custom_call.1} parent=5 // pred_check
        _
      $region10: #{tpu_custom_call.1} parent=5 // pred_check_branch
        %268 = sbr.rel (%p265) target = $region12
      $region11: #{tpu_custom_call.1} parent=5 // pred_region
        %s269 = ssub.s32 %s17, 1
        // Predicated region
        $region13: #{tpu_custom_call.1} parent=11 // pred_check
          %p270 = pneg %p107
        $region14: #{tpu_custom_call.1} parent=11 // pred_check_branch
          %272 = sbr.rel (%p270) target = $region16
        $region15: #{tpu_custom_call.1} parent=11 // pred_region
          %p273 = scmp.lt.s32.totalorder %s27, 0
          %s274 = scalar_select %p273, %s27, 0
          %s275 = smul.addr %s274, 4
          %s276 = scalar_lea.vmem %s2, %s275
        $region16: #{tpu_custom_call.1} parent=11 // pred_fallthru
          _
        // Predicated region
        $region17: #{tpu_custom_call.1} parent=11 // pred_check
          %p277 = pneg %p133
        $region18: #{tpu_custom_call.1} parent=11 // pred_check_branch
          %279 = sbr.rel (%p277) target = $region20
        $region19: #{tpu_custom_call.1} parent=11 // pred_region
          %p280 = scmp.lt.s32.totalorder %s27, 0
          %s281 = scalar_select %p280, %s27, 0
          %s282 = smul.addr %s281, 8
          %s283 = scalar_lea.vmem %s3, %s282
        $region20: #{tpu_custom_call.1} parent=11 // pred_fallthru
          _
        // Predicated region
        $region21: #{tpu_custom_call.1} parent=11 // pred_check
          %p284 = pneg %p159
        $region22: #{tpu_custom_call.1} parent=11 // pred_check_branch
          %286 = sbr.rel (%p284) target = $region24
        $region23: #{tpu_custom_call.1} parent=11 // pred_region
          %p287 = scmp.lt.s32.totalorder %s27, 0
          %s288 = scalar_select %p287, %s27, 0
          %s289 = smul.addr %s288, 4
          %s290 = scalar_lea.vmem %s4, %s289
        $region24: #{tpu_custom_call.1} parent=11 // pred_fallthru
          _
        // Predicated region
        $region25: #{tpu_custom_call.1} parent=11 // pred_check
          %p291 = pneg %p185
        $region26: #{tpu_custom_call.1} parent=11 // pred_check_branch
          %293 = sbr.rel (%p291) target = $region28
        $region27: #{tpu_custom_call.1} parent=11 // pred_region
          %p294 = scmp.lt.s32.totalorder %s27, 0
          %s295 = scalar_select %p294, %s27, 0
          %s296 = smul.addr %s295, 8
          %s297 = scalar_lea.vmem %s5, %s296
        $region28: #{tpu_custom_call.1} parent=11 // pred_fallthru
          _
        // Predicated region
        $region29: #{tpu_custom_call.1} parent=11 // pred_check
          %p298 = pneg %p206
        $region30: #{tpu_custom_call.1} parent=11 // pred_check_branch
          %300 = sbr.rel (%p298) target = $region32
        $region31: #{tpu_custom_call.1} parent=11 // pred_region
          _
        $region32: #{tpu_custom_call.1} parent=11 // pred_fallthru
          _
        // Predicated region
        $region33: #{tpu_custom_call.1} parent=11 // pred_check
          %p301 = pneg %p227
        $region34: #{tpu_custom_call.1} parent=11 // pred_check_branch
          %303 = sbr.rel (%p301) target = $region36
        $region35: #{tpu_custom_call.1} parent=11 // pred_region
          _
        $region36: #{tpu_custom_call.1} parent=11 // pred_fallthru
          _
      $region12: #{tpu_custom_call.1} parent=5 // pred_fallthru
        _
      %p304 = scmp.lt.s32.totalorder %s17, 2
      // Predicated region
      $region37: #{tpu_custom_call.1} parent=5 // pred_check
        %p305 = pneg %p304
      $region38: #{tpu_custom_call.1} parent=5 // pred_check_branch
        %307 = sbr.rel (%p305) target = $region40
      $region39: #{tpu_custom_call.1} parent=5 // pred_region
        // Predicated region
        $region41: #{tpu_custom_call.1} parent=39 // pred_check
          %p308 = pneg %p49
        $region42: #{tpu_custom_call.1} parent=39 // pred_check_branch
          %310 = sbr.rel (%p308) target = $region44
        $region43: #{tpu_custom_call.1} parent=39 // pred_region
          %p311 = scmp.lt.s32.totalorder %s24, 1
          %s312 = scalar_select %p311, %s24, 1
          %s313 = smul.addr %s312, 3
          %s314 = smul.addr %s313, 2
          %s315 = scalar_lea.vmem %s0, %s314
        $region44: #{tpu_custom_call.1} parent=39 // pred_fallthru
          _
        // Predicated region
        $region45: #{tpu_custom_call.1} parent=39 // pred_check
          %p316 = pneg %p75
        $region46: #{tpu_custom_call.1} parent=39 // pred_check_branch
          %318 = sbr.rel (%p316) target = $region48
        $region47: #{tpu_custom_call.1} parent=39 // pred_region
          %p319 = scmp.lt.s32.totalorder %s24, 1
          %s320 = scalar_select %p319, %s24, 1
          %s321 = smul.addr %s320, 8
          %s322 = smul.addr %s321, 4
          %s323 = scalar_lea.vmem %s1, %s322
        $region48: #{tpu_custom_call.1} parent=39 // pred_fallthru
          _
      $region40: #{tpu_custom_call.1} parent=5 // pred_fallthru
        _
      %p324 = scmp.le.s32.totalorder 1, %s17
      %p325 = scmp.lt.s32.totalorder %s17, 3
      %p326 = pnand %p324, %p325
      %p327 = pneg %p326
      // Predicated region
      $region49: #{tpu_custom_call.1} parent=5 // pred_check
        _
      $region50: #{tpu_custom_call.1} parent=5 // pred_check_branch
        %329 = sbr.rel (%p326) target = $region52
      $region51: #{tpu_custom_call.1} parent=5 // pred_region
        %s330 = ssub.s32 %s17, 1
        %p331 = scmp.lt.s32.totalorder %s26, 1
        %s332 = scalar_select %p331, %s26, 1
        %s333 = smul.addr %s332, 3
        %s334 = smul.addr %s333, 2
        %s335 = scalar_lea.vmem %s0, %s334
        %p336 = pneg %p55
        %p337 = pneg %p52
        %p338 = scmp.lt.s32.totalorder %s26, 1
        %s339 = scalar_select %p338, %s26, 1
        %s340 = smul.addr %s339, 8
        %s341 = smul.addr %s340, 4
        %s342 = scalar_lea.vmem %s1, %s341
        %p343 = pneg %p81
        %p344 = pneg %p78
        %p345 = scmp.lt.s32.totalorder %s27, 0
        %s346 = scalar_select %p345, %s27, 0
        %s347 = smul.addr %s346, 4
        %s348 = scalar_lea.vmem %s2, %s347
        %p349 = pneg %p107
        %p350 = pneg %p104
        %p351 = scmp.lt.s32.totalorder %s27, 0
        %s352 = scalar_select %p351, %s27, 0
        %s353 = smul.addr %s352, 8
        %s354 = scalar_lea.vmem %s3, %s353
        %p355 = pneg %p133
        %p356 = pneg %p130
        %p357 = scmp.lt.s32.totalorder %s27, 0
        %s358 = scalar_select %p357, %s27, 0
        %s359 = smul.addr %s358, 4
        %s360 = scalar_lea.vmem %s4, %s359
        %p361 = pneg %p159
        %p362 = pneg %p156
        %p363 = scmp.lt.s32.totalorder %s27, 0
        %s364 = scalar_select %p363, %s27, 0
        %s365 = smul.addr %s364, 8
        %s366 = scalar_lea.vmem %s5, %s365
        %p367 = pneg %p185
        %p368 = pneg %p182
        %p369 = pneg %p206
        %p370 = pneg %p203
        %p371 = pneg %p227
        %p372 = pneg %p224
        %p373 = pneg %p255
        %p374 = pneg %p252
        %s375 = sand.u32 %s242, 1
        %s376 = scalar_lea.sflag [#allocation6], %s375
        %s377 = sand.u32 %s242, 1
        %s378 = smul.addr %s377, 64
        %s379 = scalar_lea.vmem [#allocation5], %s378
        %p380 = scmp.lt.s32.totalorder %s26, 1
        %s381 = scalar_select %p380, %s26, 1
        %s382 = smul.addr %s381, 3
        %s383 = smul.addr %s382, 2
        %s384 = scalar_lea.vmem %s0, %s383
        %p385 = scmp.lt.s32.totalorder %s26, 1
        %s386 = scalar_select %p385, %s26, 1
        %s387 = smul.addr %s386, 8
        %s388 = smul.addr %s387, 4
        %s389 = scalar_lea.vmem %s1, %s388
        %p390 = scmp.lt.s32.totalorder %s27, 0
        %s391 = scalar_select %p390, %s27, 0
        %s392 = smul.addr %s391, 4
        %s393 = scalar_lea.vmem %s2, %s392
        %p394 = scmp.lt.s32.totalorder %s27, 0
        %s395 = scalar_select %p394, %s27, 0
        %s396 = smul.addr %s395, 8
        %s397 = scalar_lea.vmem %s3, %s396
        %p398 = scmp.lt.s32.totalorder %s27, 0
        %s399 = scalar_select %p398, %s27, 0
        %s400 = smul.addr %s399, 4
        %s401 = scalar_lea.vmem %s4, %s400
        %p402 = scmp.lt.s32.totalorder %s27, 0
        %s403 = scalar_select %p402, %s27, 0
        %s404 = smul.addr %s403, 8
        %s405 = scalar_lea.vmem %s5, %s404
        %v407 = vld [vmem:[%s384] sm:$0x3f]
        %v408 = vld [vmem:[%s393] sm:$0xf]
        %v410 = vunpack.c.l.b16 %v408
        %v411 = vpack.c.b16 %v410, %v410
        %412 = vrot.lane.b32.xlu0 %v411, 124
        %v413 = vpop.permute.xlu0 %412
        %415 = vst [vmem:[#allocation1] ss:$4 sm:$0xff] %v407
        %v416 = vld.sshfl [vmem:[#allocation1] sm:$0xff pattern:$0x73625140]
        %v418 = vld.sshfl [vmem:[#allocation1 + $0x8] sm:$0xff pattern:$0x73625140]
        %v420 = vld.sshfl [vmem:[#allocation1 + $0x10] sm:$0xff pattern:$0x73625140]
        %422 = vrot.lane.b32.xlu0 %v416, 127
        %v423 = vpop.permute.xlu0 %422
        %424 = vrot.lane.b32.xlu0 %v418, 127
        %v425 = vpop.permute.xlu0 %424
        %426 = vrot.lane.b32.xlu0 %v420, 127
        %v427 = vpop.permute.xlu0 %426
        %vm428 = vcmask 1039360
        %v429 = vsel %vm428, %v423, %v425
        %v430 = vsel %vm428, %v425, %v427
        %vm431 = vcmask 31744
        %v433 = vsel %vm431, %v413, 0
        %vm435 = vcmask 1041408
        %v437 = vsel %vm435, %v429, 0
        %v440 = vsel %vm435, %v430, 0
        %v443 = vsel %vm435, %v427, 0
        %445 = vmatpush.bf16.msra.mxu0 0
        %446 = vmatpush.bf16.msra.mxu0 0
        %447 = vmatpush.bf16.msra.mxu0 0
        %448 = vmatpush.bf16.msra.mxu0 0
        %449 = vmatpush.bf16.msra.mxu0 0
        %450 = vmatpush.bf16.msra.mxu0 0
        %451 = vmatpush.bf16.msra.mxu0 0
        %452 = vmatpush.bf16.msra.mxu0 %v437
        %453 = vmatmul.bf16.gmra.mxu0 %v433
        %v454 = vpop.f32.mrf.mxu0
        %v455 = vadd.f32 0.0, %v454
        %v456 = vpop.f32.mrf.mxu0
        %457 = vdwg.mxu0
        %458 = vmatpush.bf16.msra.mxu0 0
        %459 = vmatpush.bf16.msra.mxu0 0
        %460 = vmatpush.bf16.msra.mxu0 0
        %461 = vmatpush.bf16.msra.mxu0 0
        %462 = vmatpush.bf16.msra.mxu0 0
        %463 = vmatpush.bf16.msra.mxu0 0
        %464 = vmatpush.bf16.msra.mxu0 0
        %465 = vmatpush.bf16.msra.mxu0 %v440
        %466 = vmatmul.bf16.gmra.mxu0 %v433
        %v467 = vpop.f32.mrf.mxu0
        %v468 = vadd.f32 0.0, %v467
        %v469 = vpop.f32.mrf.mxu0
        %470 = vdwg.mxu0
        %471 = vmatpush.bf16.msra.mxu0 0
        %472 = vmatpush.bf16.msra.mxu0 0
        %473 = vmatpush.bf16.msra.mxu0 0
        %474 = vmatpush.bf16.msra.mxu0 0
        %475 = vmatpush.bf16.msra.mxu0 0
        %476 = vmatpush.bf16.msra.mxu0 0
        %477 = vmatpush.bf16.msra.mxu0 0
        %478 = vmatpush.bf16.msra.mxu0 %v443
        %479 = vmatmul.bf16.gmra.mxu0 %v433
        %v480 = vpop.f32.mrf.mxu0
        %v481 = vadd.f32 0.0, %v480
        %v482 = vpop.f32.mrf.mxu0
        %483 = vdwg.mxu0
        %484 = vst [vmem:[#allocation1] ss:$4 sm:$0xff] %v407
        %v485 = vld.sshfl [vmem:[#allocation1] sm:$0xff pattern:$0x73625140]
        %v486 = vld.sshfl [vmem:[#allocation1 + $0x8] sm:$0xff pattern:$0x73625140]
        %v487 = vld.sshfl [vmem:[#allocation1 + $0x10] sm:$0xff pattern:$0x73625140]
        %v489 = vsel %vm431, %v408, 0
        %v491 = vsel %vm435, %v485, 0
        %v493 = vsel %vm435, %v486, 0
        %v495 = vsel %vm435, %v487, 0
        %497 = vmatpush.bf16.msra.mxu0 0
        %498 = vmatpush.bf16.msra.mxu0 0
        %499 = vmatpush.bf16.msra.mxu0 0
        %500 = vmatpush.bf16.msra.mxu0 0
        %501 = vmatpush.bf16.msra.mxu0 0
        %502 = vmatpush.bf16.msra.mxu0 0
        %503 = vmatpush.bf16.msra.mxu0 0
        %504 = vmatpush.bf16.msra.mxu0 %v491
        %505 = vmatmul.bf16.gmra.mxu0 %v489
        %v506 = vpop.f32.mrf.mxu0
        %v507 = vadd.f32 %v455, %v506
        %v508 = vpop.f32.mrf.mxu0
        %509 = vdwg.mxu0
        %510 = vmatpush.bf16.msra.mxu0 0
        %511 = vmatpush.bf16.msra.mxu0 0
        %512 = vmatpush.bf16.msra.mxu0 0
        %513 = vmatpush.bf16.msra.mxu0 0
        %514 = vmatpush.bf16.msra.mxu0 0
        %515 = vmatpush.bf16.msra.mxu0 0
        %516 = vmatpush.bf16.msra.mxu0 0
        %517 = vmatpush.bf16.msra.mxu0 %v493
        %518 = vmatmul.bf16.gmra.mxu0 %v489
        %v519 = vpop.f32.mrf.mxu0
        %v520 = vadd.f32 %v468, %v519
        %v521 = vpop.f32.mrf.mxu0
        %522 = vdwg.mxu0
        %523 = vmatpush.bf16.msra.mxu0 0
        %524 = vmatpush.bf16.msra.mxu0 0
        %525 = vmatpush.bf16.msra.mxu0 0
        %526 = vmatpush.bf16.msra.mxu0 0
        %527 = vmatpush.bf16.msra.mxu0 0
        %528 = vmatpush.bf16.msra.mxu0 0
        %529 = vmatpush.bf16.msra.mxu0 0
        %530 = vmatpush.bf16.msra.mxu0 %v495
        %531 = vmatmul.bf16.gmra.mxu0 %v489
        %v532 = vpop.f32.mrf.mxu0
        %v533 = vadd.f32 %v481, %v532
        %v534 = vpop.f32.mrf.mxu0
        %535 = vdwg.mxu0
        %v536 = vld [vmem:[%s384] sm:$0x3f]
        %v537 = vld [vmem:[%s393] sm:$0xf]
        %v539 = vunpack.c.l.b16 %v537
        %v540 = vpack.c.b16 %v539, %v539
        %541 = vrot.lane.b32.xlu0 %v540, 120
        %v542 = vpop.permute.xlu0 %541
        %544 = vst [vmem:[#allocation1] ss:$4 sm:$0xff] %v536
        %v545 = vld.sshfl [vmem:[#allocation1] sm:$0xff pattern:$0x73625140]
        %v547 = vld.sshfl [vmem:[#allocation1 + $0x8] sm:$0xff pattern:$0x73625140]
        %v549 = vld.sshfl [vmem:[#allocation1 + $0x10] sm:$0xff pattern:$0x73625140]
        %551 = vrot.lane.b32.xlu0 %v545, 126
        %v552 = vpop.permute.xlu0 %551
        %553 = vrot.lane.b32.xlu0 %v547, 126
        %v554 = vpop.permute.xlu0 %553
        %555 = vrot.lane.b32.xlu0 %v549, 126
        %v556 = vpop.permute.xlu0 %555
        %vm557 = vcmask 1031168
        %v558 = vsel %vm557, %v552, %v554
        %v559 = vsel %vm557, %v554, %v556
        %v561 = vsel %vm431, %v542, 0
        %v564 = vsel %vm435, %v558, 0
        %v567 = vsel %vm435, %v559, 0
        %v570 = vsel %vm435, %v556, 0
        %572 = vmatpush.bf16.msra.mxu0 0
        %573 = vmatpush.bf16.msra.mxu0 0
        %574 = vmatpush.bf16.msra.mxu0 0
        %575 = vmatpush.bf16.msra.mxu0 0
        %576 = vmatpush.bf16.msra.mxu0 0
        %577 = vmatpush.bf16.msra.mxu0 0
        %578 = vmatpush.bf16.msra.mxu0 0
        %579 = vmatpush.bf16.msra.mxu0 %v564
        %580 = vmatmul.bf16.gmra.mxu0 %v561
        %v581 = vpop.f32.mrf.mxu0
        %v582 = vadd.f32 0.0, %v581
        %v583 = vpop.f32.mrf.mxu0
        %584 = vdwg.mxu0
        %585 = vmatpush.bf16.msra.mxu0 0
        %586 = vmatpush.bf16.msra.mxu0 0
        %587 = vmatpush.bf16.msra.mxu0 0
        %588 = vmatpush.bf16.msra.mxu0 0
        %589 = vmatpush.bf16.msra.mxu0 0
        %590 = vmatpush.bf16.msra.mxu0 0
        %591 = vmatpush.bf16.msra.mxu0 0
        %592 = vmatpush.bf16.msra.mxu0 %v567
        %593 = vmatmul.bf16.gmra.mxu0 %v561
        %v594 = vpop.f32.mrf.mxu0
        %v595 = vadd.f32 0.0, %v594
        %v596 = vpop.f32.mrf.mxu0
        %597 = vdwg.mxu0
        %598 = vmatpush.bf16.msra.mxu0 0
        %599 = vmatpush.bf16.msra.mxu0 0
        %600 = vmatpush.bf16.msra.mxu0 0
        %601 = vmatpush.bf16.msra.mxu0 0
        %602 = vmatpush.bf16.msra.mxu0 0
        %603 = vmatpush.bf16.msra.mxu0 0
        %604 = vmatpush.bf16.msra.mxu0 0
        %605 = vmatpush.bf16.msra.mxu0 %v570
        %606 = vmatmul.bf16.gmra.mxu0 %v561
        %v607 = vpop.f32.mrf.mxu0
        %v608 = vadd.f32 0.0, %v607
        %v609 = vpop.f32.mrf.mxu0
        %610 = vdwg.mxu0
        %v611 = vadd.f32 %v507, %v582
        %v612 = vadd.f32 %v520, %v595
        %v613 = vadd.f32 %v533, %v608
        %v614 = vld [vmem:[%s384] sm:$0x3f]
        %v615 = vld [vmem:[%s393] sm:$0xf]
        %v617 = vunpack.c.l.b16 %v615
        %v618 = vpack.c.b16 %v617, %v617
        %619 = vrot.lane.b32.xlu0 %v618, 116
        %v620 = vpop.permute.xlu0 %619
        %622 = vst [vmem:[#allocation1] ss:$4 sm:$0xff] %v614
        %v623 = vld.sshfl [vmem:[#allocation1] sm:$0xff pattern:$0x73625140]
        %v625 = vld.sshfl [vmem:[#allocation1 + $0x8] sm:$0xff pattern:$0x73625140]
        %v627 = vld.sshfl [vmem:[#allocation1 + $0x10] sm:$0xff pattern:$0x73625140]
        %629 = vrot.lane.b32.xlu0 %v623, 110
        %v630 = vpop.permute.xlu0 %629
        %631 = vrot.lane.b32.xlu0 %v625, 110
        %v632 = vpop.permute.xlu0 %631
        %633 = vrot.lane.b32.xlu0 %v627, 110
        %v634 = vpop.permute.xlu0 %633
        %vm635 = vcmask 900096
        %v636 = vsel %vm635, %v630, %v632
        %v637 = vsel %vm635, %v632, %v634
        %v639 = vsel %vm431, %v620, 0
        %v642 = vsel %vm435, %v636, 0
        %v645 = vsel %vm435, %v637, 0
        %v648 = vsel %vm435, %v634, 0
        %650 = vmatpush.bf16.msra.mxu0 0
        %651 = vmatpush.bf16.msra.mxu0 0
        %652 = vmatpush.bf16.msra.mxu0 0
        %653 = vmatpush.bf16.msra.mxu0 0
        %654 = vmatpush.bf16.msra.mxu0 0
        %655 = vmatpush.bf16.msra.mxu0 0
        %656 = vmatpush.bf16.msra.mxu0 0
        %657 = vmatpush.bf16.msra.mxu0 %v642
        %658 = vmatmul.bf16.gmra.mxu0 %v639
        %v659 = vpop.f32.mrf.mxu0
        %v660 = vadd.f32 0.0, %v659
        %v661 = vpop.f32.mrf.mxu0
        %662 = vdwg.mxu0
        %663 = vmatpush.bf16.msra.mxu0 0
        %664 = vmatpush.bf16.msra.mxu0 0
        %665 = vmatpush.bf16.msra.mxu0 0
        %666 = vmatpush.bf16.msra.mxu0 0
        %667 = vmatpush.bf16.msra.mxu0 0
        %668 = vmatpush.bf16.msra.mxu0 0
        %669 = vmatpush.bf16.msra.mxu0 0
        %670 = vmatpush.bf16.msra.mxu0 %v645
        %671 = vmatmul.bf16.gmra.mxu0 %v639
        %v672 = vpop.f32.mrf.mxu0
        %v673 = vadd.f32 0.0, %v672
        %v674 = vpop.f32.mrf.mxu0
        %675 = vdwg.mxu0
        %676 = vmatpush.bf16.msra.mxu0 0
        %677 = vmatpush.bf16.msra.mxu0 0
        %678 = vmatpush.bf16.msra.mxu0 0
        %679 = vmatpush.bf16.msra.mxu0 0
        %680 = vmatpush.bf16.msra.mxu0 0
        %681 = vmatpush.bf16.msra.mxu0 0
        %682 = vmatpush.bf16.msra.mxu0 0
        %683 = vmatpush.bf16.msra.mxu0 %v648
        %684 = vmatmul.bf16.gmra.mxu0 %v639
        %v685 = vpop.f32.mrf.mxu0
        %v686 = vadd.f32 0.0, %v685
        %v687 = vpop.f32.mrf.mxu0
        %688 = vdwg.mxu0
        %v689 = vadd.f32 %v611, %v660
        %v690 = vadd.f32 %v612, %v673
        %v691 = vadd.f32 %v613, %v686
        %v692 = vld [vmem:[%s384] sm:$0x3f]
        %v693 = vld [vmem:[%s393] sm:$0xf]
        %v695 = vunpack.c.l.b16 %v693
        %v696 = vpack.c.b16 %v695, %v695
        %697 = vrot.lane.b32.xlu0 %v696, 112
        %v698 = vpop.permute.xlu0 %697
        %700 = vst [vmem:[#allocation1] ss:$4 sm:$0xff] %v692
        %v701 = vld.sshfl [vmem:[#allocation1] sm:$0xff pattern:$0x73625140]
        %v703 = vld.sshfl [vmem:[#allocation1 + $0x8] sm:$0xff pattern:$0x73625140]
        %v705 = vld.sshfl [vmem:[#allocation1 + $0x10] sm:$0xff pattern:$0x73625140]
        %707 = vrot.lane.b32.xlu0 %v701, 109
        %v708 = vpop.permute.xlu0 %707
        %709 = vrot.lane.b32.xlu0 %v703, 109
        %v710 = vpop.permute.xlu0 %709
        %711 = vrot.lane.b32.xlu0 %v705, 109
        %v712 = vpop.permute.xlu0 %711
        %vm713 = vcmask 891904
        %v714 = vsel %vm713, %v708, %v710
        %v715 = vsel %vm713, %v710, %v712
        %v717 = vsel %vm431, %v698, 0
        %v720 = vsel %vm435, %v714, 0
        %v723 = vsel %vm435, %v715, 0
        %v726 = vsel %vm435, %v712, 0
        %728 = vmatpush.bf16.msra.mxu0 0
        %729 = vmatpush.bf16.msra.mxu0 0
        %730 = vmatpush.bf16.msra.mxu0 0
        %731 = vmatpush.bf16.msra.mxu0 0
        %732 = vmatpush.bf16.msra.mxu0 0
        %733 = vmatpush.bf16.msra.mxu0 0
        %734 = vmatpush.bf16.msra.mxu0 0
        %735 = vmatpush.bf16.msra.mxu0 %v720
        %736 = vmatmul.bf16.gmra.mxu0 %v717
        %v737 = vpop.f32.mrf.mxu0
        %v738 = vadd.f32 0.0, %v737
        %v739 = vpop.f32.mrf.mxu0
        %740 = vdwg.mxu0
        %741 = vmatpush.bf16.msra.mxu0 0
        %742 = vmatpush.bf16.msra.mxu0 0
        %743 = vmatpush.bf16.msra.mxu0 0
        %744 = vmatpush.bf16.msra.mxu0 0
        %745 = vmatpush.bf16.msra.mxu0 0
        %746 = vmatpush.bf16.msra.mxu0 0
        %747 = vmatpush.bf16.msra.mxu0 0
        %748 = vmatpush.bf16.msra.mxu0 %v723
        %749 = vmatmul.bf16.gmra.mxu0 %v717
        %v750 = vpop.f32.mrf.mxu0
        %v751 = vadd.f32 0.0, %v750
        %v752 = vpop.f32.mrf.mxu0
        %753 = vdwg.mxu0
        %754 = vmatpush.bf16.msra.mxu0 0
        %755 = vmatpush.bf16.msra.mxu0 0
        %756 = vmatpush.bf16.msra.mxu0 0
        %757 = vmatpush.bf16.msra.mxu0 0
        %758 = vmatpush.bf16.msra.mxu0 0
        %759 = vmatpush.bf16.msra.mxu0 0
        %760 = vmatpush.bf16.msra.mxu0 0
        %761 = vmatpush.bf16.msra.mxu0 %v726
        %762 = vmatmul.bf16.gmra.mxu0 %v717
        %v763 = vpop.f32.mrf.mxu0
        %v764 = vadd.f32 0.0, %v763
        %v765 = vpop.f32.mrf.mxu0
        %766 = vdwg.mxu0
        %v767 = vadd.f32 %v689, %v738
        %v768 = vadd.f32 %v690, %v751
        %v769 = vadd.f32 %v691, %v764
        %v770 = vld [vmem:[%s384] sm:$0x3f]
        %v771 = vld [vmem:[%s393] sm:$0xf]
        %v773 = vunpack.c.l.b16 %v771
        %v774 = vpack.c.b16 %v773, %v773
        %775 = vrot.lane.b32.xlu0 %v774, 108
        %v776 = vpop.permute.xlu0 %775
        %778 = vst [vmem:[#allocation1] ss:$4 sm:$0xff] %v770
        %v779 = vld.sshfl [vmem:[#allocation1] sm:$0xff pattern:$0x73625140]
        %v781 = vld.sshfl [vmem:[#allocation1 + $0x8] sm:$0xff pattern:$0x73625140]
        %v783 = vld.sshfl [vmem:[#allocation1 + $0x10] sm:$0xff pattern:$0x73625140]
        %785 = vrot.lane.b32.xlu0 %v779, 108
        %v786 = vpop.permute.xlu0 %785
        %787 = vrot.lane.b32.xlu0 %v781, 108
        %v788 = vpop.permute.xlu0 %787
        %789 = vrot.lane.b32.xlu0 %v783, 108
        %v790 = vpop.permute.xlu0 %789
        %vm791 = vcmask 883712
        %v792 = vsel %vm791, %v786, %v788
        %v793 = vsel %vm791, %v788, %v790
        %v795 = vsel %vm431, %v776, 0
        %v798 = vsel %vm435, %v792, 0
        %v801 = vsel %vm435, %v793, 0
        %v804 = vsel %vm435, %v790, 0
        %806 = vmatpush.bf16.msra.mxu0 0
        %807 = vmatpush.bf16.msra.mxu0 0
        %808 = vmatpush.bf16.msra.mxu0 0
        %809 = vmatpush.bf16.msra.mxu0 0
        %810 = vmatpush.bf16.msra.mxu0 0
        %811 = vmatpush.bf16.msra.mxu0 0
        %812 = vmatpush.bf16.msra.mxu0 0
        %813 = vmatpush.bf16.msra.mxu0 %v798
        %814 = vmatmul.bf16.gmra.mxu0 %v795
        %v815 = vpop.f32.mrf.mxu0
        %v816 = vadd.f32 0.0, %v815
        %v817 = vpop.f32.mrf.mxu0
        %818 = vdwg.mxu0
        %819 = vmatpush.bf16.msra.mxu0 0
        %820 = vmatpush.bf16.msra.mxu0 0
        %821 = vmatpush.bf16.msra.mxu0 0
        %822 = vmatpush.bf16.msra.mxu0 0
        %823 = vmatpush.bf16.msra.mxu0 0
        %824 = vmatpush.bf16.msra.mxu0 0
        %825 = vmatpush.bf16.msra.mxu0 0
        %826 = vmatpush.bf16.msra.mxu0 %v801
        %827 = vmatmul.bf16.gmra.mxu0 %v795
        %v828 = vpop.f32.mrf.mxu0
        %v829 = vadd.f32 0.0, %v828
        %v830 = vpop.f32.mrf.mxu0
        %831 = vdwg.mxu0
        %832 = vmatpush.bf16.msra.mxu0 0
        %833 = vmatpush.bf16.msra.mxu0 0
        %834 = vmatpush.bf16.msra.mxu0 0
        %835 = vmatpush.bf16.msra.mxu0 0
        %836 = vmatpush.bf16.msra.mxu0 0
        %837 = vmatpush.bf16.msra.mxu0 0
        %838 = vmatpush.bf16.msra.mxu0 0
        %839 = vmatpush.bf16.msra.mxu0 %v804
        %840 = vmatmul.bf16.gmra.mxu0 %v795
        %v841 = vpop.f32.mrf.mxu0
        %v842 = vadd.f32 0.0, %v841
        %v843 = vpop.f32.mrf.mxu0
        %844 = vdwg.mxu0
        %v845 = vadd.f32 %v767, %v816
        %v846 = vadd.f32 %v768, %v829
        %v847 = vadd.f32 %v769, %v842
        %v848 = vld [vmem:[%s384] sm:$0x3f]
        %v849 = vld [vmem:[%s393] sm:$0xf]
        %v851 = vunpack.c.l.b16 %v849
        %v852 = vpack.c.b16 %v851, %v851
        %853 = vrot.lane.b32.xlu0 %v852, 104
        %v854 = vpop.permute.xlu0 %853
        %856 = vst [vmem:[#allocation1] ss:$4 sm:$0xff] %v848
        %v857 = vld.sshfl [vmem:[#allocation1] sm:$0xff pattern:$0x73625140]
        %v859 = vld.sshfl [vmem:[#allocation1 + $0x8] sm:$0xff pattern:$0x73625140]
        %v861 = vld.sshfl [vmem:[#allocation1 + $0x10] sm:$0xff pattern:$0x73625140]
        %863 = vrot.lane.b32.xlu0 %v857, 92
        %v864 = vpop.permute.xlu0 %863
        %865 = vrot.lane.b32.xlu0 %v859, 92
        %v866 = vpop.permute.xlu0 %865
        %867 = vrot.lane.b32.xlu0 %v861, 92
        %v868 = vpop.permute.xlu0 %867
        %vm869 = vcmask 752640
        %v870 = vsel %vm869, %v864, %v866
        %v871 = vsel %vm869, %v866, %v868
        %v873 = vsel %vm431, %v854, 0
        %v876 = vsel %vm435, %v870, 0
        %v879 = vsel %vm435, %v871, 0
        %v882 = vsel %vm435, %v868, 0
        %884 = vmatpush.bf16.msra.mxu0 0
        %885 = vmatpush.bf16.msra.mxu0 0
        %886 = vmatpush.bf16.msra.mxu0 0
        %887 = vmatpush.bf16.msra.mxu0 0
        %888 = vmatpush.bf16.msra.mxu0 0
        %889 = vmatpush.bf16.msra.mxu0 0
        %890 = vmatpush.bf16.msra.mxu0 0
        %891 = vmatpush.bf16.msra.mxu0 %v876
        %892 = vmatmul.bf16.gmra.mxu0 %v873
        %v893 = vpop.f32.mrf.mxu0
        %v894 = vadd.f32 0.0, %v893
        %v895 = vpop.f32.mrf.mxu0
        %896 = vdwg.mxu0
        %897 = vmatpush.bf16.msra.mxu0 0
        %898 = vmatpush.bf16.msra.mxu0 0
        %899 = vmatpush.bf16.msra.mxu0 0
        %900 = vmatpush.bf16.msra.mxu0 0
        %901 = vmatpush.bf16.msra.mxu0 0
        %902 = vmatpush.bf16.msra.mxu0 0
        %903 = vmatpush.bf16.msra.mxu0 0
        %904 = vmatpush.bf16.msra.mxu0 %v879
        %905 = vmatmul.bf16.gmra.mxu0 %v873
        %v906 = vpop.f32.mrf.mxu0
        %v907 = vadd.f32 0.0, %v906
        %v908 = vpop.f32.mrf.mxu0
        %909 = vdwg.mxu0
        %910 = vmatpush.bf16.msra.mxu0 0
        %911 = vmatpush.bf16.msra.mxu0 0
        %912 = vmatpush.bf16.msra.mxu0 0
        %913 = vmatpush.bf16.msra.mxu0 0
        %914 = vmatpush.bf16.msra.mxu0 0
        %915 = vmatpush.bf16.msra.mxu0 0
        %916 = vmatpush.bf16.msra.mxu0 0
        %917 = vmatpush.bf16.msra.mxu0 %v882
        %918 = vmatmul.bf16.gmra.mxu0 %v873
        %v919 = vpop.f32.mrf.mxu0
        %v920 = vadd.f32 0.0, %v919
        %v921 = vpop.f32.mrf.mxu0
        %922 = vdwg.mxu0
        %v923 = vadd.f32 %v845, %v894
        %v924 = vadd.f32 %v846, %v907
        %v925 = vadd.f32 %v847, %v920
        %v926 = vld [vmem:[%s384] sm:$0x3f]
        %v927 = vld [vmem:[%s393] sm:$0xf]
        %v929 = vunpack.c.l.b16 %v927
        %v930 = vpack.c.b16 %v929, %v929
        %931 = vrot.lane.b32.xlu0 %v930, 100
        %v932 = vpop.permute.xlu0 %931
        %934 = vst [vmem:[#allocation1] ss:$4 sm:$0xff] %v926
        %v935 = vld.sshfl [vmem:[#allocation1] sm:$0xff pattern:$0x73625140]
        %v937 = vld.sshfl [vmem:[#allocation1 + $0x8] sm:$0xff pattern:$0x73625140]
        %v939 = vld.sshfl [vmem:[#allocation1 + $0x10] sm:$0xff pattern:$0x73625140]
        %941 = vrot.lane.b32.xlu0 %v935, 91
        %v942 = vpop.permute.xlu0 %941
        %943 = vrot.lane.b32.xlu0 %v937, 91
        %v944 = vpop.permute.xlu0 %943
        %945 = vrot.lane.b32.xlu0 %v939, 91
        %v946 = vpop.permute.xlu0 %945
        %vm947 = vcmask 744448
        %v948 = vsel %vm947, %v942, %v944
        %v949 = vsel %vm947, %v944, %v946
        %v951 = vsel %vm431, %v932, 0
        %v954 = vsel %vm435, %v948, 0
        %v957 = vsel %vm435, %v949, 0
        %v960 = vsel %vm435, %v946, 0
        %962 = vmatpush.bf16.msra.mxu0 0
        %963 = vmatpush.bf16.msra.mxu0 0
        %964 = vmatpush.bf16.msra.mxu0 0
        %965 = vmatpush.bf16.msra.mxu0 0
        %966 = vmatpush.bf16.msra.mxu0 0
        %967 = vmatpush.bf16.msra.mxu0 0
        %968 = vmatpush.bf16.msra.mxu0 0
        %969 = vmatpush.bf16.msra.mxu0 %v954
        %970 = vmatmul.bf16.gmra.mxu0 %v951
        %v971 = vpop.f32.mrf.mxu0
        %v972 = vadd.f32 0.0, %v971
        %v973 = vpop.f32.mrf.mxu0
        %974 = vdwg.mxu0
        %975 = vmatpush.bf16.msra.mxu0 0
        %976 = vmatpush.bf16.msra.mxu0 0
        %977 = vmatpush.bf16.msra.mxu0 0
        %978 = vmatpush.bf16.msra.mxu0 0
        %979 = vmatpush.bf16.msra.mxu0 0
        %980 = vmatpush.bf16.msra.mxu0 0
        %981 = vmatpush.bf16.msra.mxu0 0
        %982 = vmatpush.bf16.msra.mxu0 %v957
        %983 = vmatmul.bf16.gmra.mxu0 %v951
        %v984 = vpop.f32.mrf.mxu0
        %v985 = vadd.f32 0.0, %v984
        %v986 = vpop.f32.mrf.mxu0
        %987 = vdwg.mxu0
        %988 = vmatpush.bf16.msra.mxu0 0
        %989 = vmatpush.bf16.msra.mxu0 0
        %990 = vmatpush.bf16.msra.mxu0 0
        %991 = vmatpush.bf16.msra.mxu0 0
        %992 = vmatpush.bf16.msra.mxu0 0
        %993 = vmatpush.bf16.msra.mxu0 0
        %994 = vmatpush.bf16.msra.mxu0 0
        %995 = vmatpush.bf16.msra.mxu0 %v960
        %996 = vmatmul.bf16.gmra.mxu0 %v951
        %v997 = vpop.f32.mrf.mxu0
        %v998 = vadd.f32 0.0, %v997
        %v999 = vpop.f32.mrf.mxu0
        %1000 = vdwg.mxu0
        %v1001 = vadd.f32 %v923, %v972
        %v1002 = vadd.f32 %v924, %v985
        %v1003 = vadd.f32 %v925, %v998
        %v1004 = vld [vmem:[%s384] sm:$0x3f]
        %v1005 = vld [vmem:[%s393] sm:$0xf]
        %v1007 = vunpack.c.l.b16 %v1005
        %v1008 = vpack.c.b16 %v1007, %v1007
        %1009 = vrot.lane.b32.xlu0 %v1008, 96
        %v1010 = vpop.permute.xlu0 %1009
        %1012 = vst [vmem:[#allocation1] ss:$4 sm:$0xff] %v1004
        %v1013 = vld.sshfl [vmem:[#allocation1] sm:$0xff pattern:$0x73625140]
        %v1015 = vld.sshfl [vmem:[#allocation1 + $0x8] sm:$0xff pattern:$0x73625140]
        %v1017 = vld.sshfl [vmem:[#allocation1 + $0x10] sm:$0xff pattern:$0x73625140]
        %1019 = vrot.lane.b32.xlu0 %v1013, 90
        %v1020 = vpop.permute.xlu0 %1019
        %1021 = vrot.lane.b32.xlu0 %v1015, 90
        %v1022 = vpop.permute.xlu0 %1021
        %1023 = vrot.lane.b32.xlu0 %v1017, 90
        %v1024 = vpop.permute.xlu0 %1023
        %vm1025 = vcmask 736256
        %v1026 = vsel %vm1025, %v1020, %v1022
        %v1027 = vsel %vm1025, %v1022, %v1024
        %v1029 = vsel %vm431, %v1010, 0
        %v1032 = vsel %vm435, %v1026, 0
        %v1035 = vsel %vm435, %v1027, 0
        %v1038 = vsel %vm435, %v1024, 0
        %1040 = vmatpush.bf16.msra.mxu0 0
        %1041 = vmatpush.bf16.msra.mxu0 0
        %1042 = vmatpush.bf16.msra.mxu0 0
        %1043 = vmatpush.bf16.msra.mxu0 0
        %1044 = vmatpush.bf16.msra.mxu0 0
        %1045 = vmatpush.bf16.msra.mxu0 0
        %1046 = vmatpush.bf16.msra.mxu0 0
        %1047 = vmatpush.bf16.msra.mxu0 %v1032
        %1048 = vmatmul.bf16.gmra.mxu0 %v1029
        %v1049 = vpop.f32.mrf.mxu0
        %v1050 = vadd.f32 0.0, %v1049
        %v1051 = vpop.f32.mrf.mxu0
        %1052 = vdwg.mxu0
        %1053 = vmatpush.bf16.msra.mxu0 0
        %1054 = vmatpush.bf16.msra.mxu0 0
        %1055 = vmatpush.bf16.msra.mxu0 0
        %1056 = vmatpush.bf16.msra.mxu0 0
        %1057 = vmatpush.bf16.msra.mxu0 0
        %1058 = vmatpush.bf16.msra.mxu0 0
        %1059 = vmatpush.bf16.msra.mxu0 0
        %1060 = vmatpush.bf16.msra.mxu0 %v1035
        %1061 = vmatmul.bf16.gmra.mxu0 %v1029
        %v1062 = vpop.f32.mrf.mxu0
        %v1063 = vadd.f32 0.0, %v1062
        %v1064 = vpop.f32.mrf.mxu0
        %1065 = vdwg.mxu0
        %1066 = vmatpush.bf16.msra.mxu0 0
        %1067 = vmatpush.bf16.msra.mxu0 0
        %1068 = vmatpush.bf16.msra.mxu0 0
        %1069 = vmatpush.bf16.msra.mxu0 0
        %1070 = vmatpush.bf16.msra.mxu0 0
        %1071 = vmatpush.bf16.msra.mxu0 0
        %1072 = vmatpush.bf16.msra.mxu0 0
        %1073 = vmatpush.bf16.msra.mxu0 %v1038
        %1074 = vmatmul.bf16.gmra.mxu0 %v1029
        %v1075 = vpop.f32.mrf.mxu0
        %v1076 = vadd.f32 0.0, %v1075
        %v1077 = vpop.f32.mrf.mxu0
        %1078 = vdwg.mxu0
        %v1079 = vadd.f32 %v1001, %v1050
        %v1080 = vadd.f32 %v1002, %v1063
        %v1081 = vadd.f32 %v1003, %v1076
        %v1082 = vld [vmem:[%s397] sm:$0xff]
        %1084 = vset.pattern.permute.xlu0 0
        %1085 = vperm.xlu0 %1084, %v1082
        %v1086 = vpop.permute.xlu0 %1085
        %v1088 = vadd.f32 %v1079, %v1086
        %v1089 = vadd.f32 %v1080, %v1086
        %v1090 = vadd.f32 %v1081, %v1086
        %v1091 = vpack.c.bf16 %v1089, %v1088
        %v1092 = vpack.c.bf16 %v1090, %v1090
        %1093 = vst [vmem:[#allocation2] sm:$0xff] %v1091
        %vm1094 = vcmask 257024
        %1095 = vst.msk [vmem:[#allocation2 + $0x8] sm:$0xf] %vm1094, %v1092
        %v1096 = vld [vmem:[#allocation2] sm:$0xf]
        %v1098 = vrot.slane %v1096, 3
        %vm1099 = vcmask 1040384
        %v1102 = vsel %vm1099, %v1096, %v1098
        %vm1104 = vcmask 1041409
        %v1105 = vsel %vm1104, %v1096, %v1098
        %v1107 = vrot.slane %v1105, 1
        %vm1108 = vcmask 1042434
        %v1109 = vsel %vm1108, %v1096, %v1098
        %v1111 = vrot.slane %v1109, 2
        %vm1112 = vcmask 1043459
        %v1113 = vsel %vm1112, %v1096, %v1098
        %v1115 = vrot.slane %v1113, 3
        %v1116 = vunpack.i.l.s16 %v1102
        %v1117 = vunpack.i.h.s16 %v1102
        %v1118 = vunpack.i.l.s16 %v1107
        %v1119 = vunpack.i.h.s16 %v1107
        %v1120 = vunpack.i.l.s16 %v1111
        %v1121 = vunpack.i.h.s16 %v1111
        %v1122 = vunpack.i.l.s16 %v1115
        %v1123 = vunpack.i.h.s16 %v1115
        %v1124 = vpack.i.b16 %v1116, %v1116
        %v1125 = vpack.i.b16 %v1117, %v1117
        %v1126 = vpack.i.b16 %v1118, %v1118
        %v1127 = vpack.i.b16 %v1119, %v1119
        %v1128 = vpack.i.b16 %v1120, %v1120
        %v1129 = vpack.i.b16 %v1121, %v1121
        %v1130 = vpack.i.b16 %v1122, %v1122
        %v1131 = vpack.i.b16 %v1123, %v1123
        %v1133 = vunpack.c.l.s4 286326784
        %v1134 = vunpack.c.0.s8 %v1133
        %v1135 = vperm.slane %v1124, %v1134
        %v1137 = vunpack.c.l.s4 286326784
        %v1138 = vunpack.c.0.s8 %v1137
        %v1139 = vperm.slane %v1125, %v1138
        %v1141 = vunpack.c.l.s4 286326784
        %v1142 = vunpack.c.0.s8 %v1141
        %v1143 = vperm.slane %v1126, %v1142
        %v1145 = vunpack.c.l.s4 286326784
        %v1146 = vunpack.c.0.s8 %v1145
        %v1147 = vperm.slane %v1127, %v1146
        %v1149 = vunpack.c.l.s4 286326784
        %v1150 = vunpack.c.0.s8 %v1149
        %v1151 = vperm.slane %v1128, %v1150
        %v1153 = vunpack.c.l.s4 286326784
        %v1154 = vunpack.c.0.s8 %v1153
        %v1155 = vperm.slane %v1129, %v1154
        %v1157 = vunpack.c.l.s4 286326784
        %v1158 = vunpack.c.0.s8 %v1157
        %v1159 = vperm.slane %v1130, %v1158
        %v1161 = vunpack.c.l.s4 286326784
        %v1162 = vunpack.c.0.s8 %v1161
        %v1163 = vperm.slane %v1131, %v1162
        %vm1172 = vcmask 122880
        %vm1173 = vsmask.f32 256
        %vm1174 = vmand %vm1172, %vm1173
        %v1175 = vld [vmem:[#allocation3] sm:$0x1]
        %v1176 = vsel %vm1174, %v1135, %v1175
        %1177 = vst [vmem:[#allocation3] sm:$0x1] %v1176
        %v1178 = vld [vmem:[#allocation3 + $0x8] sm:$0x1]
        %v1179 = vsel %vm1174, %v1139, %v1178
        %1180 = vst [vmem:[#allocation3 + $0x8] sm:$0x1] %v1179
        %v1181 = vld [vmem:[#allocation3 + $0x10] sm:$0x1]
        %v1182 = vsel %vm1174, %v1143, %v1181
        %1183 = vst [vmem:[#allocation3 + $0x10] sm:$0x1] %v1182
        %v1184 = vld [vmem:[#allocation3 + $0x18] sm:$0x1]
        %v1185 = vsel %vm1174, %v1147, %v1184
        %1186 = vst [vmem:[#allocation3 + $0x18] sm:$0x1] %v1185
        %v1187 = vld [vmem:[#allocation3 + $0x20] sm:$0x1]
        %v1188 = vsel %vm1174, %v1151, %v1187
        %1189 = vst [vmem:[#allocation3 + $0x20] sm:$0x1] %v1188
        %v1190 = vld [vmem:[#allocation3 + $0x28] sm:$0x1]
        %v1191 = vsel %vm1174, %v1155, %v1190
        %1192 = vst [vmem:[#allocation3 + $0x28] sm:$0x1] %v1191
        %v1193 = vld [vmem:[#allocation3 + $0x30] sm:$0x1]
        %v1194 = vsel %vm1174, %v1159, %v1193
        %1195 = vst [vmem:[#allocation3 + $0x30] sm:$0x1] %v1194
        %v1196 = vld [vmem:[#allocation3 + $0x38] sm:$0x1]
        %v1197 = vsel %vm1174, %v1163, %v1196
        %1198 = vst [vmem:[#allocation3 + $0x38] sm:$0x1] %v1197
        %v1199 = vld [vmem:[#allocation2] sm:$0xf]
        %v1201 = vrot.slane %v1199, 3
        %v1204 = vsel %vm1099, %v1199, %v1201
        %v1206 = vsel %vm1104, %v1199, %v1201
        %v1208 = vrot.slane %v1206, 1
        %v1209 = vsel %vm1108, %v1199, %v1201
        %v1211 = vrot.slane %v1209, 2
        %v1212 = vsel %vm1112, %v1199, %v1201
        %v1214 = vrot.slane %v1212, 3
        %v1215 = vunpack.i.l.s16 %v1204
        %v1216 = vunpack.i.h.s16 %v1204
        %v1217 = vunpack.i.l.s16 %v1208
        %v1218 = vunpack.i.h.s16 %v1208
        %v1219 = vunpack.i.l.s16 %v1211
        %v1220 = vunpack.i.h.s16 %v1211
        %v1221 = vunpack.i.l.s16 %v1214
        %v1222 = vunpack.i.h.s16 %v1214
        %v1223 = vpack.i.b16 %v1215, %v1215
        %v1224 = vpack.i.b16 %v1216, %v1216
        %v1225 = vpack.i.b16 %v1217, %v1217
        %v1226 = vpack.i.b16 %v1218, %v1218
        %v1227 = vpack.i.b16 %v1219, %v1219
        %v1228 = vpack.i.b16 %v1220, %v1220
        %v1229 = vpack.i.b16 %v1221, %v1221
        %v1230 = vpack.i.b16 %v1222, %v1222
        %v1232 = vunpack.c.l.s4 286326784
        %v1233 = vunpack.c.0.s8 %v1232
        %v1234 = vperm.slane %v1223, %v1233
        %v1236 = vunpack.c.l.s4 286326784
        %v1237 = vunpack.c.0.s8 %v1236
        %v1238 = vperm.slane %v1224, %v1237
        %v1240 = vunpack.c.l.s4 286326784
        %v1241 = vunpack.c.0.s8 %v1240
        %v1242 = vperm.slane %v1225, %v1241
        %v1244 = vunpack.c.l.s4 286326784
        %v1245 = vunpack.c.0.s8 %v1244
        %v1246 = vperm.slane %v1226, %v1245
        %v1248 = vunpack.c.l.s4 286326784
        %v1249 = vunpack.c.0.s8 %v1248
        %v1250 = vperm.slane %v1227, %v1249
        %v1252 = vunpack.c.l.s4 286326784
        %v1253 = vunpack.c.0.s8 %v1252
        %v1254 = vperm.slane %v1228, %v1253
        %v1256 = vunpack.c.l.s4 286326784
        %v1257 = vunpack.c.0.s8 %v1256
        %v1258 = vperm.slane %v1229, %v1257
        %v1260 = vunpack.c.l.s4 286326784
        %v1261 = vunpack.c.0.s8 %v1260
        %v1262 = vperm.slane %v1230, %v1261
        %1263 = vrot.lane.b32.xlu0 %v1234, 110
        %v1264 = vpop.permute.xlu0 %1263
        %1265 = vrot.lane.b32.xlu0 %v1238, 110
        %v1266 = vpop.permute.xlu0 %1265
        %1267 = vrot.lane.b32.xlu0 %v1242, 110
        %v1268 = vpop.permute.xlu0 %1267
        %1269 = vrot.lane.b32.xlu0 %v1246, 110
        %v1270 = vpop.permute.xlu0 %1269
        %1271 = vrot.lane.b32.xlu0 %v1250, 110
        %v1272 = vpop.permute.xlu0 %1271
        %1273 = vrot.lane.b32.xlu0 %v1254, 110
        %v1274 = vpop.permute.xlu0 %1273
        %1275 = vrot.lane.b32.xlu0 %v1258, 110
        %v1276 = vpop.permute.xlu0 %1275
        %1277 = vrot.lane.b32.xlu0 %v1262, 110
        %v1278 = vpop.permute.xlu0 %1277
        %vm1287 = vsmask.f32 7938
        %vm1288 = vmand %vm1172, %vm1287
        %v1289 = vld [vmem:[#allocation3] sm:$0x1]
        %v1290 = vsel %vm1288, %v1264, %v1289
        %1291 = vst [vmem:[#allocation3] sm:$0x1] %v1290
        %v1292 = vld [vmem:[#allocation3 + $0x8] sm:$0x1]
        %v1293 = vsel %vm1288, %v1266, %v1292
        %1294 = vst [vmem:[#allocation3 + $0x8] sm:$0x1] %v1293
        %v1295 = vld [vmem:[#allocation3 + $0x10] sm:$0x1]
        %v1296 = vsel %vm1288, %v1268, %v1295
        %1297 = vst [vmem:[#allocation3 + $0x10] sm:$0x1] %v1296
        %v1298 = vld [vmem:[#allocation3 + $0x18] sm:$0x1]
        %v1299 = vsel %vm1288, %v1270, %v1298
        %1300 = vst [vmem:[#allocation3 + $0x18] sm:$0x1] %v1299
        %v1301 = vld [vmem:[#allocation3 + $0x20] sm:$0x1]
        %v1302 = vsel %vm1288, %v1272, %v1301
        %1303 = vst [vmem:[#allocation3 + $0x20] sm:$0x1] %v1302
        %v1304 = vld [vmem:[#allocation3 + $0x28] sm:$0x1]
        %v1305 = vsel %vm1288, %v1274, %v1304
        %1306 = vst [vmem:[#allocation3 + $0x28] sm:$0x1] %v1305
        %v1307 = vld [vmem:[#allocation3 + $0x30] sm:$0x1]
        %v1308 = vsel %vm1288, %v1276, %v1307
        %1309 = vst [vmem:[#allocation3 + $0x30] sm:$0x1] %v1308
        %v1310 = vld [vmem:[#allocation3 + $0x38] sm:$0x1]
        %v1311 = vsel %vm1288, %v1278, %v1310
        %1312 = vst [vmem:[#allocation3 + $0x38] sm:$0x1] %v1311
        %v1313 = vld [vmem:[#allocation2] sm:$0xf]
        %v1315 = vrot.slane %v1313, 3
        %v1318 = vsel %vm1099, %v1313, %v1315
        %v1320 = vsel %vm1104, %v1313, %v1315
        %v1322 = vrot.slane %v1320, 1
        %v1323 = vsel %vm1108, %v1313, %v1315
        %v1325 = vrot.slane %v1323, 2
        %v1326 = vsel %vm1112, %v1313, %v1315
        %v1328 = vrot.slane %v1326, 3
        %v1329 = vunpack.i.l.s16 %v1318
        %v1330 = vunpack.i.h.s16 %v1318
        %v1331 = vunpack.i.l.s16 %v1322
        %v1332 = vunpack.i.h.s16 %v1322
        %v1333 = vunpack.i.l.s16 %v1325
        %v1334 = vunpack.i.h.s16 %v1325
        %v1335 = vunpack.i.l.s16 %v1328
        %v1336 = vunpack.i.h.s16 %v1328
        %v1337 = vpack.i.b16 %v1329, %v1329
        %v1338 = vpack.i.b16 %v1330, %v1330
        %v1339 = vpack.i.b16 %v1331, %v1331
        %v1340 = vpack.i.b16 %v1332, %v1332
        %v1341 = vpack.i.b16 %v1333, %v1333
        %v1342 = vpack.i.b16 %v1334, %v1334
        %v1343 = vpack.i.b16 %v1335, %v1335
        %v1344 = vpack.i.b16 %v1336, %v1336
        %v1346 = vunpack.c.l.s4 286326784
        %v1347 = vunpack.c.0.s8 %v1346
        %v1348 = vperm.slane %v1337, %v1347
        %v1350 = vunpack.c.l.s4 286326784
        %v1351 = vunpack.c.0.s8 %v1350
        %v1352 = vperm.slane %v1338, %v1351
        %v1354 = vunpack.c.l.s4 286326784
        %v1355 = vunpack.c.0.s8 %v1354
        %v1356 = vperm.slane %v1339, %v1355
        %v1358 = vunpack.c.l.s4 286326784
        %v1359 = vunpack.c.0.s8 %v1358
        %v1360 = vperm.slane %v1340, %v1359
        %v1362 = vunpack.c.l.s4 286326784
        %v1363 = vunpack.c.0.s8 %v1362
        %v1364 = vperm.slane %v1341, %v1363
        %v1366 = vunpack.c.l.s4 286326784
        %v1367 = vunpack.c.0.s8 %v1366
        %v1368 = vperm.slane %v1342, %v1367
        %v1370 = vunpack.c.l.s4 286326784
        %v1371 = vunpack.c.0.s8 %v1370
        %v1372 = vperm.slane %v1343, %v1371
        %v1374 = vunpack.c.l.s4 286326784
        %v1375 = vunpack.c.0.s8 %v1374
        %v1376 = vperm.slane %v1344, %v1375
        %1377 = vrot.lane.b32.xlu0 %v1348, 92
        %v1378 = vpop.permute.xlu0 %1377
        %1379 = vrot.lane.b32.xlu0 %v1352, 92
        %v1380 = vpop.permute.xlu0 %1379
        %1381 = vrot.lane.b32.xlu0 %v1356, 92
        %v1382 = vpop.permute.xlu0 %1381
        %1383 = vrot.lane.b32.xlu0 %v1360, 92
        %v1384 = vpop.permute.xlu0 %1383
        %1385 = vrot.lane.b32.xlu0 %v1364, 92
        %v1386 = vpop.permute.xlu0 %1385
        %1387 = vrot.lane.b32.xlu0 %v1368, 92
        %v1388 = vpop.permute.xlu0 %1387
        %1389 = vrot.lane.b32.xlu0 %v1372, 92
        %v1390 = vpop.permute.xlu0 %1389
        %1391 = vrot.lane.b32.xlu0 %v1376, 92
        %v1392 = vpop.permute.xlu0 %1391
        %vm1401 = vcmask 123905
        %vm1402 = vsmask.f32 1280
        %vm1403 = vmand %vm1401, %vm1402
        %v1404 = vld [vmem:[#allocation3] sm:$0x2]
        %v1405 = vsel %vm1403, %v1378, %v1404
        %1406 = vst [vmem:[#allocation3] sm:$0x2] %v1405
        %v1407 = vld [vmem:[#allocation3 + $0x8] sm:$0x2]
        %v1408 = vsel %vm1403, %v1380, %v1407
        %1409 = vst [vmem:[#allocation3 + $0x8] sm:$0x2] %v1408
        %v1410 = vld [vmem:[#allocation3 + $0x10] sm:$0x2]
        %v1411 = vsel %vm1403, %v1382, %v1410
        %1412 = vst [vmem:[#allocation3 + $0x10] sm:$0x2] %v1411
        %v1413 = vld [vmem:[#allocation3 + $0x18] sm:$0x2]
        %v1414 = vsel %vm1403, %v1384, %v1413
        %1415 = vst [vmem:[#allocation3 + $0x18] sm:$0x2] %v1414
        %v1416 = vld [vmem:[#allocation3 + $0x20] sm:$0x2]
        %v1417 = vsel %vm1403, %v1386, %v1416
        %1418 = vst [vmem:[#allocation3 + $0x20] sm:$0x2] %v1417
        %v1419 = vld [vmem:[#allocation3 + $0x28] sm:$0x2]
        %v1420 = vsel %vm1403, %v1388, %v1419
        %1421 = vst [vmem:[#allocation3 + $0x28] sm:$0x2] %v1420
        %v1422 = vld [vmem:[#allocation3 + $0x30] sm:$0x2]
        %v1423 = vsel %vm1403, %v1390, %v1422
        %1424 = vst [vmem:[#allocation3 + $0x30] sm:$0x2] %v1423
        %v1425 = vld [vmem:[#allocation3 + $0x38] sm:$0x2]
        %v1426 = vsel %vm1403, %v1392, %v1425
        %1427 = vst [vmem:[#allocation3 + $0x38] sm:$0x2] %v1426
        %v1428 = vld [vmem:[#allocation2] sm:$0xf]
        %v1430 = vrot.slane %v1428, 3
        %v1433 = vsel %vm1099, %v1428, %v1430
        %v1435 = vsel %vm1104, %v1428, %v1430
        %v1437 = vrot.slane %v1435, 1
        %v1438 = vsel %vm1108, %v1428, %v1430
        %v1440 = vrot.slane %v1438, 2
        %v1441 = vsel %vm1112, %v1428, %v1430
        %v1443 = vrot.slane %v1441, 3
        %v1444 = vunpack.i.l.s16 %v1433
        %v1445 = vunpack.i.h.s16 %v1433
        %v1446 = vunpack.i.l.s16 %v1437
        %v1447 = vunpack.i.h.s16 %v1437
        %v1448 = vunpack.i.l.s16 %v1440
        %v1449 = vunpack.i.h.s16 %v1440
        %v1450 = vunpack.i.l.s16 %v1443
        %v1451 = vunpack.i.h.s16 %v1443
        %v1452 = vpack.i.b16 %v1444, %v1444
        %v1453 = vpack.i.b16 %v1445, %v1445
        %v1454 = vpack.i.b16 %v1446, %v1446
        %v1455 = vpack.i.b16 %v1447, %v1447
        %v1456 = vpack.i.b16 %v1448, %v1448
        %v1457 = vpack.i.b16 %v1449, %v1449
        %v1458 = vpack.i.b16 %v1450, %v1450
        %v1459 = vpack.i.b16 %v1451, %v1451
        %v1461 = vunpack.c.l.s4 286326784
        %v1462 = vunpack.c.0.s8 %v1461
        %v1463 = vperm.slane %v1452, %v1462
        %v1465 = vunpack.c.l.s4 286326784
        %v1466 = vunpack.c.0.s8 %v1465
        %v1467 = vperm.slane %v1453, %v1466
        %v1469 = vunpack.c.l.s4 286326784
        %v1470 = vunpack.c.0.s8 %v1469
        %v1471 = vperm.slane %v1454, %v1470
        %v1473 = vunpack.c.l.s4 286326784
        %v1474 = vunpack.c.0.s8 %v1473
        %v1475 = vperm.slane %v1455, %v1474
        %v1477 = vunpack.c.l.s4 286326784
        %v1478 = vunpack.c.0.s8 %v1477
        %v1479 = vperm.slane %v1456, %v1478
        %v1481 = vunpack.c.l.s4 286326784
        %v1482 = vunpack.c.0.s8 %v1481
        %v1483 = vperm.slane %v1457, %v1482
        %v1485 = vunpack.c.l.s4 286326784
        %v1486 = vunpack.c.0.s8 %v1485
        %v1487 = vperm.slane %v1458, %v1486
        %v1489 = vunpack.c.l.s4 286326784
        %v1490 = vunpack.c.0.s8 %v1489
        %v1491 = vperm.slane %v1459, %v1490
        %1492 = vrot.lane.b32.xlu0 %v1463, 74
        %v1493 = vpop.permute.xlu0 %1492
        %1494 = vrot.lane.b32.xlu0 %v1467, 74
        %v1495 = vpop.permute.xlu0 %1494
        %1496 = vrot.lane.b32.xlu0 %v1471, 74
        %v1497 = vpop.permute.xlu0 %1496
        %1498 = vrot.lane.b32.xlu0 %v1475, 74
        %v1499 = vpop.permute.xlu0 %1498
        %1500 = vrot.lane.b32.xlu0 %v1479, 74
        %v1501 = vpop.permute.xlu0 %1500
        %1502 = vrot.lane.b32.xlu0 %v1483, 74
        %v1503 = vpop.permute.xlu0 %1502
        %1504 = vrot.lane.b32.xlu0 %v1487, 74
        %v1505 = vpop.permute.xlu0 %1504
        %1506 = vrot.lane.b32.xlu0 %v1491, 74
        %v1507 = vpop.permute.xlu0 %1506
        %vm1516 = vsmask.f32 7942
        %vm1517 = vmand %vm1401, %vm1516
        %v1518 = vld [vmem:[#allocation3] sm:$0x2]
        %v1519 = vsel %vm1517, %v1493, %v1518
        %1520 = vst [vmem:[#allocation3] sm:$0x2] %v1519
        %v1521 = vld [vmem:[#allocation3 + $0x8] sm:$0x2]
        %v1522 = vsel %vm1517, %v1495, %v1521
        %1523 = vst [vmem:[#allocation3 + $0x8] sm:$0x2] %v1522
        %v1524 = vld [vmem:[#allocation3 + $0x10] sm:$0x2]
        %v1525 = vsel %vm1517, %v1497, %v1524
        %1526 = vst [vmem:[#allocation3 + $0x10] sm:$0x2] %v1525
        %v1527 = vld [vmem:[#allocation3 + $0x18] sm:$0x2]
        %v1528 = vsel %vm1517, %v1499, %v1527
        %1529 = vst [vmem:[#allocation3 + $0x18] sm:$0x2] %v1528
        %v1530 = vld [vmem:[#allocation3 + $0x20] sm:$0x2]
        %v1531 = vsel %vm1517, %v1501, %v1530
        %1532 = vst [vmem:[#allocation3 + $0x20] sm:$0x2] %v1531
        %v1533 = vld [vmem:[#allocation3 + $0x28] sm:$0x2]
        %v1534 = vsel %vm1517, %v1503, %v1533
        %1535 = vst [vmem:[#allocation3 + $0x28] sm:$0x2] %v1534
        %v1536 = vld [vmem:[#allocation3 + $0x30] sm:$0x2]
        %v1537 = vsel %vm1517, %v1505, %v1536
        %1538 = vst [vmem:[#allocation3 + $0x30] sm:$0x2] %v1537
        %v1539 = vld [vmem:[#allocation3 + $0x38] sm:$0x2]
        %v1540 = vsel %vm1517, %v1507, %v1539
        %1541 = vst [vmem:[#allocation3 + $0x38] sm:$0x2] %v1540
        %v1542 = vld [vmem:[#allocation2] sm:$0xf]
        %v1544 = vrot.slane %v1542, 3
        %v1547 = vsel %vm1099, %v1542, %v1544
        %v1549 = vsel %vm1104, %v1542, %v1544
        %v1551 = vrot.slane %v1549, 1
        %v1552 = vsel %vm1108, %v1542, %v1544
        %v1554 = vrot.slane %v1552, 2
        %v1555 = vsel %vm1112, %v1542, %v1544
        %v1557 = vrot.slane %v1555, 3
        %v1558 = vunpack.i.l.s16 %v1547
        %v1559 = vunpack.i.h.s16 %v1547
        %v1560 = vunpack.i.l.s16 %v1551
        %v1561 = vunpack.i.h.s16 %v1551
        %v1562 = vunpack.i.l.s16 %v1554
        %v1563 = vunpack.i.h.s16 %v1554
        %v1564 = vunpack.i.l.s16 %v1557
        %v1565 = vunpack.i.h.s16 %v1557
        %v1566 = vpack.i.b16 %v1558, %v1558
        %v1567 = vpack.i.b16 %v1559, %v1559
        %v1568 = vpack.i.b16 %v1560, %v1560
        %v1569 = vpack.i.b16 %v1561, %v1561
        %v1570 = vpack.i.b16 %v1562, %v1562
        %v1571 = vpack.i.b16 %v1563, %v1563
        %v1572 = vpack.i.b16 %v1564, %v1564
        %v1573 = vpack.i.b16 %v1565, %v1565
        %v1575 = vunpack.c.l.s4 286326784
        %v1576 = vunpack.c.0.s8 %v1575
        %v1577 = vperm.slane %v1566, %v1576
        %v1579 = vunpack.c.l.s4 286326784
        %v1580 = vunpack.c.0.s8 %v1579
        %v1581 = vperm.slane %v1567, %v1580
        %v1583 = vunpack.c.l.s4 286326784
        %v1584 = vunpack.c.0.s8 %v1583
        %v1585 = vperm.slane %v1568, %v1584
        %v1587 = vunpack.c.l.s4 286326784
        %v1588 = vunpack.c.0.s8 %v1587
        %v1589 = vperm.slane %v1569, %v1588
        %v1591 = vunpack.c.l.s4 286326784
        %v1592 = vunpack.c.0.s8 %v1591
        %v1593 = vperm.slane %v1570, %v1592
        %v1595 = vunpack.c.l.s4 286326784
        %v1596 = vunpack.c.0.s8 %v1595
        %v1597 = vperm.slane %v1571, %v1596
        %v1599 = vunpack.c.l.s4 286326784
        %v1600 = vunpack.c.0.s8 %v1599
        %v1601 = vperm.slane %v1572, %v1600
        %v1603 = vunpack.c.l.s4 286326784
        %v1604 = vunpack.c.0.s8 %v1603
        %v1605 = vperm.slane %v1573, %v1604
        %1606 = vrot.lane.b32.xlu0 %v1577, 56
        %v1607 = vpop.permute.xlu0 %1606
        %1608 = vrot.lane.b32.xlu0 %v1581, 56
        %v1609 = vpop.permute.xlu0 %1608
        %1610 = vrot.lane.b32.xlu0 %v1585, 56
        %v1611 = vpop.permute.xlu0 %1610
        %1612 = vrot.lane.b32.xlu0 %v1589, 56
        %v1613 = vpop.permute.xlu0 %1612
        %1614 = vrot.lane.b32.xlu0 %v1593, 56
        %v1615 = vpop.permute.xlu0 %1614
        %1616 = vrot.lane.b32.xlu0 %v1597, 56
        %v1617 = vpop.permute.xlu0 %1616
        %1618 = vrot.lane.b32.xlu0 %v1601, 56
        %v1619 = vpop.permute.xlu0 %1618
        %1620 = vrot.lane.b32.xlu0 %v1605, 56
        %v1621 = vpop.permute.xlu0 %1620
        %vm1630 = vcmask 124930
        %vm1631 = vsmask.f32 2304
        %vm1632 = vmand %vm1630, %vm1631
        %v1633 = vld [vmem:[#allocation3] sm:$0x4]
        %v1634 = vsel %vm1632, %v1607, %v1633
        %1635 = vst [vmem:[#allocation3] sm:$0x4] %v1634
        %v1636 = vld [vmem:[#allocation3 + $0x8] sm:$0x4]
        %v1637 = vsel %vm1632, %v1609, %v1636
        %1638 = vst [vmem:[#allocation3 + $0x8] sm:$0x4] %v1637
        %v1639 = vld [vmem:[#allocation3 + $0x10] sm:$0x4]
        %v1640 = vsel %vm1632, %v1611, %v1639
        %1641 = vst [vmem:[#allocation3 + $0x10] sm:$0x4] %v1640
        %v1642 = vld [vmem:[#allocation3 + $0x18] sm:$0x4]
        %v1643 = vsel %vm1632, %v1613, %v1642
        %1644 = vst [vmem:[#allocation3 + $0x18] sm:$0x4] %v1643
        %v1645 = vld [vmem:[#allocation3 + $0x20] sm:$0x4]
        %v1646 = vsel %vm1632, %v1615, %v1645
        %1647 = vst [vmem:[#allocation3 + $0x20] sm:$0x4] %v1646
        %v1648 = vld [vmem:[#allocation3 + $0x28] sm:$0x4]
        %v1649 = vsel %vm1632, %v1617, %v1648
        %1650 = vst [vmem:[#allocation3 + $0x28] sm:$0x4] %v1649
        %v1651 = vld [vmem:[#allocation3 + $0x30] sm:$0x4]
        %v1652 = vsel %vm1632, %v1619, %v1651
        %1653 = vst [vmem:[#allocation3 + $0x30] sm:$0x4] %v1652
        %v1654 = vld [vmem:[#allocation3 + $0x38] sm:$0x4]
        %v1655 = vsel %vm1632, %v1621, %v1654
        %1656 = vst [vmem:[#allocation3 + $0x38] sm:$0x4] %v1655
        %v1657 = vld [vmem:[#allocation2] sm:$0xf]
        %v1659 = vrot.slane %v1657, 3
        %v1662 = vsel %vm1099, %v1657, %v1659
        %v1664 = vsel %vm1104, %v1657, %v1659
        %v1666 = vrot.slane %v1664, 1
        %v1667 = vsel %vm1108, %v1657, %v1659
        %v1669 = vrot.slane %v1667, 2
        %v1670 = vsel %vm1112, %v1657, %v1659
        %v1672 = vrot.slane %v1670, 3
        %v1673 = vunpack.i.l.s16 %v1662
        %v1674 = vunpack.i.h.s16 %v1662
        %v1675 = vunpack.i.l.s16 %v1666
        %v1676 = vunpack.i.h.s16 %v1666
        %v1677 = vunpack.i.l.s16 %v1669
        %v1678 = vunpack.i.h.s16 %v1669
        %v1679 = vunpack.i.l.s16 %v1672
        %v1680 = vunpack.i.h.s16 %v1672
        %v1681 = vpack.i.b16 %v1673, %v1673
        %v1682 = vpack.i.b16 %v1674, %v1674
        %v1683 = vpack.i.b16 %v1675, %v1675
        %v1684 = vpack.i.b16 %v1676, %v1676
        %v1685 = vpack.i.b16 %v1677, %v1677
        %v1686 = vpack.i.b16 %v1678, %v1678
        %v1687 = vpack.i.b16 %v1679, %v1679
        %v1688 = vpack.i.b16 %v1680, %v1680
        %v1690 = vunpack.c.l.s4 286326784
        %v1691 = vunpack.c.0.s8 %v1690
        %v1692 = vperm.slane %v1681, %v1691
        %v1694 = vunpack.c.l.s4 286326784
        %v1695 = vunpack.c.0.s8 %v1694
        %v1696 = vperm.slane %v1682, %v1695
        %v1698 = vunpack.c.l.s4 286326784
        %v1699 = vunpack.c.0.s8 %v1698
        %v1700 = vperm.slane %v1683, %v1699
        %v1702 = vunpack.c.l.s4 286326784
        %v1703 = vunpack.c.0.s8 %v1702
        %v1704 = vperm.slane %v1684, %v1703
        %v1706 = vunpack.c.l.s4 286326784
        %v1707 = vunpack.c.0.s8 %v1706
        %v1708 = vperm.slane %v1685, %v1707
        %v1710 = vunpack.c.l.s4 286326784
        %v1711 = vunpack.c.0.s8 %v1710
        %v1712 = vperm.slane %v1686, %v1711
        %v1714 = vunpack.c.l.s4 286326784
        %v1715 = vunpack.c.0.s8 %v1714
        %v1716 = vperm.slane %v1687, %v1715
        %v1718 = vunpack.c.l.s4 286326784
        %v1719 = vunpack.c.0.s8 %v1718
        %v1720 = vperm.slane %v1688, %v1719
        %1721 = vrot.lane.b32.xlu0 %v1692, 38
        %v1722 = vpop.permute.xlu0 %1721
        %1723 = vrot.lane.b32.xlu0 %v1696, 38
        %v1724 = vpop.permute.xlu0 %1723
        %1725 = vrot.lane.b32.xlu0 %v1700, 38
        %v1726 = vpop.permute.xlu0 %1725
        %1727 = vrot.lane.b32.xlu0 %v1704, 38
        %v1728 = vpop.permute.xlu0 %1727
        %1729 = vrot.lane.b32.xlu0 %v1708, 38
        %v1730 = vpop.permute.xlu0 %1729
        %1731 = vrot.lane.b32.xlu0 %v1712, 38
        %v1732 = vpop.permute.xlu0 %1731
        %1733 = vrot.lane.b32.xlu0 %v1716, 38
        %v1734 = vpop.permute.xlu0 %1733
        %1735 = vrot.lane.b32.xlu0 %v1720, 38
        %v1736 = vpop.permute.xlu0 %1735
        %vm1745 = vsmask.f32 7946
        %vm1746 = vmand %vm1630, %vm1745
        %v1747 = vld [vmem:[#allocation3] sm:$0x4]
        %v1748 = vsel %vm1746, %v1722, %v1747
        %1749 = vst [vmem:[#allocation3] sm:$0x4] %v1748
        %v1750 = vld [vmem:[#allocation3 + $0x8] sm:$0x4]
        %v1751 = vsel %vm1746, %v1724, %v1750
        %1752 = vst [vmem:[#allocation3 + $0x8] sm:$0x4] %v1751
        %v1753 = vld [vmem:[#allocation3 + $0x10] sm:$0x4]
        %v1754 = vsel %vm1746, %v1726, %v1753
        %1755 = vst [vmem:[#allocation3 + $0x10] sm:$0x4] %v1754
        %v1756 = vld [vmem:[#allocation3 + $0x18] sm:$0x4]
        %v1757 = vsel %vm1746, %v1728, %v1756
        %1758 = vst [vmem:[#allocation3 + $0x18] sm:$0x4] %v1757
        %v1759 = vld [vmem:[#allocation3 + $0x20] sm:$0x4]
        %v1760 = vsel %vm1746, %v1730, %v1759
        %1761 = vst [vmem:[#allocation3 + $0x20] sm:$0x4] %v1760
        %v1762 = vld [vmem:[#allocation3 + $0x28] sm:$0x4]
        %v1763 = vsel %vm1746, %v1732, %v1762
        %1764 = vst [vmem:[#allocation3 + $0x28] sm:$0x4] %v1763
        %v1765 = vld [vmem:[#allocation3 + $0x30] sm:$0x4]
        %v1766 = vsel %vm1746, %v1734, %v1765
        %1767 = vst [vmem:[#allocation3 + $0x30] sm:$0x4] %v1766
        %v1768 = vld [vmem:[#allocation3 + $0x38] sm:$0x4]
        %v1769 = vsel %vm1746, %v1736, %v1768
        %1770 = vst [vmem:[#allocation3 + $0x38] sm:$0x4] %v1769
        %v1771 = vld [vmem:[#allocation2] sm:$0xf]
        %v1773 = vrot.slane %v1771, 3
        %v1776 = vsel %vm1099, %v1771, %v1773
        %v1778 = vsel %vm1104, %v1771, %v1773
        %v1780 = vrot.slane %v1778, 1
        %v1781 = vsel %vm1108, %v1771, %v1773
        %v1783 = vrot.slane %v1781, 2
        %v1784 = vsel %vm1112, %v1771, %v1773
        %v1786 = vrot.slane %v1784, 3
        %v1787 = vunpack.i.l.s16 %v1776
        %v1788 = vunpack.i.h.s16 %v1776
        %v1789 = vunpack.i.l.s16 %v1780
        %v1790 = vunpack.i.h.s16 %v1780
        %v1791 = vunpack.i.l.s16 %v1783
        %v1792 = vunpack.i.h.s16 %v1783
        %v1793 = vunpack.i.l.s16 %v1786
        %v1794 = vunpack.i.h.s16 %v1786
        %v1795 = vpack.i.b16 %v1787, %v1787
        %v1796 = vpack.i.b16 %v1788, %v1788
        %v1797 = vpack.i.b16 %v1789, %v1789
        %v1798 = vpack.i.b16 %v1790, %v1790
        %v1799 = vpack.i.b16 %v1791, %v1791
        %v1800 = vpack.i.b16 %v1792, %v1792
        %v1801 = vpack.i.b16 %v1793, %v1793
        %v1802 = vpack.i.b16 %v1794, %v1794
        %v1804 = vunpack.c.l.s4 286326784
        %v1805 = vunpack.c.0.s8 %v1804
        %v1806 = vperm.slane %v1795, %v1805
        %v1808 = vunpack.c.l.s4 286326784
        %v1809 = vunpack.c.0.s8 %v1808
        %v1810 = vperm.slane %v1796, %v1809
        %v1812 = vunpack.c.l.s4 286326784
        %v1813 = vunpack.c.0.s8 %v1812
        %v1814 = vperm.slane %v1797, %v1813
        %v1816 = vunpack.c.l.s4 286326784
        %v1817 = vunpack.c.0.s8 %v1816
        %v1818 = vperm.slane %v1798, %v1817
        %v1820 = vunpack.c.l.s4 286326784
        %v1821 = vunpack.c.0.s8 %v1820
        %v1822 = vperm.slane %v1799, %v1821
        %v1824 = vunpack.c.l.s4 286326784
        %v1825 = vunpack.c.0.s8 %v1824
        %v1826 = vperm.slane %v1800, %v1825
        %v1828 = vunpack.c.l.s4 286326784
        %v1829 = vunpack.c.0.s8 %v1828
        %v1830 = vperm.slane %v1801, %v1829
        %v1832 = vunpack.c.l.s4 286326784
        %v1833 = vunpack.c.0.s8 %v1832
        %v1834 = vperm.slane %v1802, %v1833
        %1835 = vrot.lane.b32.xlu0 %v1806, 20
        %v1836 = vpop.permute.xlu0 %1835
        %1837 = vrot.lane.b32.xlu0 %v1810, 20
        %v1838 = vpop.permute.xlu0 %1837
        %1839 = vrot.lane.b32.xlu0 %v1814, 20
        %v1840 = vpop.permute.xlu0 %1839
        %1841 = vrot.lane.b32.xlu0 %v1818, 20
        %v1842 = vpop.permute.xlu0 %1841
        %1843 = vrot.lane.b32.xlu0 %v1822, 20
        %v1844 = vpop.permute.xlu0 %1843
        %1845 = vrot.lane.b32.xlu0 %v1826, 20
        %v1846 = vpop.permute.xlu0 %1845
        %1847 = vrot.lane.b32.xlu0 %v1830, 20
        %v1848 = vpop.permute.xlu0 %1847
        %1849 = vrot.lane.b32.xlu0 %v1834, 20
        %v1850 = vpop.permute.xlu0 %1849
        %vm1859 = vcmask 125955
        %vm1860 = vsmask.f32 3328
        %vm1861 = vmand %vm1859, %vm1860
        %v1862 = vld [vmem:[#allocation3] sm:$0x8]
        %v1863 = vsel %vm1861, %v1836, %v1862
        %1864 = vst [vmem:[#allocation3] sm:$0x8] %v1863
        %v1865 = vld [vmem:[#allocation3 + $0x8] sm:$0x8]
        %v1866 = vsel %vm1861, %v1838, %v1865
        %1867 = vst [vmem:[#allocation3 + $0x8] sm:$0x8] %v1866
        %v1868 = vld [vmem:[#allocation3 + $0x10] sm:$0x8]
        %v1869 = vsel %vm1861, %v1840, %v1868
        %1870 = vst [vmem:[#allocation3 + $0x10] sm:$0x8] %v1869
        %v1871 = vld [vmem:[#allocation3 + $0x18] sm:$0x8]
        %v1872 = vsel %vm1861, %v1842, %v1871
        %1873 = vst [vmem:[#allocation3 + $0x18] sm:$0x8] %v1872
        %v1874 = vld [vmem:[#allocation3 + $0x20] sm:$0x8]
        %v1875 = vsel %vm1861, %v1844, %v1874
        %1876 = vst [vmem:[#allocation3 + $0x20] sm:$0x8] %v1875
        %v1877 = vld [vmem:[#allocation3 + $0x28] sm:$0x8]
        %v1878 = vsel %vm1861, %v1846, %v1877
        %1879 = vst [vmem:[#allocation3 + $0x28] sm:$0x8] %v1878
        %v1880 = vld [vmem:[#allocation3 + $0x30] sm:$0x8]
        %v1881 = vsel %vm1861, %v1848, %v1880
        %1882 = vst [vmem:[#allocation3 + $0x30] sm:$0x8] %v1881
        %v1883 = vld [vmem:[#allocation3 + $0x38] sm:$0x8]
        %v1884 = vsel %vm1861, %v1850, %v1883
        %1885 = vst [vmem:[#allocation3 + $0x38] sm:$0x8] %v1884
        %v1886 = vld [vmem:[#allocation2] sm:$0xff]
        %v1888 = vrot.slane %v1886, 3
        %v1891 = vsel %vm1099, %v1886, %v1888
        %v1893 = vsel %vm1104, %v1886, %v1888
        %v1895 = vrot.slane %v1893, 1
        %v1896 = vsel %vm1108, %v1886, %v1888
        %v1898 = vrot.slane %v1896, 2
        %v1899 = vsel %vm1112, %v1886, %v1888
        %v1901 = vrot.slane %v1899, 3
        %v1902 = vunpack.i.l.s16 %v1891
        %v1903 = vunpack.i.h.s16 %v1891
        %v1904 = vunpack.i.l.s16 %v1895
        %v1905 = vunpack.i.h.s16 %v1895
        %v1906 = vunpack.i.l.s16 %v1898
        %v1907 = vunpack.i.h.s16 %v1898
        %v1908 = vunpack.i.l.s16 %v1901
        %v1909 = vunpack.i.h.s16 %v1901
        %v1910 = vpack.i.b16 %v1902, %v1902
        %v1911 = vpack.i.b16 %v1903, %v1903
        %v1912 = vpack.i.b16 %v1904, %v1904
        %v1913 = vpack.i.b16 %v1905, %v1905
        %v1914 = vpack.i.b16 %v1906, %v1906
        %v1915 = vpack.i.b16 %v1907, %v1907
        %v1916 = vpack.i.b16 %v1908, %v1908
        %v1917 = vpack.i.b16 %v1909, %v1909
        %v1919 = vunpack.c.l.s4 286326784
        %v1920 = vunpack.c.0.s8 %v1919
        %v1921 = vperm.slane %v1910, %v1920
        %v1923 = vunpack.c.l.s4 286326784
        %v1924 = vunpack.c.0.s8 %v1923
        %v1925 = vperm.slane %v1911, %v1924
        %v1927 = vunpack.c.l.s4 286326784
        %v1928 = vunpack.c.0.s8 %v1927
        %v1929 = vperm.slane %v1912, %v1928
        %v1931 = vunpack.c.l.s4 286326784
        %v1932 = vunpack.c.0.s8 %v1931
        %v1933 = vperm.slane %v1913, %v1932
        %v1935 = vunpack.c.l.s4 286326784
        %v1936 = vunpack.c.0.s8 %v1935
        %v1937 = vperm.slane %v1914, %v1936
        %v1939 = vunpack.c.l.s4 286326784
        %v1940 = vunpack.c.0.s8 %v1939
        %v1941 = vperm.slane %v1915, %v1940
        %v1943 = vunpack.c.l.s4 286326784
        %v1944 = vunpack.c.0.s8 %v1943
        %v1945 = vperm.slane %v1916, %v1944
        %v1947 = vunpack.c.l.s4 286326784
        %v1948 = vunpack.c.0.s8 %v1947
        %v1949 = vperm.slane %v1917, %v1948
        %1950 = vrot.lane.b32.xlu0 %v1921, 2
        %v1951 = vpop.permute.xlu0 %1950
        %1952 = vrot.lane.b32.xlu0 %v1925, 2
        %v1953 = vpop.permute.xlu0 %1952
        %1954 = vrot.lane.b32.xlu0 %v1929, 2
        %v1955 = vpop.permute.xlu0 %1954
        %1956 = vrot.lane.b32.xlu0 %v1933, 2
        %v1957 = vpop.permute.xlu0 %1956
        %1958 = vrot.lane.b32.xlu0 %v1937, 2
        %v1959 = vpop.permute.xlu0 %1958
        %1960 = vrot.lane.b32.xlu0 %v1941, 2
        %v1961 = vpop.permute.xlu0 %1960
        %1962 = vrot.lane.b32.xlu0 %v1945, 2
        %v1963 = vpop.permute.xlu0 %1962
        %1964 = vrot.lane.b32.xlu0 %v1949, 2
        %v1965 = vpop.permute.xlu0 %1964
        %v1966 = vrot.slane %v1951, 4
        %v1967 = vrot.slane %v1953, 4
        %v1968 = vrot.slane %v1955, 4
        %v1969 = vrot.slane %v1957, 4
        %v1970 = vrot.slane %v1959, 4
        %v1971 = vrot.slane %v1961, 4
        %v1972 = vrot.slane %v1963, 4
        %v1973 = vrot.slane %v1965, 4
        %vm1974 = vcmask 15360
        %v1975 = vsel %vm1974, %v1951, %v1966
        %v1976 = vsel %vm1974, %v1953, %v1967
        %v1977 = vsel %vm1974, %v1955, %v1968
        %v1978 = vsel %vm1974, %v1957, %v1969
        %v1979 = vsel %vm1974, %v1959, %v1970
        %v1980 = vsel %vm1974, %v1961, %v1971
        %v1981 = vsel %vm1974, %v1963, %v1972
        %v1982 = vsel %vm1974, %v1965, %v1973
        %vm1991 = vsmask.f32 7950
        %vm1992 = vmand %vm1859, %vm1991
        %v1993 = vld [vmem:[#allocation3] sm:$0x8]
        %v1994 = vsel %vm1992, %v1975, %v1993
        %1995 = vst [vmem:[#allocation3] sm:$0x8] %v1994
        %v1996 = vld [vmem:[#allocation3 + $0x8] sm:$0x8]
        %v1997 = vsel %vm1992, %v1976, %v1996
        %1998 = vst [vmem:[#allocation3 + $0x8] sm:$0x8] %v1997
        %v1999 = vld [vmem:[#allocation3 + $0x10] sm:$0x8]
        %v2000 = vsel %vm1992, %v1977, %v1999
        %2001 = vst [vmem:[#allocation3 + $0x10] sm:$0x8] %v2000
        %v2002 = vld [vmem:[#allocation3 + $0x18] sm:$0x8]
        %v2003 = vsel %vm1992, %v1978, %v2002
        %2004 = vst [vmem:[#allocation3 + $0x18] sm:$0x8] %v2003
        %v2005 = vld [vmem:[#allocation3 + $0x20] sm:$0x8]
        %v2006 = vsel %vm1992, %v1979, %v2005
        %2007 = vst [vmem:[#allocation3 + $0x20] sm:$0x8] %v2006
        %v2008 = vld [vmem:[#allocation3 + $0x28] sm:$0x8]
        %v2009 = vsel %vm1992, %v1980, %v2008
        %2010 = vst [vmem:[#allocation3 + $0x28] sm:$0x8] %v2009
        %v2011 = vld [vmem:[#allocation3 + $0x30] sm:$0x8]
        %v2012 = vsel %vm1992, %v1981, %v2011
        %2013 = vst [vmem:[#allocation3 + $0x30] sm:$0x8] %v2012
        %v2014 = vld [vmem:[#allocation3 + $0x38] sm:$0x8]
        %v2015 = vsel %vm1992, %v1982, %v2014
        %2016 = vst [vmem:[#allocation3 + $0x38] sm:$0x8] %v2015
        %v2017 = vld [vmem:[#allocation2 + $0x4] sm:$0xf]
        %v2019 = vrot.slane %v2017, 3
        %v2022 = vsel %vm1099, %v2017, %v2019
        %v2024 = vsel %vm1104, %v2017, %v2019
        %v2026 = vrot.slane %v2024, 1
        %v2027 = vsel %vm1108, %v2017, %v2019
        %v2029 = vrot.slane %v2027, 2
        %v2030 = vsel %vm1112, %v2017, %v2019
        %v2032 = vrot.slane %v2030, 3
        %v2033 = vunpack.i.l.s16 %v2022
        %v2034 = vunpack.i.h.s16 %v2022
        %v2035 = vunpack.i.l.s16 %v2026
        %v2036 = vunpack.i.h.s16 %v2026
        %v2037 = vunpack.i.l.s16 %v2029
        %v2038 = vunpack.i.h.s16 %v2029
        %v2039 = vunpack.i.l.s16 %v2032
        %v2040 = vunpack.i.h.s16 %v2032
        %v2041 = vpack.i.b16 %v2033, %v2033
        %v2042 = vpack.i.b16 %v2034, %v2034
        %v2043 = vpack.i.b16 %v2035, %v2035
        %v2044 = vpack.i.b16 %v2036, %v2036
        %v2045 = vpack.i.b16 %v2037, %v2037
        %v2046 = vpack.i.b16 %v2038, %v2038
        %v2047 = vpack.i.b16 %v2039, %v2039
        %v2048 = vpack.i.b16 %v2040, %v2040
        %v2050 = vunpack.c.l.s4 286326784
        %v2051 = vunpack.c.0.s8 %v2050
        %v2052 = vperm.slane %v2041, %v2051
        %v2054 = vunpack.c.l.s4 286326784
        %v2055 = vunpack.c.0.s8 %v2054
        %v2056 = vperm.slane %v2042, %v2055
        %v2058 = vunpack.c.l.s4 286326784
        %v2059 = vunpack.c.0.s8 %v2058
        %v2060 = vperm.slane %v2043, %v2059
        %v2062 = vunpack.c.l.s4 286326784
        %v2063 = vunpack.c.0.s8 %v2062
        %v2064 = vperm.slane %v2044, %v2063
        %v2066 = vunpack.c.l.s4 286326784
        %v2067 = vunpack.c.0.s8 %v2066
        %v2068 = vperm.slane %v2045, %v2067
        %v2070 = vunpack.c.l.s4 286326784
        %v2071 = vunpack.c.0.s8 %v2070
        %v2072 = vperm.slane %v2046, %v2071
        %v2074 = vunpack.c.l.s4 286326784
        %v2075 = vunpack.c.0.s8 %v2074
        %v2076 = vperm.slane %v2047, %v2075
        %v2078 = vunpack.c.l.s4 286326784
        %v2079 = vunpack.c.0.s8 %v2078
        %v2080 = vperm.slane %v2048, %v2079
        %2081 = vrot.lane.b32.xlu0 %v2052, 112
        %v2082 = vpop.permute.xlu0 %2081
        %2083 = vrot.lane.b32.xlu0 %v2056, 112
        %v2084 = vpop.permute.xlu0 %2083
        %2085 = vrot.lane.b32.xlu0 %v2060, 112
        %v2086 = vpop.permute.xlu0 %2085
        %2087 = vrot.lane.b32.xlu0 %v2064, 112
        %v2088 = vpop.permute.xlu0 %2087
        %2089 = vrot.lane.b32.xlu0 %v2068, 112
        %v2090 = vpop.permute.xlu0 %2089
        %2091 = vrot.lane.b32.xlu0 %v2072, 112
        %v2092 = vpop.permute.xlu0 %2091
        %2093 = vrot.lane.b32.xlu0 %v2076, 112
        %v2094 = vpop.permute.xlu0 %2093
        %2095 = vrot.lane.b32.xlu0 %v2080, 112
        %v2096 = vpop.permute.xlu0 %2095
        %v2105 = vld [vmem:[#allocation3 + $0x4] sm:$0x1]
        %v2106 = vsel %vm1174, %v2082, %v2105
        %2107 = vst [vmem:[#allocation3 + $0x4] sm:$0x1] %v2106
        %v2108 = vld [vmem:[#allocation3 + $0xc] sm:$0x1]
        %v2109 = vsel %vm1174, %v2084, %v2108
        %2110 = vst [vmem:[#allocation3 + $0xc] sm:$0x1] %v2109
        %v2111 = vld [vmem:[#allocation3 + $0x14] sm:$0x1]
        %v2112 = vsel %vm1174, %v2086, %v2111
        %2113 = vst [vmem:[#allocation3 + $0x14] sm:$0x1] %v2112
        %v2114 = vld [vmem:[#allocation3 + $0x1c] sm:$0x1]
        %v2115 = vsel %vm1174, %v2088, %v2114
        %2116 = vst [vmem:[#allocation3 + $0x1c] sm:$0x1] %v2115
        %v2117 = vld [vmem:[#allocation3 + $0x24] sm:$0x1]
        %v2118 = vsel %vm1174, %v2090, %v2117
        %2119 = vst [vmem:[#allocation3 + $0x24] sm:$0x1] %v2118
        %v2120 = vld [vmem:[#allocation3 + $0x2c] sm:$0x1]
        %v2121 = vsel %vm1174, %v2092, %v2120
        %2122 = vst [vmem:[#allocation3 + $0x2c] sm:$0x1] %v2121
        %v2123 = vld [vmem:[#allocation3 + $0x34] sm:$0x1]
        %v2124 = vsel %vm1174, %v2094, %v2123
        %2125 = vst [vmem:[#allocation3 + $0x34] sm:$0x1] %v2124
        %v2126 = vld [vmem:[#allocation3 + $0x3c] sm:$0x1]
        %v2127 = vsel %vm1174, %v2096, %v2126
        %2128 = vst [vmem:[#allocation3 + $0x3c] sm:$0x1] %v2127
        %v2129 = vld [vmem:[#allocation2 + $0x4] sm:$0xf]
        %v2131 = vrot.slane %v2129, 3
        %v2134 = vsel %vm1099, %v2129, %v2131
        %v2136 = vsel %vm1104, %v2129, %v2131
        %v2138 = vrot.slane %v2136, 1
        %v2139 = vsel %vm1108, %v2129, %v2131
        %v2141 = vrot.slane %v2139, 2
        %v2142 = vsel %vm1112, %v2129, %v2131
        %v2144 = vrot.slane %v2142, 3
        %v2145 = vunpack.i.l.s16 %v2134
        %v2146 = vunpack.i.h.s16 %v2134
        %v2147 = vunpack.i.l.s16 %v2138
        %v2148 = vunpack.i.h.s16 %v2138
        %v2149 = vunpack.i.l.s16 %v2141
        %v2150 = vunpack.i.h.s16 %v2141
        %v2151 = vunpack.i.l.s16 %v2144
        %v2152 = vunpack.i.h.s16 %v2144
        %v2153 = vpack.i.b16 %v2145, %v2145
        %v2154 = vpack.i.b16 %v2146, %v2146
        %v2155 = vpack.i.b16 %v2147, %v2147
        %v2156 = vpack.i.b16 %v2148, %v2148
        %v2157 = vpack.i.b16 %v2149, %v2149
        %v2158 = vpack.i.b16 %v2150, %v2150
        %v2159 = vpack.i.b16 %v2151, %v2151
        %v2160 = vpack.i.b16 %v2152, %v2152
        %v2162 = vunpack.c.l.s4 286326784
        %v2163 = vunpack.c.0.s8 %v2162
        %v2164 = vperm.slane %v2153, %v2163
        %v2166 = vunpack.c.l.s4 286326784
        %v2167 = vunpack.c.0.s8 %v2166
        %v2168 = vperm.slane %v2154, %v2167
        %v2170 = vunpack.c.l.s4 286326784
        %v2171 = vunpack.c.0.s8 %v2170
        %v2172 = vperm.slane %v2155, %v2171
        %v2174 = vunpack.c.l.s4 286326784
        %v2175 = vunpack.c.0.s8 %v2174
        %v2176 = vperm.slane %v2156, %v2175
        %v2178 = vunpack.c.l.s4 286326784
        %v2179 = vunpack.c.0.s8 %v2178
        %v2180 = vperm.slane %v2157, %v2179
        %v2182 = vunpack.c.l.s4 286326784
        %v2183 = vunpack.c.0.s8 %v2182
        %v2184 = vperm.slane %v2158, %v2183
        %v2186 = vunpack.c.l.s4 286326784
        %v2187 = vunpack.c.0.s8 %v2186
        %v2188 = vperm.slane %v2159, %v2187
        %v2190 = vunpack.c.l.s4 286326784
        %v2191 = vunpack.c.0.s8 %v2190
        %v2192 = vperm.slane %v2160, %v2191
        %2193 = vrot.lane.b32.xlu0 %v2164, 94
        %v2194 = vpop.permute.xlu0 %2193
        %2195 = vrot.lane.b32.xlu0 %v2168, 94
        %v2196 = vpop.permute.xlu0 %2195
        %2197 = vrot.lane.b32.xlu0 %v2172, 94
        %v2198 = vpop.permute.xlu0 %2197
        %2199 = vrot.lane.b32.xlu0 %v2176, 94
        %v2200 = vpop.permute.xlu0 %2199
        %2201 = vrot.lane.b32.xlu0 %v2180, 94
        %v2202 = vpop.permute.xlu0 %2201
        %2203 = vrot.lane.b32.xlu0 %v2184, 94
        %v2204 = vpop.permute.xlu0 %2203
        %2205 = vrot.lane.b32.xlu0 %v2188, 94
        %v2206 = vpop.permute.xlu0 %2205
        %2207 = vrot.lane.b32.xlu0 %v2192, 94
        %v2208 = vpop.permute.xlu0 %2207
        %v2217 = vld [vmem:[#allocation3 + $0x4] sm:$0x1]
        %v2218 = vsel %vm1288, %v2194, %v2217
        %2219 = vst [vmem:[#allocation3 + $0x4] sm:$0x1] %v2218
        %v2220 = vld [vmem:[#allocation3 + $0xc] sm:$0x1]
        %v2221 = vsel %vm1288, %v2196, %v2220
        %2222 = vst [vmem:[#allocation3 + $0xc] sm:$0x1] %v2221
        %v2223 = vld [vmem:[#allocation3 + $0x14] sm:$0x1]
        %v2224 = vsel %vm1288, %v2198, %v2223
        %2225 = vst [vmem:[#allocation3 + $0x14] sm:$0x1] %v2224
        %v2226 = vld [vmem:[#allocation3 + $0x1c] sm:$0x1]
        %v2227 = vsel %vm1288, %v2200, %v2226
        %2228 = vst [vmem:[#allocation3 + $0x1c] sm:$0x1] %v2227
        %v2229 = vld [vmem:[#allocation3 + $0x24] sm:$0x1]
        %v2230 = vsel %vm1288, %v2202, %v2229
        %2231 = vst [vmem:[#allocation3 + $0x24] sm:$0x1] %v2230
        %v2232 = vld [vmem:[#allocation3 + $0x2c] sm:$0x1]
        %v2233 = vsel %vm1288, %v2204, %v2232
        %2234 = vst [vmem:[#allocation3 + $0x2c] sm:$0x1] %v2233
        %v2235 = vld [vmem:[#allocation3 + $0x34] sm:$0x1]
        %v2236 = vsel %vm1288, %v2206, %v2235
        %2237 = vst [vmem:[#allocation3 + $0x34] sm:$0x1] %v2236
        %v2238 = vld [vmem:[#allocation3 + $0x3c] sm:$0x1]
        %v2239 = vsel %vm1288, %v2208, %v2238
        %2240 = vst [vmem:[#allocation3 + $0x3c] sm:$0x1] %v2239
        %v2241 = vld [vmem:[#allocation2 + $0x4] sm:$0xf]
        %v2243 = vrot.slane %v2241, 3
        %v2246 = vsel %vm1099, %v2241, %v2243
        %v2248 = vsel %vm1104, %v2241, %v2243
        %v2250 = vrot.slane %v2248, 1
        %v2251 = vsel %vm1108, %v2241, %v2243
        %v2253 = vrot.slane %v2251, 2
        %v2254 = vsel %vm1112, %v2241, %v2243
        %v2256 = vrot.slane %v2254, 3
        %v2257 = vunpack.i.l.s16 %v2246
        %v2258 = vunpack.i.h.s16 %v2246
        %v2259 = vunpack.i.l.s16 %v2250
        %v2260 = vunpack.i.h.s16 %v2250
        %v2261 = vunpack.i.l.s16 %v2253
        %v2262 = vunpack.i.h.s16 %v2253
        %v2263 = vunpack.i.l.s16 %v2256
        %v2264 = vunpack.i.h.s16 %v2256
        %v2265 = vpack.i.b16 %v2257, %v2257
        %v2266 = vpack.i.b16 %v2258, %v2258
        %v2267 = vpack.i.b16 %v2259, %v2259
        %v2268 = vpack.i.b16 %v2260, %v2260
        %v2269 = vpack.i.b16 %v2261, %v2261
        %v2270 = vpack.i.b16 %v2262, %v2262
        %v2271 = vpack.i.b16 %v2263, %v2263
        %v2272 = vpack.i.b16 %v2264, %v2264
        %v2274 = vunpack.c.l.s4 286326784
        %v2275 = vunpack.c.0.s8 %v2274
        %v2276 = vperm.slane %v2265, %v2275
        %v2278 = vunpack.c.l.s4 286326784
        %v2279 = vunpack.c.0.s8 %v2278
        %v2280 = vperm.slane %v2266, %v2279
        %v2282 = vunpack.c.l.s4 286326784
        %v2283 = vunpack.c.0.s8 %v2282
        %v2284 = vperm.slane %v2267, %v2283
        %v2286 = vunpack.c.l.s4 286326784
        %v2287 = vunpack.c.0.s8 %v2286
        %v2288 = vperm.slane %v2268, %v2287
        %v2290 = vunpack.c.l.s4 286326784
        %v2291 = vunpack.c.0.s8 %v2290
        %v2292 = vperm.slane %v2269, %v2291
        %v2294 = vunpack.c.l.s4 286326784
        %v2295 = vunpack.c.0.s8 %v2294
        %v2296 = vperm.slane %v2270, %v2295
        %v2298 = vunpack.c.l.s4 286326784
        %v2299 = vunpack.c.0.s8 %v2298
        %v2300 = vperm.slane %v2271, %v2299
        %v2302 = vunpack.c.l.s4 286326784
        %v2303 = vunpack.c.0.s8 %v2302
        %v2304 = vperm.slane %v2272, %v2303
        %2305 = vrot.lane.b32.xlu0 %v2276, 76
        %v2306 = vpop.permute.xlu0 %2305
        %2307 = vrot.lane.b32.xlu0 %v2280, 76
        %v2308 = vpop.permute.xlu0 %2307
        %2309 = vrot.lane.b32.xlu0 %v2284, 76
        %v2310 = vpop.permute.xlu0 %2309
        %2311 = vrot.lane.b32.xlu0 %v2288, 76
        %v2312 = vpop.permute.xlu0 %2311
        %2313 = vrot.lane.b32.xlu0 %v2292, 76
        %v2314 = vpop.permute.xlu0 %2313
        %2315 = vrot.lane.b32.xlu0 %v2296, 76
        %v2316 = vpop.permute.xlu0 %2315
        %2317 = vrot.lane.b32.xlu0 %v2300, 76
        %v2318 = vpop.permute.xlu0 %2317
        %2319 = vrot.lane.b32.xlu0 %v2304, 76
        %v2320 = vpop.permute.xlu0 %2319
        %v2329 = vld [vmem:[#allocation3 + $0x4] sm:$0x2]
        %v2330 = vsel %vm1403, %v2306, %v2329
        %2331 = vst [vmem:[#allocation3 + $0x4] sm:$0x2] %v2330
        %v2332 = vld [vmem:[#allocation3 + $0xc] sm:$0x2]
        %v2333 = vsel %vm1403, %v2308, %v2332
        %2334 = vst [vmem:[#allocation3 + $0xc] sm:$0x2] %v2333
        %v2335 = vld [vmem:[#allocation3 + $0x14] sm:$0x2]
        %v2336 = vsel %vm1403, %v2310, %v2335
        %2337 = vst [vmem:[#allocation3 + $0x14] sm:$0x2] %v2336
        %v2338 = vld [vmem:[#allocation3 + $0x1c] sm:$0x2]
        %v2339 = vsel %vm1403, %v2312, %v2338
        %2340 = vst [vmem:[#allocation3 + $0x1c] sm:$0x2] %v2339
        %v2341 = vld [vmem:[#allocation3 + $0x24] sm:$0x2]
        %v2342 = vsel %vm1403, %v2314, %v2341
        %2343 = vst [vmem:[#allocation3 + $0x24] sm:$0x2] %v2342
        %v2344 = vld [vmem:[#allocation3 + $0x2c] sm:$0x2]
        %v2345 = vsel %vm1403, %v2316, %v2344
        %2346 = vst [vmem:[#allocation3 + $0x2c] sm:$0x2] %v2345
        %v2347 = vld [vmem:[#allocation3 + $0x34] sm:$0x2]
        %v2348 = vsel %vm1403, %v2318, %v2347
        %2349 = vst [vmem:[#allocation3 + $0x34] sm:$0x2] %v2348
        %v2350 = vld [vmem:[#allocation3 + $0x3c] sm:$0x2]
        %v2351 = vsel %vm1403, %v2320, %v2350
        %2352 = vst [vmem:[#allocation3 + $0x3c] sm:$0x2] %v2351
        %v2353 = vld [vmem:[#allocation2 + $0x4] sm:$0xf]
        %v2355 = vrot.slane %v2353, 3
        %v2358 = vsel %vm1099, %v2353, %v2355
        %v2360 = vsel %vm1104, %v2353, %v2355
        %v2362 = vrot.slane %v2360, 1
        %v2363 = vsel %vm1108, %v2353, %v2355
        %v2365 = vrot.slane %v2363, 2
        %v2366 = vsel %vm1112, %v2353, %v2355
        %v2368 = vrot.slane %v2366, 3
        %v2369 = vunpack.i.l.s16 %v2358
        %v2370 = vunpack.i.h.s16 %v2358
        %v2371 = vunpack.i.l.s16 %v2362
        %v2372 = vunpack.i.h.s16 %v2362
        %v2373 = vunpack.i.l.s16 %v2365
        %v2374 = vunpack.i.h.s16 %v2365
        %v2375 = vunpack.i.l.s16 %v2368
        %v2376 = vunpack.i.h.s16 %v2368
        %v2377 = vpack.i.b16 %v2369, %v2369
        %v2378 = vpack.i.b16 %v2370, %v2370
        %v2379 = vpack.i.b16 %v2371, %v2371
        %v2380 = vpack.i.b16 %v2372, %v2372
        %v2381 = vpack.i.b16 %v2373, %v2373
        %v2382 = vpack.i.b16 %v2374, %v2374
        %v2383 = vpack.i.b16 %v2375, %v2375
        %v2384 = vpack.i.b16 %v2376, %v2376
        %v2386 = vunpack.c.l.s4 286326784
        %v2387 = vunpack.c.0.s8 %v2386
        %v2388 = vperm.slane %v2377, %v2387
        %v2390 = vunpack.c.l.s4 286326784
        %v2391 = vunpack.c.0.s8 %v2390
        %v2392 = vperm.slane %v2378, %v2391
        %v2394 = vunpack.c.l.s4 286326784
        %v2395 = vunpack.c.0.s8 %v2394
        %v2396 = vperm.slane %v2379, %v2395
        %v2398 = vunpack.c.l.s4 286326784
        %v2399 = vunpack.c.0.s8 %v2398
        %v2400 = vperm.slane %v2380, %v2399
        %v2402 = vunpack.c.l.s4 286326784
        %v2403 = vunpack.c.0.s8 %v2402
        %v2404 = vperm.slane %v2381, %v2403
        %v2406 = vunpack.c.l.s4 286326784
        %v2407 = vunpack.c.0.s8 %v2406
        %v2408 = vperm.slane %v2382, %v2407
        %v2410 = vunpack.c.l.s4 286326784
        %v2411 = vunpack.c.0.s8 %v2410
        %v2412 = vperm.slane %v2383, %v2411
        %v2414 = vunpack.c.l.s4 286326784
        %v2415 = vunpack.c.0.s8 %v2414
        %v2416 = vperm.slane %v2384, %v2415
        %2417 = vrot.lane.b32.xlu0 %v2388, 58
        %v2418 = vpop.permute.xlu0 %2417
        %2419 = vrot.lane.b32.xlu0 %v2392, 58
        %v2420 = vpop.permute.xlu0 %2419
        %2421 = vrot.lane.b32.xlu0 %v2396, 58
        %v2422 = vpop.permute.xlu0 %2421
        %2423 = vrot.lane.b32.xlu0 %v2400, 58
        %v2424 = vpop.permute.xlu0 %2423
        %2425 = vrot.lane.b32.xlu0 %v2404, 58
        %v2426 = vpop.permute.xlu0 %2425
        %2427 = vrot.lane.b32.xlu0 %v2408, 58
        %v2428 = vpop.permute.xlu0 %2427
        %2429 = vrot.lane.b32.xlu0 %v2412, 58
        %v2430 = vpop.permute.xlu0 %2429
        %2431 = vrot.lane.b32.xlu0 %v2416, 58
        %v2432 = vpop.permute.xlu0 %2431
        %v2441 = vld [vmem:[#allocation3 + $0x4] sm:$0x2]
        %v2442 = vsel %vm1517, %v2418, %v2441
        %2443 = vst [vmem:[#allocation3 + $0x4] sm:$0x2] %v2442
        %v2444 = vld [vmem:[#allocation3 + $0xc] sm:$0x2]
        %v2445 = vsel %vm1517, %v2420, %v2444
        %2446 = vst [vmem:[#allocation3 + $0xc] sm:$0x2] %v2445
        %v2447 = vld [vmem:[#allocation3 + $0x14] sm:$0x2]
        %v2448 = vsel %vm1517, %v2422, %v2447
        %2449 = vst [vmem:[#allocation3 + $0x14] sm:$0x2] %v2448
        %v2450 = vld [vmem:[#allocation3 + $0x1c] sm:$0x2]
        %v2451 = vsel %vm1517, %v2424, %v2450
        %2452 = vst [vmem:[#allocation3 + $0x1c] sm:$0x2] %v2451
        %v2453 = vld [vmem:[#allocation3 + $0x24] sm:$0x2]
        %v2454 = vsel %vm1517, %v2426, %v2453
        %2455 = vst [vmem:[#allocation3 + $0x24] sm:$0x2] %v2454
        %v2456 = vld [vmem:[#allocation3 + $0x2c] sm:$0x2]
        %v2457 = vsel %vm1517, %v2428, %v2456
        %2458 = vst [vmem:[#allocation3 + $0x2c] sm:$0x2] %v2457
        %v2459 = vld [vmem:[#allocation3 + $0x34] sm:$0x2]
        %v2460 = vsel %vm1517, %v2430, %v2459
        %2461 = vst [vmem:[#allocation3 + $0x34] sm:$0x2] %v2460
        %v2462 = vld [vmem:[#allocation3 + $0x3c] sm:$0x2]
        %v2463 = vsel %vm1517, %v2432, %v2462
        %2464 = vst [vmem:[#allocation3 + $0x3c] sm:$0x2] %v2463
        %v2465 = vld [vmem:[#allocation2 + $0x4] sm:$0xf]
        %v2467 = vrot.slane %v2465, 3
        %v2470 = vsel %vm1099, %v2465, %v2467
        %v2472 = vsel %vm1104, %v2465, %v2467
        %v2474 = vrot.slane %v2472, 1
        %v2475 = vsel %vm1108, %v2465, %v2467
        %v2477 = vrot.slane %v2475, 2
        %v2478 = vsel %vm1112, %v2465, %v2467
        %v2480 = vrot.slane %v2478, 3
        %v2481 = vunpack.i.l.s16 %v2470
        %v2482 = vunpack.i.h.s16 %v2470
        %v2483 = vunpack.i.l.s16 %v2474
        %v2484 = vunpack.i.h.s16 %v2474
        %v2485 = vunpack.i.l.s16 %v2477
        %v2486 = vunpack.i.h.s16 %v2477
        %v2487 = vunpack.i.l.s16 %v2480
        %v2488 = vunpack.i.h.s16 %v2480
        %v2489 = vpack.i.b16 %v2481, %v2481
        %v2490 = vpack.i.b16 %v2482, %v2482
        %v2491 = vpack.i.b16 %v2483, %v2483
        %v2492 = vpack.i.b16 %v2484, %v2484
        %v2493 = vpack.i.b16 %v2485, %v2485
        %v2494 = vpack.i.b16 %v2486, %v2486
        %v2495 = vpack.i.b16 %v2487, %v2487
        %v2496 = vpack.i.b16 %v2488, %v2488
        %v2498 = vunpack.c.l.s4 286326784
        %v2499 = vunpack.c.0.s8 %v2498
        %v2500 = vperm.slane %v2489, %v2499
        %v2502 = vunpack.c.l.s4 286326784
        %v2503 = vunpack.c.0.s8 %v2502
        %v2504 = vperm.slane %v2490, %v2503
        %v2506 = vunpack.c.l.s4 286326784
        %v2507 = vunpack.c.0.s8 %v2506
        %v2508 = vperm.slane %v2491, %v2507
        %v2510 = vunpack.c.l.s4 286326784
        %v2511 = vunpack.c.0.s8 %v2510
        %v2512 = vperm.slane %v2492, %v2511
        %v2514 = vunpack.c.l.s4 286326784
        %v2515 = vunpack.c.0.s8 %v2514
        %v2516 = vperm.slane %v2493, %v2515
        %v2518 = vunpack.c.l.s4 286326784
        %v2519 = vunpack.c.0.s8 %v2518
        %v2520 = vperm.slane %v2494, %v2519
        %v2522 = vunpack.c.l.s4 286326784
        %v2523 = vunpack.c.0.s8 %v2522
        %v2524 = vperm.slane %v2495, %v2523
        %v2526 = vunpack.c.l.s4 286326784
        %v2527 = vunpack.c.0.s8 %v2526
        %v2528 = vperm.slane %v2496, %v2527
        %2529 = vrot.lane.b32.xlu0 %v2500, 40
        %v2530 = vpop.permute.xlu0 %2529
        %2531 = vrot.lane.b32.xlu0 %v2504, 40
        %v2532 = vpop.permute.xlu0 %2531
        %2533 = vrot.lane.b32.xlu0 %v2508, 40
        %v2534 = vpop.permute.xlu0 %2533
        %2535 = vrot.lane.b32.xlu0 %v2512, 40
        %v2536 = vpop.permute.xlu0 %2535
        %2537 = vrot.lane.b32.xlu0 %v2516, 40
        %v2538 = vpop.permute.xlu0 %2537
        %2539 = vrot.lane.b32.xlu0 %v2520, 40
        %v2540 = vpop.permute.xlu0 %2539
        %2541 = vrot.lane.b32.xlu0 %v2524, 40
        %v2542 = vpop.permute.xlu0 %2541
        %2543 = vrot.lane.b32.xlu0 %v2528, 40
        %v2544 = vpop.permute.xlu0 %2543
        %v2553 = vld [vmem:[#allocation3 + $0x4] sm:$0x4]
        %v2554 = vsel %vm1632, %v2530, %v2553
        %2555 = vst [vmem:[#allocation3 + $0x4] sm:$0x4] %v2554
        %v2556 = vld [vmem:[#allocation3 + $0xc] sm:$0x4]
        %v2557 = vsel %vm1632, %v2532, %v2556
        %2558 = vst [vmem:[#allocation3 + $0xc] sm:$0x4] %v2557
        %v2559 = vld [vmem:[#allocation3 + $0x14] sm:$0x4]
        %v2560 = vsel %vm1632, %v2534, %v2559
        %2561 = vst [vmem:[#allocation3 + $0x14] sm:$0x4] %v2560
        %v2562 = vld [vmem:[#allocation3 + $0x1c] sm:$0x4]
        %v2563 = vsel %vm1632, %v2536, %v2562
        %2564 = vst [vmem:[#allocation3 + $0x1c] sm:$0x4] %v2563
        %v2565 = vld [vmem:[#allocation3 + $0x24] sm:$0x4]
        %v2566 = vsel %vm1632, %v2538, %v2565
        %2567 = vst [vmem:[#allocation3 + $0x24] sm:$0x4] %v2566
        %v2568 = vld [vmem:[#allocation3 + $0x2c] sm:$0x4]
        %v2569 = vsel %vm1632, %v2540, %v2568
        %2570 = vst [vmem:[#allocation3 + $0x2c] sm:$0x4] %v2569
        %v2571 = vld [vmem:[#allocation3 + $0x34] sm:$0x4]
        %v2572 = vsel %vm1632, %v2542, %v2571
        %2573 = vst [vmem:[#allocation3 + $0x34] sm:$0x4] %v2572
        %v2574 = vld [vmem:[#allocation3 + $0x3c] sm:$0x4]
        %v2575 = vsel %vm1632, %v2544, %v2574
        %2576 = vst [vmem:[#allocation3 + $0x3c] sm:$0x4] %v2575
        %v2577 = vld [vmem:[#allocation2 + $0x4] sm:$0xf]
        %v2579 = vrot.slane %v2577, 3
        %v2582 = vsel %vm1099, %v2577, %v2579
        %v2584 = vsel %vm1104, %v2577, %v2579
        %v2586 = vrot.slane %v2584, 1
        %v2587 = vsel %vm1108, %v2577, %v2579
        %v2589 = vrot.slane %v2587, 2
        %v2590 = vsel %vm1112, %v2577, %v2579
        %v2592 = vrot.slane %v2590, 3
        %v2593 = vunpack.i.l.s16 %v2582
        %v2594 = vunpack.i.h.s16 %v2582
        %v2595 = vunpack.i.l.s16 %v2586
        %v2596 = vunpack.i.h.s16 %v2586
        %v2597 = vunpack.i.l.s16 %v2589
        %v2598 = vunpack.i.h.s16 %v2589
        %v2599 = vunpack.i.l.s16 %v2592
        %v2600 = vunpack.i.h.s16 %v2592
        %v2601 = vpack.i.b16 %v2593, %v2593
        %v2602 = vpack.i.b16 %v2594, %v2594
        %v2603 = vpack.i.b16 %v2595, %v2595
        %v2604 = vpack.i.b16 %v2596, %v2596
        %v2605 = vpack.i.b16 %v2597, %v2597
        %v2606 = vpack.i.b16 %v2598, %v2598
        %v2607 = vpack.i.b16 %v2599, %v2599
        %v2608 = vpack.i.b16 %v2600, %v2600
        %v2610 = vunpack.c.l.s4 286326784
        %v2611 = vunpack.c.0.s8 %v2610
        %v2612 = vperm.slane %v2601, %v2611
        %v2614 = vunpack.c.l.s4 286326784
        %v2615 = vunpack.c.0.s8 %v2614
        %v2616 = vperm.slane %v2602, %v2615
        %v2618 = vunpack.c.l.s4 286326784
        %v2619 = vunpack.c.0.s8 %v2618
        %v2620 = vperm.slane %v2603, %v2619
        %v2622 = vunpack.c.l.s4 286326784
        %v2623 = vunpack.c.0.s8 %v2622
        %v2624 = vperm.slane %v2604, %v2623
        %v2626 = vunpack.c.l.s4 286326784
        %v2627 = vunpack.c.0.s8 %v2626
        %v2628 = vperm.slane %v2605, %v2627
        %v2630 = vunpack.c.l.s4 286326784
        %v2631 = vunpack.c.0.s8 %v2630
        %v2632 = vperm.slane %v2606, %v2631
        %v2634 = vunpack.c.l.s4 286326784
        %v2635 = vunpack.c.0.s8 %v2634
        %v2636 = vperm.slane %v2607, %v2635
        %v2638 = vunpack.c.l.s4 286326784
        %v2639 = vunpack.c.0.s8 %v2638
        %v2640 = vperm.slane %v2608, %v2639
        %2641 = vrot.lane.b32.xlu0 %v2612, 22
        %v2642 = vpop.permute.xlu0 %2641
        %2643 = vrot.lane.b32.xlu0 %v2616, 22
        %v2644 = vpop.permute.xlu0 %2643
        %2645 = vrot.lane.b32.xlu0 %v2620, 22
        %v2646 = vpop.permute.xlu0 %2645
        %2647 = vrot.lane.b32.xlu0 %v2624, 22
        %v2648 = vpop.permute.xlu0 %2647
        %2649 = vrot.lane.b32.xlu0 %v2628, 22
        %v2650 = vpop.permute.xlu0 %2649
        %2651 = vrot.lane.b32.xlu0 %v2632, 22
        %v2652 = vpop.permute.xlu0 %2651
        %2653 = vrot.lane.b32.xlu0 %v2636, 22
        %v2654 = vpop.permute.xlu0 %2653
        %2655 = vrot.lane.b32.xlu0 %v2640, 22
        %v2656 = vpop.permute.xlu0 %2655
        %v2665 = vld [vmem:[#allocation3 + $0x4] sm:$0x4]
        %v2666 = vsel %vm1746, %v2642, %v2665
        %2667 = vst [vmem:[#allocation3 + $0x4] sm:$0x4] %v2666
        %v2668 = vld [vmem:[#allocation3 + $0xc] sm:$0x4]
        %v2669 = vsel %vm1746, %v2644, %v2668
        %2670 = vst [vmem:[#allocation3 + $0xc] sm:$0x4] %v2669
        %v2671 = vld [vmem:[#allocation3 + $0x14] sm:$0x4]
        %v2672 = vsel %vm1746, %v2646, %v2671
        %2673 = vst [vmem:[#allocation3 + $0x14] sm:$0x4] %v2672
        %v2674 = vld [vmem:[#allocation3 + $0x1c] sm:$0x4]
        %v2675 = vsel %vm1746, %v2648, %v2674
        %2676 = vst [vmem:[#allocation3 + $0x1c] sm:$0x4] %v2675
        %v2677 = vld [vmem:[#allocation3 + $0x24] sm:$0x4]
        %v2678 = vsel %vm1746, %v2650, %v2677
        %2679 = vst [vmem:[#allocation3 + $0x24] sm:$0x4] %v2678
        %v2680 = vld [vmem:[#allocation3 + $0x2c] sm:$0x4]
        %v2681 = vsel %vm1746, %v2652, %v2680
        %2682 = vst [vmem:[#allocation3 + $0x2c] sm:$0x4] %v2681
        %v2683 = vld [vmem:[#allocation3 + $0x34] sm:$0x4]
        %v2684 = vsel %vm1746, %v2654, %v2683
        %2685 = vst [vmem:[#allocation3 + $0x34] sm:$0x4] %v2684
        %v2686 = vld [vmem:[#allocation3 + $0x3c] sm:$0x4]
        %v2687 = vsel %vm1746, %v2656, %v2686
        %2688 = vst [vmem:[#allocation3 + $0x3c] sm:$0x4] %v2687
        %v2689 = vld [vmem:[#allocation2 + $0x4] sm:$0xff]
        %v2691 = vrot.slane %v2689, 3
        %v2694 = vsel %vm1099, %v2689, %v2691
        %v2696 = vsel %vm1104, %v2689, %v2691
        %v2698 = vrot.slane %v2696, 1
        %v2699 = vsel %vm1108, %v2689, %v2691
        %v2701 = vrot.slane %v2699, 2
        %v2702 = vsel %vm1112, %v2689, %v2691
        %v2704 = vrot.slane %v2702, 3
        %v2705 = vunpack.i.l.s16 %v2694
        %v2706 = vunpack.i.h.s16 %v2694
        %v2707 = vunpack.i.l.s16 %v2698
        %v2708 = vunpack.i.h.s16 %v2698
        %v2709 = vunpack.i.l.s16 %v2701
        %v2710 = vunpack.i.h.s16 %v2701
        %v2711 = vunpack.i.l.s16 %v2704
        %v2712 = vunpack.i.h.s16 %v2704
        %v2713 = vpack.i.b16 %v2705, %v2705
        %v2714 = vpack.i.b16 %v2706, %v2706
        %v2715 = vpack.i.b16 %v2707, %v2707
        %v2716 = vpack.i.b16 %v2708, %v2708
        %v2717 = vpack.i.b16 %v2709, %v2709
        %v2718 = vpack.i.b16 %v2710, %v2710
        %v2719 = vpack.i.b16 %v2711, %v2711
        %v2720 = vpack.i.b16 %v2712, %v2712
        %v2722 = vunpack.c.l.s4 286326784
        %v2723 = vunpack.c.0.s8 %v2722
        %v2724 = vperm.slane %v2713, %v2723
        %v2726 = vunpack.c.l.s4 286326784
        %v2727 = vunpack.c.0.s8 %v2726
        %v2728 = vperm.slane %v2714, %v2727
        %v2730 = vunpack.c.l.s4 286326784
        %v2731 = vunpack.c.0.s8 %v2730
        %v2732 = vperm.slane %v2715, %v2731
        %v2734 = vunpack.c.l.s4 286326784
        %v2735 = vunpack.c.0.s8 %v2734
        %v2736 = vperm.slane %v2716, %v2735
        %v2738 = vunpack.c.l.s4 286326784
        %v2739 = vunpack.c.0.s8 %v2738
        %v2740 = vperm.slane %v2717, %v2739
        %v2742 = vunpack.c.l.s4 286326784
        %v2743 = vunpack.c.0.s8 %v2742
        %v2744 = vperm.slane %v2718, %v2743
        %v2746 = vunpack.c.l.s4 286326784
        %v2747 = vunpack.c.0.s8 %v2746
        %v2748 = vperm.slane %v2719, %v2747
        %v2750 = vunpack.c.l.s4 286326784
        %v2751 = vunpack.c.0.s8 %v2750
        %v2752 = vperm.slane %v2720, %v2751
        %2753 = vrot.lane.b32.xlu0 %v2724, 4
        %v2754 = vpop.permute.xlu0 %2753
        %2755 = vrot.lane.b32.xlu0 %v2728, 4
        %v2756 = vpop.permute.xlu0 %2755
        %2757 = vrot.lane.b32.xlu0 %v2732, 4
        %v2758 = vpop.permute.xlu0 %2757
        %2759 = vrot.lane.b32.xlu0 %v2736, 4
        %v2760 = vpop.permute.xlu0 %2759
        %2761 = vrot.lane.b32.xlu0 %v2740, 4
        %v2762 = vpop.permute.xlu0 %2761
        %2763 = vrot.lane.b32.xlu0 %v2744, 4
        %v2764 = vpop.permute.xlu0 %2763
        %2765 = vrot.lane.b32.xlu0 %v2748, 4
        %v2766 = vpop.permute.xlu0 %2765
        %2767 = vrot.lane.b32.xlu0 %v2752, 4
        %v2768 = vpop.permute.xlu0 %2767
        %v2769 = vrot.slane %v2754, 4
        %v2770 = vrot.slane %v2756, 4
        %v2771 = vrot.slane %v2758, 4
        %v2772 = vrot.slane %v2760, 4
        %v2773 = vrot.slane %v2762, 4
        %v2774 = vrot.slane %v2764, 4
        %v2775 = vrot.slane %v2766, 4
        %v2776 = vrot.slane %v2768, 4
        %vm2777 = vcmask 31744
        %v2778 = vsel %vm2777, %v2754, %v2769
        %v2779 = vsel %vm2777, %v2756, %v2770
        %v2780 = vsel %vm2777, %v2758, %v2771
        %v2781 = vsel %vm2777, %v2760, %v2772
        %v2782 = vsel %vm2777, %v2762, %v2773
        %v2783 = vsel %vm2777, %v2764, %v2774
        %v2784 = vsel %vm2777, %v2766, %v2775
        %v2785 = vsel %vm2777, %v2768, %v2776
        %v2794 = vld [vmem:[#allocation3 + $0x4] sm:$0x8]
        %v2795 = vsel %vm1861, %v2778, %v2794
        %2796 = vst [vmem:[#allocation3 + $0x4] sm:$0x8] %v2795
        %v2797 = vld [vmem:[#allocation3 + $0xc] sm:$0x8]
        %v2798 = vsel %vm1861, %v2779, %v2797
        %2799 = vst [vmem:[#allocation3 + $0xc] sm:$0x8] %v2798
        %v2800 = vld [vmem:[#allocation3 + $0x14] sm:$0x8]
        %v2801 = vsel %vm1861, %v2780, %v2800
        %2802 = vst [vmem:[#allocation3 + $0x14] sm:$0x8] %v2801
        %v2803 = vld [vmem:[#allocation3 + $0x1c] sm:$0x8]
        %v2804 = vsel %vm1861, %v2781, %v2803
        %2805 = vst [vmem:[#allocation3 + $0x1c] sm:$0x8] %v2804
        %v2806 = vld [vmem:[#allocation3 + $0x24] sm:$0x8]
        %v2807 = vsel %vm1861, %v2782, %v2806
        %2808 = vst [vmem:[#allocation3 + $0x24] sm:$0x8] %v2807
        %v2809 = vld [vmem:[#allocation3 + $0x2c] sm:$0x8]
        %v2810 = vsel %vm1861, %v2783, %v2809
        %2811 = vst [vmem:[#allocation3 + $0x2c] sm:$0x8] %v2810
        %v2812 = vld [vmem:[#allocation3 + $0x34] sm:$0x8]
        %v2813 = vsel %vm1861, %v2784, %v2812
        %2814 = vst [vmem:[#allocation3 + $0x34] sm:$0x8] %v2813
        %v2815 = vld [vmem:[#allocation3 + $0x3c] sm:$0x8]
        %v2816 = vsel %vm1861, %v2785, %v2815
        %2817 = vst [vmem:[#allocation3 + $0x3c] sm:$0x8] %v2816
        %v2818 = vld [vmem:[#allocation2 + $0x8] sm:$0xf]
        %v2820 = vrot.slane %v2818, 3
        %v2823 = vsel %vm1099, %v2818, %v2820
        %v2825 = vsel %vm1104, %v2818, %v2820
        %v2827 = vrot.slane %v2825, 1
        %v2828 = vsel %vm1108, %v2818, %v2820
        %v2830 = vrot.slane %v2828, 2
        %v2831 = vsel %vm1112, %v2818, %v2820
        %v2833 = vrot.slane %v2831, 3
        %v2834 = vunpack.i.l.s16 %v2823
        %v2835 = vunpack.i.h.s16 %v2823
        %v2836 = vunpack.i.l.s16 %v2827
        %v2837 = vunpack.i.h.s16 %v2827
        %v2838 = vunpack.i.l.s16 %v2830
        %v2839 = vunpack.i.h.s16 %v2830
        %v2840 = vunpack.i.l.s16 %v2833
        %v2841 = vunpack.i.h.s16 %v2833
        %v2842 = vpack.i.b16 %v2834, %v2834
        %v2843 = vpack.i.b16 %v2835, %v2835
        %v2844 = vpack.i.b16 %v2836, %v2836
        %v2845 = vpack.i.b16 %v2837, %v2837
        %v2846 = vpack.i.b16 %v2838, %v2838
        %v2847 = vpack.i.b16 %v2839, %v2839
        %v2848 = vpack.i.b16 %v2840, %v2840
        %v2849 = vpack.i.b16 %v2841, %v2841
        %v2851 = vunpack.c.l.s4 286326784
        %v2852 = vunpack.c.0.s8 %v2851
        %v2853 = vperm.slane %v2842, %v2852
        %v2855 = vunpack.c.l.s4 286326784
        %v2856 = vunpack.c.0.s8 %v2855
        %v2857 = vperm.slane %v2843, %v2856
        %v2859 = vunpack.c.l.s4 286326784
        %v2860 = vunpack.c.0.s8 %v2859
        %v2861 = vperm.slane %v2844, %v2860
        %v2863 = vunpack.c.l.s4 286326784
        %v2864 = vunpack.c.0.s8 %v2863
        %v2865 = vperm.slane %v2845, %v2864
        %v2867 = vunpack.c.l.s4 286326784
        %v2868 = vunpack.c.0.s8 %v2867
        %v2869 = vperm.slane %v2846, %v2868
        %v2871 = vunpack.c.l.s4 286326784
        %v2872 = vunpack.c.0.s8 %v2871
        %v2873 = vperm.slane %v2847, %v2872
        %v2875 = vunpack.c.l.s4 286326784
        %v2876 = vunpack.c.0.s8 %v2875
        %v2877 = vperm.slane %v2848, %v2876
        %v2879 = vunpack.c.l.s4 286326784
        %v2880 = vunpack.c.0.s8 %v2879
        %v2881 = vperm.slane %v2849, %v2880
        %2882 = vrot.lane.b32.xlu0 %v2853, 114
        %v2883 = vpop.permute.xlu0 %2882
        %2884 = vrot.lane.b32.xlu0 %v2857, 114
        %v2885 = vpop.permute.xlu0 %2884
        %2886 = vrot.lane.b32.xlu0 %v2861, 114
        %v2887 = vpop.permute.xlu0 %2886
        %2888 = vrot.lane.b32.xlu0 %v2865, 114
        %v2889 = vpop.permute.xlu0 %2888
        %2890 = vrot.lane.b32.xlu0 %v2869, 114
        %v2891 = vpop.permute.xlu0 %2890
        %2892 = vrot.lane.b32.xlu0 %v2873, 114
        %v2893 = vpop.permute.xlu0 %2892
        %2894 = vrot.lane.b32.xlu0 %v2877, 114
        %v2895 = vpop.permute.xlu0 %2894
        %2896 = vrot.lane.b32.xlu0 %v2881, 114
        %v2897 = vpop.permute.xlu0 %2896
        %v2906 = vld [vmem:[#allocation3 + $0x4] sm:$0x8]
        %v2907 = vsel %vm1992, %v2883, %v2906
        %2908 = vst [vmem:[#allocation3 + $0x4] sm:$0x8] %v2907
        %v2909 = vld [vmem:[#allocation3 + $0xc] sm:$0x8]
        %v2910 = vsel %vm1992, %v2885, %v2909
        %2911 = vst [vmem:[#allocation3 + $0xc] sm:$0x8] %v2910
        %v2912 = vld [vmem:[#allocation3 + $0x14] sm:$0x8]
        %v2913 = vsel %vm1992, %v2887, %v2912
        %2914 = vst [vmem:[#allocation3 + $0x14] sm:$0x8] %v2913
        %v2915 = vld [vmem:[#allocation3 + $0x1c] sm:$0x8]
        %v2916 = vsel %vm1992, %v2889, %v2915
        %2917 = vst [vmem:[#allocation3 + $0x1c] sm:$0x8] %v2916
        %v2918 = vld [vmem:[#allocation3 + $0x24] sm:$0x8]
        %v2919 = vsel %vm1992, %v2891, %v2918
        %2920 = vst [vmem:[#allocation3 + $0x24] sm:$0x8] %v2919
        %v2921 = vld [vmem:[#allocation3 + $0x2c] sm:$0x8]
        %v2922 = vsel %vm1992, %v2893, %v2921
        %2923 = vst [vmem:[#allocation3 + $0x2c] sm:$0x8] %v2922
        %v2924 = vld [vmem:[#allocation3 + $0x34] sm:$0x8]
        %v2925 = vsel %vm1992, %v2895, %v2924
        %2926 = vst [vmem:[#allocation3 + $0x34] sm:$0x8] %v2925
        %v2927 = vld [vmem:[#allocation3 + $0x3c] sm:$0x8]
        %v2928 = vsel %vm1992, %v2897, %v2927
        %2929 = vst [vmem:[#allocation3 + $0x3c] sm:$0x8] %v2928
        %v2930 = vld [vmem:[%s6] sm:$0xf]
        %v2931 = vld [vmem:[%s6 + $0x4] sm:$0xf]
        %v2932 = vld [vmem:[%s6 + $0x8] sm:$0xf]
        %v2933 = vld [vmem:[%s6 + $0xc] sm:$0xf]
        %v2934 = vld [vmem:[#allocation3] sm:$0xf]
        %v2935 = vld [vmem:[#allocation3 + $0x4] sm:$0xf]
        %v2936 = vld [vmem:[#allocation3 + $0x8] sm:$0xf]
        %v2937 = vld [vmem:[#allocation3 + $0xc] sm:$0xf]
        %v2938 = vld [vmem:[#allocation3 + $0x10] sm:$0xf]
        %v2939 = vld [vmem:[#allocation3 + $0x14] sm:$0xf]
        %v2940 = vld [vmem:[#allocation3 + $0x18] sm:$0xf]
        %v2941 = vld [vmem:[#allocation3 + $0x1c] sm:$0xf]
        %v2942 = vld [vmem:[#allocation3 + $0x20] sm:$0xf]
        %v2943 = vld [vmem:[#allocation3 + $0x24] sm:$0xf]
        %v2944 = vld [vmem:[#allocation3 + $0x28] sm:$0xf]
        %v2945 = vld [vmem:[#allocation3 + $0x2c] sm:$0xf]
        %v2946 = vld [vmem:[#allocation3 + $0x30] sm:$0xf]
        %v2947 = vld [vmem:[#allocation3 + $0x34] sm:$0xf]
        %v2948 = vld [vmem:[#allocation3 + $0x38] sm:$0xf]
        %v2949 = vld [vmem:[#allocation3 + $0x3c] sm:$0xf]
        %v2954 = vunpack.c.l.b16 %v2930
        %v2955 = vunpack.c.l.b16 %v2931
        %v2956 = vunpack.c.l.b16 %v2932
        %v2957 = vunpack.c.l.b16 %v2933
        %v2958 = vpack.c.b16 %v2955, %v2954
        %v2959 = vpack.c.b16 %v2957, %v2956
        %v2962 = vunpack.c.l.b16 %v2934
        %v2963 = vunpack.c.l.b16 %v2935
        %v2964 = vpack.c.b16 %v2963, %v2962
        %vm2966 = vcmask 130048
        %v2968 = vsel %vm2966, %v2958, 0
        %v2971 = vsel %vm2966, %v2959, 0
        %2973 = vmatpush.bf16.msra.mxu0 0
        %2974 = vmatpush.bf16.msra.mxu0 0
        %2975 = vmatpush.bf16.msra.mxu0 0
        %2976 = vmatpush.bf16.msra.mxu0 0
        %2977 = vmatpush.bf16.msra.mxu0 0
        %2978 = vmatpush.bf16.msra.mxu0 0
        %2979 = vmatpush.bf16.msra.mxu0 0
        %2980 = vmatpush.bf16.msra.mxu0 %v2964
        %2981 = vmatmul.bf16.gmra.mxu0 %v2968
        %v2982 = vpop.f32.mrf.mxu0
        %v2983 = vadd.f32 0.0, %v2982
        %v2984 = vpop.f32.mrf.mxu0
        %v2985 = vadd.f32 0.0, %v2984
        %2986 = vmatmul.bf16.gmra.mxu0 %v2971
        %v2987 = vpop.f32.mrf.mxu0
        %v2988 = vadd.f32 0.0, %v2987
        %v2989 = vpop.f32.mrf.mxu0
        %v2990 = vadd.f32 0.0, %v2989
        %2991 = vdwg.mxu0
        %v2994 = vunpack.c.l.b16 %v2936
        %v2995 = vunpack.c.l.b16 %v2937
        %v2996 = vpack.c.b16 %v2995, %v2994
        %2998 = vmatpush.bf16.msra.mxu0 0
        %2999 = vmatpush.bf16.msra.mxu0 0
        %3000 = vmatpush.bf16.msra.mxu0 0
        %3001 = vmatpush.bf16.msra.mxu0 0
        %3002 = vmatpush.bf16.msra.mxu0 0
        %3003 = vmatpush.bf16.msra.mxu0 0
        %3004 = vmatpush.bf16.msra.mxu0 0
        %3005 = vmatpush.bf16.msra.mxu0 %v2996
        %3006 = vmatmul.bf16.gmra.mxu0 %v2968
        %v3007 = vpop.f32.mrf.mxu0
        %v3008 = vadd.f32 0.0, %v3007
        %v3009 = vpop.f32.mrf.mxu0
        %v3010 = vadd.f32 0.0, %v3009
        %3011 = vmatmul.bf16.gmra.mxu0 %v2971
        %v3012 = vpop.f32.mrf.mxu0
        %v3013 = vadd.f32 0.0, %v3012
        %v3014 = vpop.f32.mrf.mxu0
        %v3015 = vadd.f32 0.0, %v3014
        %3016 = vdwg.mxu0
        %v3019 = vunpack.c.l.b16 %v2938
        %v3020 = vunpack.c.l.b16 %v2939
        %v3021 = vpack.c.b16 %v3020, %v3019
        %3023 = vmatpush.bf16.msra.mxu0 0
        %3024 = vmatpush.bf16.msra.mxu0 0
        %3025 = vmatpush.bf16.msra.mxu0 0
        %3026 = vmatpush.bf16.msra.mxu0 0
        %3027 = vmatpush.bf16.msra.mxu0 0
        %3028 = vmatpush.bf16.msra.mxu0 0
        %3029 = vmatpush.bf16.msra.mxu0 0
        %3030 = vmatpush.bf16.msra.mxu0 %v3021
        %3031 = vmatmul.bf16.gmra.mxu0 %v2968
        %v3032 = vpop.f32.mrf.mxu0
        %v3033 = vadd.f32 0.0, %v3032
        %v3034 = vpop.f32.mrf.mxu0
        %v3035 = vadd.f32 0.0, %v3034
        %3036 = vmatmul.bf16.gmra.mxu0 %v2971
        %v3037 = vpop.f32.mrf.mxu0
        %v3038 = vadd.f32 0.0, %v3037
        %v3039 = vpop.f32.mrf.mxu0
        %v3040 = vadd.f32 0.0, %v3039
        %3041 = vdwg.mxu0
        %v3044 = vunpack.c.l.b16 %v2940
        %v3045 = vunpack.c.l.b16 %v2941
        %v3046 = vpack.c.b16 %v3045, %v3044
        %3048 = vmatpush.bf16.msra.mxu0 0
        %3049 = vmatpush.bf16.msra.mxu0 0
        %3050 = vmatpush.bf16.msra.mxu0 0
        %3051 = vmatpush.bf16.msra.mxu0 0
        %3052 = vmatpush.bf16.msra.mxu0 0
        %3053 = vmatpush.bf16.msra.mxu0 0
        %3054 = vmatpush.bf16.msra.mxu0 0
        %3055 = vmatpush.bf16.msra.mxu0 %v3046
        %3056 = vmatmul.bf16.gmra.mxu0 %v2968
        %v3057 = vpop.f32.mrf.mxu0
        %v3058 = vadd.f32 0.0, %v3057
        %v3059 = vpop.f32.mrf.mxu0
        %v3060 = vadd.f32 0.0, %v3059
        %3061 = vmatmul.bf16.gmra.mxu0 %v2971
        %v3062 = vpop.f32.mrf.mxu0
        %v3063 = vadd.f32 0.0, %v3062
        %v3064 = vpop.f32.mrf.mxu0
        %v3065 = vadd.f32 0.0, %v3064
        %3066 = vdwg.mxu0
        %v3069 = vunpack.c.l.b16 %v2942
        %v3070 = vunpack.c.l.b16 %v2943
        %v3071 = vpack.c.b16 %v3070, %v3069
        %3073 = vmatpush.bf16.msra.mxu0 0
        %3074 = vmatpush.bf16.msra.mxu0 0
        %3075 = vmatpush.bf16.msra.mxu0 0
        %3076 = vmatpush.bf16.msra.mxu0 0
        %3077 = vmatpush.bf16.msra.mxu0 0
        %3078 = vmatpush.bf16.msra.mxu0 0
        %3079 = vmatpush.bf16.msra.mxu0 0
        %3080 = vmatpush.bf16.msra.mxu0 %v3071
        %3081 = vmatmul.bf16.gmra.mxu0 %v2968
        %v3082 = vpop.f32.mrf.mxu0
        %v3083 = vadd.f32 0.0, %v3082
        %v3084 = vpop.f32.mrf.mxu0
        %v3085 = vadd.f32 0.0, %v3084
        %3086 = vmatmul.bf16.gmra.mxu0 %v2971
        %v3087 = vpop.f32.mrf.mxu0
        %v3088 = vadd.f32 0.0, %v3087
        %v3089 = vpop.f32.mrf.mxu0
        %v3090 = vadd.f32 0.0, %v3089
        %3091 = vdwg.mxu0
        %v3094 = vunpack.c.l.b16 %v2944
        %v3095 = vunpack.c.l.b16 %v2945
        %v3096 = vpack.c.b16 %v3095, %v3094
        %3098 = vmatpush.bf16.msra.mxu0 0
        %3099 = vmatpush.bf16.msra.mxu0 0
        %3100 = vmatpush.bf16.msra.mxu0 0
        %3101 = vmatpush.bf16.msra.mxu0 0
        %3102 = vmatpush.bf16.msra.mxu0 0
        %3103 = vmatpush.bf16.msra.mxu0 0
        %3104 = vmatpush.bf16.msra.mxu0 0
        %3105 = vmatpush.bf16.msra.mxu0 %v3096
        %3106 = vmatmul.bf16.gmra.mxu0 %v2968
        %v3107 = vpop.f32.mrf.mxu0
        %v3108 = vadd.f32 0.0, %v3107
        %v3109 = vpop.f32.mrf.mxu0
        %v3110 = vadd.f32 0.0, %v3109
        %3111 = vmatmul.bf16.gmra.mxu0 %v2971
        %v3112 = vpop.f32.mrf.mxu0
        %v3113 = vadd.f32 0.0, %v3112
        %v3114 = vpop.f32.mrf.mxu0
        %v3115 = vadd.f32 0.0, %v3114
        %3116 = vdwg.mxu0
        %v3119 = vunpack.c.l.b16 %v2946
        %v3120 = vunpack.c.l.b16 %v2947
        %v3121 = vpack.c.b16 %v3120, %v3119
        %3123 = vmatpush.bf16.msra.mxu0 0
        %3124 = vmatpush.bf16.msra.mxu0 0
        %3125 = vmatpush.bf16.msra.mxu0 0
        %3126 = vmatpush.bf16.msra.mxu0 0
        %3127 = vmatpush.bf16.msra.mxu0 0
        %3128 = vmatpush.bf16.msra.mxu0 0
        %3129 = vmatpush.bf16.msra.mxu0 0
        %3130 = vmatpush.bf16.msra.mxu0 %v3121
        %3131 = vmatmul.bf16.gmra.mxu0 %v2968
        %v3132 = vpop.f32.mrf.mxu0
        %v3133 = vadd.f32 0.0, %v3132
        %v3134 = vpop.f32.mrf.mxu0
        %v3135 = vadd.f32 0.0, %v3134
        %3136 = vmatmul.bf16.gmra.mxu0 %v2971
        %v3137 = vpop.f32.mrf.mxu0
        %v3138 = vadd.f32 0.0, %v3137
        %v3139 = vpop.f32.mrf.mxu0
        %v3140 = vadd.f32 0.0, %v3139
        %3141 = vdwg.mxu0
        %v3144 = vunpack.c.l.b16 %v2948
        %v3145 = vunpack.c.l.b16 %v2949
        %v3146 = vpack.c.b16 %v3145, %v3144
        %3148 = vmatpush.bf16.msra.mxu0 0
        %3149 = vmatpush.bf16.msra.mxu0 0
        %3150 = vmatpush.bf16.msra.mxu0 0
        %3151 = vmatpush.bf16.msra.mxu0 0
        %3152 = vmatpush.bf16.msra.mxu0 0
        %3153 = vmatpush.bf16.msra.mxu0 0
        %3154 = vmatpush.bf16.msra.mxu0 0
        %3155 = vmatpush.bf16.msra.mxu0 %v3146
        %3156 = vmatmul.bf16.gmra.mxu0 %v2968
        %v3157 = vpop.f32.mrf.mxu0
        %v3158 = vadd.f32 0.0, %v3157
        %v3159 = vpop.f32.mrf.mxu0
        %v3160 = vadd.f32 0.0, %v3159
        %3161 = vmatmul.bf16.gmra.mxu0 %v2971
        %v3162 = vpop.f32.mrf.mxu0
        %v3163 = vadd.f32 0.0, %v3162
        %v3164 = vpop.f32.mrf.mxu0
        %v3165 = vadd.f32 0.0, %v3164
        %3166 = vdwg.mxu0
        %v3167 = vld [vmem:[%s7] sm:$0xf]
        %v3168 = vld [vmem:[%s7 + $0x4] sm:$0xf]
        %v3169 = vpack.c.bf16 %v2983, %v2983
        %v3170 = vpack.c.bf16 %v2985, %v2985
        %v3171 = vpack.c.bf16 %v2988, %v2988
        %v3172 = vpack.c.bf16 %v2990, %v2990
        %v3173 = vpack.c.bf16 %v3008, %v3008
        %v3174 = vpack.c.bf16 %v3010, %v3010
        %v3175 = vpack.c.bf16 %v3013, %v3013
        %v3176 = vpack.c.bf16 %v3015, %v3015
        %v3177 = vpack.c.bf16 %v3033, %v3033
        %v3178 = vpack.c.bf16 %v3035, %v3035
        %v3179 = vpack.c.bf16 %v3038, %v3038
        %v3180 = vpack.c.bf16 %v3040, %v3040
        %v3181 = vpack.c.bf16 %v3058, %v3058
        %v3182 = vpack.c.bf16 %v3060, %v3060
        %v3183 = vpack.c.bf16 %v3063, %v3063
        %v3184 = vpack.c.bf16 %v3065, %v3065
        %v3185 = vpack.c.bf16 %v3083, %v3083
        %v3186 = vpack.c.bf16 %v3085, %v3085
        %v3187 = vpack.c.bf16 %v3088, %v3088
        %v3188 = vpack.c.bf16 %v3090, %v3090
        %v3189 = vpack.c.bf16 %v3108, %v3108
        %v3190 = vpack.c.bf16 %v3110, %v3110
        %v3191 = vpack.c.bf16 %v3113, %v3113
        %v3192 = vpack.c.bf16 %v3115, %v3115
        %v3193 = vpack.c.bf16 %v3133, %v3133
        %v3194 = vpack.c.bf16 %v3135, %v3135
        %v3195 = vpack.c.bf16 %v3138, %v3138
        %v3196 = vpack.c.bf16 %v3140, %v3140
        %v3197 = vpack.c.bf16 %v3158, %v3158
        %v3198 = vpack.c.bf16 %v3160, %v3160
        %v3199 = vpack.c.bf16 %v3163, %v3163
        %v3200 = vpack.c.bf16 %v3165, %v3165
        %v3205 = vunpack.c.l.b16 %v3169
        %v3206 = vunpack.c.l.b16 %v3170
        %v3207 = vunpack.c.l.b16 %v3171
        %v3208 = vunpack.c.l.b16 %v3172
        %v3209 = vpack.c.b16 %v3206, %v3205
        %v3210 = vpack.c.b16 %v3208, %v3207
        %v3213 = vunpack.c.l.b16 %v3167
        %v3214 = vunpack.c.l.b16 %v3168
        %v3215 = vpack.c.b16 %v3214, %v3213
        %v3218 = vsel %vm2966, %v3209, 0
        %v3221 = vsel %vm2966, %v3210, 0
        %3223 = vmatpush.bf16.msra.mxu0 0
        %3224 = vmatpush.bf16.msra.mxu0 0
        %3225 = vmatpush.bf16.msra.mxu0 0
        %3226 = vmatpush.bf16.msra.mxu0 0
        %3227 = vmatpush.bf16.msra.mxu0 0
        %3228 = vmatpush.bf16.msra.mxu0 0
        %3229 = vmatpush.bf16.msra.mxu0 0
        %3230 = vmatpush.bf16.msra.mxu0 %v3215
        %3231 = vmatmul.bf16.gmra.mxu0 %v3218
        %v3232 = vpop.f32.mrf.mxu0
        %v3233 = vadd.f32 0.0, %v3232
        %v3234 = vpop.f32.mrf.mxu0
        %v3235 = vadd.f32 0.0, %v3234
        %3236 = vmatmul.bf16.gmra.mxu0 %v3221
        %v3237 = vpop.f32.mrf.mxu0
        %v3238 = vadd.f32 0.0, %v3237
        %v3239 = vpop.f32.mrf.mxu0
        %v3240 = vadd.f32 0.0, %v3239
        %3241 = vdwg.mxu0
        %v3246 = vunpack.c.l.b16 %v3173
        %v3247 = vunpack.c.l.b16 %v3174
        %v3248 = vunpack.c.l.b16 %v3175
        %v3249 = vunpack.c.l.b16 %v3176
        %v3250 = vpack.c.b16 %v3247, %v3246
        %v3251 = vpack.c.b16 %v3249, %v3248
        %v3253 = vsel %vm2966, %v3250, 0
        %v3256 = vsel %vm2966, %v3251, 0
        %3258 = vmatpush.bf16.msra.mxu0 0
        %3259 = vmatpush.bf16.msra.mxu0 0
        %3260 = vmatpush.bf16.msra.mxu0 0
        %3261 = vmatpush.bf16.msra.mxu0 0
        %3262 = vmatpush.bf16.msra.mxu0 0
        %3263 = vmatpush.bf16.msra.mxu0 0
        %3264 = vmatpush.bf16.msra.mxu0 0
        %3265 = vmatpush.bf16.msra.mxu0 %v3215
        %3266 = vmatmul.bf16.gmra.mxu0 %v3253
        %v3267 = vpop.f32.mrf.mxu0
        %v3268 = vadd.f32 0.0, %v3267
        %v3269 = vpop.f32.mrf.mxu0
        %v3270 = vadd.f32 0.0, %v3269
        %3271 = vmatmul.bf16.gmra.mxu0 %v3256
        %v3272 = vpop.f32.mrf.mxu0
        %v3273 = vadd.f32 0.0, %v3272
        %v3274 = vpop.f32.mrf.mxu0
        %v3275 = vadd.f32 0.0, %v3274
        %3276 = vdwg.mxu0
        %v3281 = vunpack.c.l.b16 %v3177
        %v3282 = vunpack.c.l.b16 %v3178
        %v3283 = vunpack.c.l.b16 %v3179
        %v3284 = vunpack.c.l.b16 %v3180
        %v3285 = vpack.c.b16 %v3282, %v3281
        %v3286 = vpack.c.b16 %v3284, %v3283
        %v3288 = vsel %vm2966, %v3285, 0
        %v3291 = vsel %vm2966, %v3286, 0
        %3293 = vmatpush.bf16.msra.mxu0 0
        %3294 = vmatpush.bf16.msra.mxu0 0
        %3295 = vmatpush.bf16.msra.mxu0 0
        %3296 = vmatpush.bf16.msra.mxu0 0
        %3297 = vmatpush.bf16.msra.mxu0 0
        %3298 = vmatpush.bf16.msra.mxu0 0
        %3299 = vmatpush.bf16.msra.mxu0 0
        %3300 = vmatpush.bf16.msra.mxu0 %v3215
        %3301 = vmatmul.bf16.gmra.mxu0 %v3288
        %v3302 = vpop.f32.mrf.mxu0
        %v3303 = vadd.f32 0.0, %v3302
        %v3304 = vpop.f32.mrf.mxu0
        %v3305 = vadd.f32 0.0, %v3304
        %3306 = vmatmul.bf16.gmra.mxu0 %v3291
        %v3307 = vpop.f32.mrf.mxu0
        %v3308 = vadd.f32 0.0, %v3307
        %v3309 = vpop.f32.mrf.mxu0
        %v3310 = vadd.f32 0.0, %v3309
        %3311 = vdwg.mxu0
        %v3316 = vunpack.c.l.b16 %v3181
        %v3317 = vunpack.c.l.b16 %v3182
        %v3318 = vunpack.c.l.b16 %v3183
        %v3319 = vunpack.c.l.b16 %v3184
        %v3320 = vpack.c.b16 %v3317, %v3316
        %v3321 = vpack.c.b16 %v3319, %v3318
        %v3323 = vsel %vm2966, %v3320, 0
        %v3326 = vsel %vm2966, %v3321, 0
        %3328 = vmatpush.bf16.msra.mxu0 0
        %3329 = vmatpush.bf16.msra.mxu0 0
        %3330 = vmatpush.bf16.msra.mxu0 0
        %3331 = vmatpush.bf16.msra.mxu0 0
        %3332 = vmatpush.bf16.msra.mxu0 0
        %3333 = vmatpush.bf16.msra.mxu0 0
        %3334 = vmatpush.bf16.msra.mxu0 0
        %3335 = vmatpush.bf16.msra.mxu0 %v3215
        %3336 = vmatmul.bf16.gmra.mxu0 %v3323
        %v3337 = vpop.f32.mrf.mxu0
        %v3338 = vadd.f32 0.0, %v3337
        %v3339 = vpop.f32.mrf.mxu0
        %v3340 = vadd.f32 0.0, %v3339
        %3341 = vmatmul.bf16.gmra.mxu0 %v3326
        %v3342 = vpop.f32.mrf.mxu0
        %v3343 = vadd.f32 0.0, %v3342
        %v3344 = vpop.f32.mrf.mxu0
        %v3345 = vadd.f32 0.0, %v3344
        %3346 = vdwg.mxu0
        %v3351 = vunpack.c.l.b16 %v3185
        %v3352 = vunpack.c.l.b16 %v3186
        %v3353 = vunpack.c.l.b16 %v3187
        %v3354 = vunpack.c.l.b16 %v3188
        %v3355 = vpack.c.b16 %v3352, %v3351
        %v3356 = vpack.c.b16 %v3354, %v3353
        %v3358 = vsel %vm2966, %v3355, 0
        %v3361 = vsel %vm2966, %v3356, 0
        %3363 = vmatpush.bf16.msra.mxu0 0
        %3364 = vmatpush.bf16.msra.mxu0 0
        %3365 = vmatpush.bf16.msra.mxu0 0
        %3366 = vmatpush.bf16.msra.mxu0 0
        %3367 = vmatpush.bf16.msra.mxu0 0
        %3368 = vmatpush.bf16.msra.mxu0 0
        %3369 = vmatpush.bf16.msra.mxu0 0
        %3370 = vmatpush.bf16.msra.mxu0 %v3215
        %3371 = vmatmul.bf16.gmra.mxu0 %v3358
        %v3372 = vpop.f32.mrf.mxu0
        %v3373 = vadd.f32 0.0, %v3372
        %v3374 = vpop.f32.mrf.mxu0
        %v3375 = vadd.f32 0.0, %v3374
        %3376 = vmatmul.bf16.gmra.mxu0 %v3361
        %v3377 = vpop.f32.mrf.mxu0
        %v3378 = vadd.f32 0.0, %v3377
        %v3379 = vpop.f32.mrf.mxu0
        %v3380 = vadd.f32 0.0, %v3379
        %3381 = vdwg.mxu0
        %v3386 = vunpack.c.l.b16 %v3189
        %v3387 = vunpack.c.l.b16 %v3190
        %v3388 = vunpack.c.l.b16 %v3191
        %v3389 = vunpack.c.l.b16 %v3192
        %v3390 = vpack.c.b16 %v3387, %v3386
        %v3391 = vpack.c.b16 %v3389, %v3388
        %v3393 = vsel %vm2966, %v3390, 0
        %v3396 = vsel %vm2966, %v3391, 0
        %3398 = vmatpush.bf16.msra.mxu0 0
        %3399 = vmatpush.bf16.msra.mxu0 0
        %3400 = vmatpush.bf16.msra.mxu0 0
        %3401 = vmatpush.bf16.msra.mxu0 0
        %3402 = vmatpush.bf16.msra.mxu0 0
        %3403 = vmatpush.bf16.msra.mxu0 0
        %3404 = vmatpush.bf16.msra.mxu0 0
        %3405 = vmatpush.bf16.msra.mxu0 %v3215
        %3406 = vmatmul.bf16.gmra.mxu0 %v3393
        %v3407 = vpop.f32.mrf.mxu0
        %v3408 = vadd.f32 0.0, %v3407
        %v3409 = vpop.f32.mrf.mxu0
        %v3410 = vadd.f32 0.0, %v3409
        %3411 = vmatmul.bf16.gmra.mxu0 %v3396
        %v3412 = vpop.f32.mrf.mxu0
        %v3413 = vadd.f32 0.0, %v3412
        %v3414 = vpop.f32.mrf.mxu0
        %v3415 = vadd.f32 0.0, %v3414
        %3416 = vdwg.mxu0
        %v3421 = vunpack.c.l.b16 %v3193
        %v3422 = vunpack.c.l.b16 %v3194
        %v3423 = vunpack.c.l.b16 %v3195
        %v3424 = vunpack.c.l.b16 %v3196
        %v3425 = vpack.c.b16 %v3422, %v3421
        %v3426 = vpack.c.b16 %v3424, %v3423
        %v3428 = vsel %vm2966, %v3425, 0
        %v3431 = vsel %vm2966, %v3426, 0
        %3433 = vmatpush.bf16.msra.mxu0 0
        %3434 = vmatpush.bf16.msra.mxu0 0
        %3435 = vmatpush.bf16.msra.mxu0 0
        %3436 = vmatpush.bf16.msra.mxu0 0
        %3437 = vmatpush.bf16.msra.mxu0 0
        %3438 = vmatpush.bf16.msra.mxu0 0
        %3439 = vmatpush.bf16.msra.mxu0 0
        %3440 = vmatpush.bf16.msra.mxu0 %v3215
        %3441 = vmatmul.bf16.gmra.mxu0 %v3428
        %v3442 = vpop.f32.mrf.mxu0
        %v3443 = vadd.f32 0.0, %v3442
        %v3444 = vpop.f32.mrf.mxu0
        %v3445 = vadd.f32 0.0, %v3444
        %3446 = vmatmul.bf16.gmra.mxu0 %v3431
        %v3447 = vpop.f32.mrf.mxu0
        %v3448 = vadd.f32 0.0, %v3447
        %v3449 = vpop.f32.mrf.mxu0
        %v3450 = vadd.f32 0.0, %v3449
        %3451 = vdwg.mxu0
        %v3456 = vunpack.c.l.b16 %v3197
        %v3457 = vunpack.c.l.b16 %v3198
        %v3458 = vunpack.c.l.b16 %v3199
        %v3459 = vunpack.c.l.b16 %v3200
        %v3460 = vpack.c.b16 %v3457, %v3456
        %v3461 = vpack.c.b16 %v3459, %v3458
        %v3463 = vsel %vm2966, %v3460, 0
        %v3466 = vsel %vm2966, %v3461, 0
        %3468 = vmatpush.bf16.msra.mxu0 0
        %3469 = vmatpush.bf16.msra.mxu0 0
        %3470 = vmatpush.bf16.msra.mxu0 0
        %3471 = vmatpush.bf16.msra.mxu0 0
        %3472 = vmatpush.bf16.msra.mxu0 0
        %3473 = vmatpush.bf16.msra.mxu0 0
        %3474 = vmatpush.bf16.msra.mxu0 0
        %3475 = vmatpush.bf16.msra.mxu0 %v3215
        %3476 = vmatmul.bf16.gmra.mxu0 %v3463
        %v3477 = vpop.f32.mrf.mxu0
        %v3478 = vadd.f32 0.0, %v3477
        %v3479 = vpop.f32.mrf.mxu0
        %v3480 = vadd.f32 0.0, %v3479
        %3481 = vmatmul.bf16.gmra.mxu0 %v3466
        %v3482 = vpop.f32.mrf.mxu0
        %v3483 = vadd.f32 0.0, %v3482
        %v3484 = vpop.f32.mrf.mxu0
        %v3485 = vadd.f32 0.0, %v3484
        %3486 = vdwg.mxu0
        %vm3487 = vcmask 261120
        %3488 = vst.msk [vmem:[#allocation4] sm:$0xff] %vm3487, %v3233
        %3489 = vst.msk [vmem:[#allocation4 + $0x8] sm:$0xff] %vm3487, %v3235
        %3490 = vst.msk [vmem:[#allocation4 + $0x10] sm:$0xff] %vm3487, %v3238
        %3491 = vst.msk [vmem:[#allocation4 + $0x18] sm:$0xff] %vm3487, %v3240
        %3492 = vst.msk [vmem:[#allocation4 + $0x20] sm:$0xff] %vm3487, %v3268
        %3493 = vst.msk [vmem:[#allocation4 + $0x28] sm:$0xff] %vm3487, %v3270
        %3494 = vst.msk [vmem:[#allocation4 + $0x30] sm:$0xff] %vm3487, %v3273
        %3495 = vst.msk [vmem:[#allocation4 + $0x38] sm:$0xff] %vm3487, %v3275
        %3496 = vst.msk [vmem:[#allocation4 + $0x40] sm:$0xff] %vm3487, %v3303
        %3497 = vst.msk [vmem:[#allocation4 + $0x48] sm:$0xff] %vm3487, %v3305
        %3498 = vst.msk [vmem:[#allocation4 + $0x50] sm:$0xff] %vm3487, %v3308
        %3499 = vst.msk [vmem:[#allocation4 + $0x58] sm:$0xff] %vm3487, %v3310
        %3500 = vst.msk [vmem:[#allocation4 + $0x60] sm:$0xff] %vm3487, %v3338
        %3501 = vst.msk [vmem:[#allocation4 + $0x68] sm:$0xff] %vm3487, %v3340
        %3502 = vst.msk [vmem:[#allocation4 + $0x70] sm:$0xff] %vm3487, %v3343
        %3503 = vst.msk [vmem:[#allocation4 + $0x78] sm:$0xff] %vm3487, %v3345
        %3504 = vst.msk [vmem:[#allocation4 + $0x80] sm:$0xff] %vm3487, %v3373
        %3505 = vst.msk [vmem:[#allocation4 + $0x88] sm:$0xff] %vm3487, %v3375
        %3506 = vst.msk [vmem:[#allocation4 + $0x90] sm:$0xff] %vm3487, %v3378
        %3507 = vst.msk [vmem:[#allocation4 + $0x98] sm:$0xff] %vm3487, %v3380
        %3508 = vst.msk [vmem:[#allocation4 + $0xa0] sm:$0xff] %vm3487, %v3408
        %3509 = vst.msk [vmem:[#allocation4 + $0xa8] sm:$0xff] %vm3487, %v3410
        %3510 = vst.msk [vmem:[#allocation4 + $0xb0] sm:$0xff] %vm3487, %v3413
        %3511 = vst.msk [vmem:[#allocation4 + $0xb8] sm:$0xff] %vm3487, %v3415
        %3512 = vst.msk [vmem:[#allocation4 + $0xc0] sm:$0xff] %vm3487, %v3443
        %3513 = vst.msk [vmem:[#allocation4 + $0xc8] sm:$0xff] %vm3487, %v3445
        %3514 = vst.msk [vmem:[#allocation4 + $0xd0] sm:$0xff] %vm3487, %v3448
        %3515 = vst.msk [vmem:[#allocation4 + $0xd8] sm:$0xff] %vm3487, %v3450
        %3516 = vst.msk [vmem:[#allocation4 + $0xe0] sm:$0xff] %vm3487, %v3478
        %3517 = vst.msk [vmem:[#allocation4 + $0xe8] sm:$0xff] %vm3487, %v3480
        %3518 = vst.msk [vmem:[#allocation4 + $0xf0] sm:$0xff] %vm3487, %v3483
        %3519 = vst.msk [vmem:[#allocation4 + $0xf8] sm:$0xff] %vm3487, %v3485
        %v3520 = vld [vmem:[%s401] sm:$0xf]
        %v3521 = vld [vmem:[%s389] sm:$0x77]
        %v3522 = vld [vmem:[%s389 + $0x8] sm:$0x77]
        %v3523 = vld [vmem:[%s389 + $0x10] sm:$0x77]
        %v3524 = vld [vmem:[%s389 + $0x18] sm:$0x77]
        %v3525 = vld [vmem:[%s405] sm:$0xff]
        %3527 = vset.pattern.permute.xlu0 0
        %3528 = vperm.xlu0 %3527, %v3525
        %v3529 = vpop.permute.xlu0 %3528
        %v3535 = vunpack.c.l.b16 %v3521
        %v3536 = vunpack.c.h.b16 %v3521
        %v3537 = vunpack.c.l.b16 %v3522
        %v3538 = vunpack.c.h.b16 %v3522
        %v3539 = vunpack.c.l.b16 %v3523
        %v3540 = vunpack.c.h.b16 %v3523
        %v3541 = vunpack.c.l.b16 %v3524
        %v3542 = vunpack.c.h.b16 %v3524
        %v3543 = vpack.c.b16 %v3535, %v3535
        %v3544 = vpack.c.b16 %v3536, %v3536
        %v3545 = vpack.c.b16 %v3537, %v3537
        %v3546 = vpack.c.b16 %v3538, %v3538
        %v3547 = vpack.c.b16 %v3539, %v3539
        %v3548 = vpack.c.b16 %v3540, %v3540
        %v3549 = vpack.c.b16 %v3541, %v3541
        %v3550 = vpack.c.b16 %v3542, %v3542
        %vm3551 = vcmask 48128
        %v3553 = vsel %vm3551, %v3520, 0
        %vm3555 = vcmask 1042432
        %v3557 = vsel %vm3555, %v3543, 0
        %v3560 = vsel %vm3555, %v3544, 0
        %v3563 = vsel %vm3555, %v3545, 0
        %v3566 = vsel %vm3555, %v3546, 0
        %v3569 = vsel %vm3555, %v3547, 0
        %v3572 = vsel %vm3555, %v3548, 0
        %v3575 = vsel %vm3555, %v3549, 0
        %v3578 = vsel %vm3555, %v3550, 0
        %3580 = vmatpush.bf16.msra.mxu0 0
        %3581 = vmatpush.bf16.msra.mxu0 0
        %3582 = vmatpush.bf16.msra.mxu0 0
        %3583 = vmatpush.bf16.msra.mxu0 0
        %3584 = vmatpush.bf16.msra.mxu0 0
        %3585 = vmatpush.bf16.msra.mxu0 0
        %3586 = vmatpush.bf16.msra.mxu0 0
        %3587 = vmatpush.bf16.msra.mxu0 %v3557
        %3588 = vmatmul.bf16.gmra.mxu0 %v3553
        %v3589 = vpop.f32.mrf.mxu0
        %v3590 = vadd.f32 %v3529, %v3589
        %v3591 = vpop.f32.mrf.mxu0
        %3592 = vdwg.mxu0
        %3593 = vmatpush.bf16.msra.mxu0 0
        %3594 = vmatpush.bf16.msra.mxu0 0
        %3595 = vmatpush.bf16.msra.mxu0 0
        %3596 = vmatpush.bf16.msra.mxu0 0
        %3597 = vmatpush.bf16.msra.mxu0 0
        %3598 = vmatpush.bf16.msra.mxu0 0
        %3599 = vmatpush.bf16.msra.mxu0 0
        %3600 = vmatpush.bf16.msra.mxu0 %v3560
        %3601 = vmatmul.bf16.gmra.mxu0 %v3553
        %v3602 = vpop.f32.mrf.mxu0
        %v3603 = vadd.f32 %v3529, %v3602
        %v3604 = vpop.f32.mrf.mxu0
        %3605 = vdwg.mxu0
        %3606 = vmatpush.bf16.msra.mxu0 0
        %3607 = vmatpush.bf16.msra.mxu0 0
        %3608 = vmatpush.bf16.msra.mxu0 0
        %3609 = vmatpush.bf16.msra.mxu0 0
        %3610 = vmatpush.bf16.msra.mxu0 0
        %3611 = vmatpush.bf16.msra.mxu0 0
        %3612 = vmatpush.bf16.msra.mxu0 0
        %3613 = vmatpush.bf16.msra.mxu0 %v3563
        %3614 = vmatmul.bf16.gmra.mxu0 %v3553
        %v3615 = vpop.f32.mrf.mxu0
        %v3616 = vadd.f32 %v3529, %v3615
        %v3617 = vpop.f32.mrf.mxu0
        %3618 = vdwg.mxu0
        %3619 = vmatpush.bf16.msra.mxu0 0
        %3620 = vmatpush.bf16.msra.mxu0 0
        %3621 = vmatpush.bf16.msra.mxu0 0
        %3622 = vmatpush.bf16.msra.mxu0 0
        %3623 = vmatpush.bf16.msra.mxu0 0
        %3624 = vmatpush.bf16.msra.mxu0 0
        %3625 = vmatpush.bf16.msra.mxu0 0
        %3626 = vmatpush.bf16.msra.mxu0 %v3566
        %3627 = vmatmul.bf16.gmra.mxu0 %v3553
        %v3628 = vpop.f32.mrf.mxu0
        %v3629 = vadd.f32 %v3529, %v3628
        %v3630 = vpop.f32.mrf.mxu0
        %3631 = vdwg.mxu0
        %3632 = vmatpush.bf16.msra.mxu0 0
        %3633 = vmatpush.bf16.msra.mxu0 0
        %3634 = vmatpush.bf16.msra.mxu0 0
        %3635 = vmatpush.bf16.msra.mxu0 0
        %3636 = vmatpush.bf16.msra.mxu0 0
        %3637 = vmatpush.bf16.msra.mxu0 0
        %3638 = vmatpush.bf16.msra.mxu0 0
        %3639 = vmatpush.bf16.msra.mxu0 %v3569
        %3640 = vmatmul.bf16.gmra.mxu0 %v3553
        %v3641 = vpop.f32.mrf.mxu0
        %v3642 = vadd.f32 %v3529, %v3641
        %v3643 = vpop.f32.mrf.mxu0
        %3644 = vdwg.mxu0
        %3645 = vmatpush.bf16.msra.mxu0 0
        %3646 = vmatpush.bf16.msra.mxu0 0
        %3647 = vmatpush.bf16.msra.mxu0 0
        %3648 = vmatpush.bf16.msra.mxu0 0
        %3649 = vmatpush.bf16.msra.mxu0 0
        %3650 = vmatpush.bf16.msra.mxu0 0
        %3651 = vmatpush.bf16.msra.mxu0 0
        %3652 = vmatpush.bf16.msra.mxu0 %v3572
        %3653 = vmatmul.bf16.gmra.mxu0 %v3553
        %v3654 = vpop.f32.mrf.mxu0
        %v3655 = vadd.f32 %v3529, %v3654
        %v3656 = vpop.f32.mrf.mxu0
        %3657 = vdwg.mxu0
        %3658 = vmatpush.bf16.msra.mxu0 0
        %3659 = vmatpush.bf16.msra.mxu0 0
        %3660 = vmatpush.bf16.msra.mxu0 0
        %3661 = vmatpush.bf16.msra.mxu0 0
        %3662 = vmatpush.bf16.msra.mxu0 0
        %3663 = vmatpush.bf16.msra.mxu0 0
        %3664 = vmatpush.bf16.msra.mxu0 0
        %3665 = vmatpush.bf16.msra.mxu0 %v3575
        %3666 = vmatmul.bf16.gmra.mxu0 %v3553
        %v3667 = vpop.f32.mrf.mxu0
        %v3668 = vadd.f32 %v3529, %v3667
        %v3669 = vpop.f32.mrf.mxu0
        %3670 = vdwg.mxu0
        %3671 = vmatpush.bf16.msra.mxu0 0
        %3672 = vmatpush.bf16.msra.mxu0 0
        %3673 = vmatpush.bf16.msra.mxu0 0
        %3674 = vmatpush.bf16.msra.mxu0 0
        %3675 = vmatpush.bf16.msra.mxu0 0
        %3676 = vmatpush.bf16.msra.mxu0 0
        %3677 = vmatpush.bf16.msra.mxu0 0
        %3678 = vmatpush.bf16.msra.mxu0 %v3578
        %3679 = vmatmul.bf16.gmra.mxu0 %v3553
        %v3680 = vpop.f32.mrf.mxu0
        %v3681 = vadd.f32 %v3529, %v3680
        %v3682 = vpop.f32.mrf.mxu0
        %3683 = vdwg.mxu0
        %v3684 = vld [vmem:[#allocation4] sm:$0x1]
        %v3685 = vld [vmem:[#allocation4 + $0x20] sm:$0x1]
        %v3686 = vld [vmem:[#allocation4 + $0x40] sm:$0x1]
        %v3687 = vld [vmem:[#allocation4 + $0x60] sm:$0x1]
        %v3688 = vld [vmem:[#allocation4 + $0x80] sm:$0x1]
        %v3689 = vld [vmem:[#allocation4 + $0xa0] sm:$0x1]
        %v3690 = vld [vmem:[#allocation4 + $0xc0] sm:$0x1]
        %v3691 = vld [vmem:[#allocation4 + $0xe0] sm:$0x1]
        %v3693 = vrot.slane %v3590, 1
        %v3694 = vrot.slane %v3590, 2
        %v3695 = vrot.slane %v3590, 3
        %v3696 = vrot.slane %v3590, 4
        %v3697 = vrot.slane %v3590, 5
        %v3698 = vrot.slane %v3590, 6
        %v3699 = vrot.slane %v3590, 7
        %v3708 = vmul.f32 %v3684, %v3590
        %v3709 = vmul.f32 %v3685, %v3693
        %v3710 = vmul.f32 %v3686, %v3694
        %v3711 = vmul.f32 %v3687, %v3695
        %v3712 = vmul.f32 %v3688, %v3696
        %v3713 = vmul.f32 %v3689, %v3697
        %v3714 = vmul.f32 %v3690, %v3698
        %v3715 = vmul.f32 %v3691, %v3699
        %v3724 = vrot.slane %v3709, 7
        %v3725 = vsel %vm1104, %v3724, %v3708
        %v3726 = vrot.slane %v3710, 6
        %v3727 = vsel %vm1108, %v3726, %v3725
        %v3728 = vrot.slane %v3711, 5
        %v3729 = vsel %vm1112, %v3728, %v3727
        %v3730 = vrot.slane %v3712, 4
        %vm3731 = vcmask 1044484
        %v3732 = vsel %vm3731, %v3730, %v3729
        %v3733 = vrot.slane %v3713, 3
        %vm3734 = vcmask 1045509
        %v3735 = vsel %vm3734, %v3733, %v3732
        %v3736 = vrot.slane %v3714, 2
        %vm3737 = vcmask 1046534
        %v3738 = vsel %vm3737, %v3736, %v3735
        %v3739 = vrot.slane %v3715, 1
        %vm3740 = vcmask 1047559
        %v3741 = vsel %vm3740, %v3739, %v3738
        %3743 = vst.msk [vmem:[%s379] sm:$0xff] %vm3487, %v3741
        %v3744 = vld [vmem:[#allocation4 + $0x1] sm:$0x1]
        %v3745 = vld [vmem:[#allocation4 + $0x21] sm:$0x1]
        %v3746 = vld [vmem:[#allocation4 + $0x41] sm:$0x1]
        %v3747 = vld [vmem:[#allocation4 + $0x61] sm:$0x1]
        %v3748 = vld [vmem:[#allocation4 + $0x81] sm:$0x1]
        %v3749 = vld [vmem:[#allocation4 + $0xa1] sm:$0x1]
        %v3750 = vld [vmem:[#allocation4 + $0xc1] sm:$0x1]
        %v3751 = vld [vmem:[#allocation4 + $0xe1] sm:$0x1]
        %3752 = vrot.lane.b32.xlu0 %v3590, 96
        %v3753 = vpop.permute.xlu0 %3752
        %3754 = vrot.lane.b32.xlu0 %v3693, 96
        %v3755 = vpop.permute.xlu0 %3754
        %3756 = vrot.lane.b32.xlu0 %v3694, 96
        %v3757 = vpop.permute.xlu0 %3756
        %3758 = vrot.lane.b32.xlu0 %v3695, 96
        %v3759 = vpop.permute.xlu0 %3758
        %3760 = vrot.lane.b32.xlu0 %v3696, 96
        %v3761 = vpop.permute.xlu0 %3760
        %3762 = vrot.lane.b32.xlu0 %v3697, 96
        %v3763 = vpop.permute.xlu0 %3762
        %3764 = vrot.lane.b32.xlu0 %v3698, 96
        %v3765 = vpop.permute.xlu0 %3764
        %3766 = vrot.lane.b32.xlu0 %v3699, 96
        %v3767 = vpop.permute.xlu0 %3766
        %v3776 = vmul.f32 %v3744, %v3753
        %v3777 = vmul.f32 %v3745, %v3755
        %v3778 = vmul.f32 %v3746, %v3757
        %v3779 = vmul.f32 %v3747, %v3759
        %v3780 = vmul.f32 %v3748, %v3761
        %v3781 = vmul.f32 %v3749, %v3763
        %v3782 = vmul.f32 %v3750, %v3765
        %v3783 = vmul.f32 %v3751, %v3767
        %v3792 = vrot.slane %v3777, 7
        %v3793 = vsel %vm1104, %v3792, %v3776
        %v3794 = vrot.slane %v3778, 6
        %v3795 = vsel %vm1108, %v3794, %v3793
        %v3796 = vrot.slane %v3779, 5
        %v3797 = vsel %vm1112, %v3796, %v3795
        %v3798 = vrot.slane %v3780, 4
        %v3799 = vsel %vm3731, %v3798, %v3797
        %v3800 = vrot.slane %v3781, 3
        %v3801 = vsel %vm3734, %v3800, %v3799
        %v3802 = vrot.slane %v3782, 2
        %v3803 = vsel %vm3737, %v3802, %v3801
        %v3804 = vrot.slane %v3783, 1
        %v3805 = vsel %vm3740, %v3804, %v3803
        %3806 = vrot.lane.b32.xlu0 %v3805, 32
        %v3807 = vpop.permute.xlu0 %3806
        %vm3809 = vcmask 523520
        %3810 = vst.msk [vmem:[%s379] sm:$0xff] %vm3809, %v3807
        %v3811 = vld [vmem:[#allocation4 + $0x2] sm:$0x1]
        %v3812 = vld [vmem:[#allocation4 + $0x22] sm:$0x1]
        %v3813 = vld [vmem:[#allocation4 + $0x42] sm:$0x1]
        %v3814 = vld [vmem:[#allocation4 + $0x62] sm:$0x1]
        %v3815 = vld [vmem:[#allocation4 + $0x82] sm:$0x1]
        %v3816 = vld [vmem:[#allocation4 + $0xa2] sm:$0x1]
        %v3817 = vld [vmem:[#allocation4 + $0xc2] sm:$0x1]
        %v3818 = vld [vmem:[#allocation4 + $0xe2] sm:$0x1]
        %3819 = vrot.lane.b32.xlu0 %v3590, 64
        %v3820 = vpop.permute.xlu0 %3819
        %3821 = vrot.lane.b32.xlu0 %v3693, 64
        %v3822 = vpop.permute.xlu0 %3821
        %3823 = vrot.lane.b32.xlu0 %v3694, 64
        %v3824 = vpop.permute.xlu0 %3823
        %3825 = vrot.lane.b32.xlu0 %v3695, 64
        %v3826 = vpop.permute.xlu0 %3825
        %3827 = vrot.lane.b32.xlu0 %v3696, 64
        %v3828 = vpop.permute.xlu0 %3827
        %3829 = vrot.lane.b32.xlu0 %v3697, 64
        %v3830 = vpop.permute.xlu0 %3829
        %3831 = vrot.lane.b32.xlu0 %v3698, 64
        %v3832 = vpop.permute.xlu0 %3831
        %3833 = vrot.lane.b32.xlu0 %v3699, 64
        %v3834 = vpop.permute.xlu0 %3833
        %v3843 = vmul.f32 %v3811, %v3820
        %v3844 = vmul.f32 %v3812, %v3822
        %v3845 = vmul.f32 %v3813, %v3824
        %v3846 = vmul.f32 %v3814, %v3826
        %v3847 = vmul.f32 %v3815, %v3828
        %v3848 = vmul.f32 %v3816, %v3830
        %v3849 = vmul.f32 %v3817, %v3832
        %v3850 = vmul.f32 %v3818, %v3834
        %v3859 = vrot.slane %v3844, 7
        %v3860 = vsel %vm1104, %v3859, %v3843
        %v3861 = vrot.slane %v3845, 6
        %v3862 = vsel %vm1108, %v3861, %v3860
        %v3863 = vrot.slane %v3846, 5
        %v3864 = vsel %vm1112, %v3863, %v3862
        %v3865 = vrot.slane %v3847, 4
        %v3866 = vsel %vm3731, %v3865, %v3864
        %v3867 = vrot.slane %v3848, 3
        %v3868 = vsel %vm3734, %v3867, %v3866
        %v3869 = vrot.slane %v3849, 2
        %v3870 = vsel %vm3737, %v3869, %v3868
        %v3871 = vrot.slane %v3850, 1
        %v3872 = vsel %vm3740, %v3871, %v3870
        %3873 = vrot.lane.b32.xlu0 %v3872, 64
        %v3874 = vpop.permute.xlu0 %3873
        %vm3876 = vcmask 785920
        %3877 = vst.msk [vmem:[%s379] sm:$0xff] %vm3876, %v3874
        %v3878 = vld [vmem:[#allocation4 + $0x3] sm:$0x1]
        %v3879 = vld [vmem:[#allocation4 + $0x23] sm:$0x1]
        %v3880 = vld [vmem:[#allocation4 + $0x43] sm:$0x1]
        %v3881 = vld [vmem:[#allocation4 + $0x63] sm:$0x1]
        %v3882 = vld [vmem:[#allocation4 + $0x83] sm:$0x1]
        %v3883 = vld [vmem:[#allocation4 + $0xa3] sm:$0x1]
        %v3884 = vld [vmem:[#allocation4 + $0xc3] sm:$0x1]
        %v3885 = vld [vmem:[#allocation4 + $0xe3] sm:$0x1]
        %3886 = vrot.lane.b32.xlu0 %v3590, 32
        %v3887 = vpop.permute.xlu0 %3886
        %3888 = vrot.lane.b32.xlu0 %v3693, 32
        %v3889 = vpop.permute.xlu0 %3888
        %3890 = vrot.lane.b32.xlu0 %v3694, 32
        %v3891 = vpop.permute.xlu0 %3890
        %3892 = vrot.lane.b32.xlu0 %v3695, 32
        %v3893 = vpop.permute.xlu0 %3892
        %3894 = vrot.lane.b32.xlu0 %v3696, 32
        %v3895 = vpop.permute.xlu0 %3894
        %3896 = vrot.lane.b32.xlu0 %v3697, 32
        %v3897 = vpop.permute.xlu0 %3896
        %3898 = vrot.lane.b32.xlu0 %v3698, 32
        %v3899 = vpop.permute.xlu0 %3898
        %3900 = vrot.lane.b32.xlu0 %v3699, 32
        %v3901 = vpop.permute.xlu0 %3900
        %v3910 = vmul.f32 %v3878, %v3887
        %v3911 = vmul.f32 %v3879, %v3889
        %v3912 = vmul.f32 %v3880, %v3891
        %v3913 = vmul.f32 %v3881, %v3893
        %v3914 = vmul.f32 %v3882, %v3895
        %v3915 = vmul.f32 %v3883, %v3897
        %v3916 = vmul.f32 %v3884, %v3899
        %v3917 = vmul.f32 %v3885, %v3901
        %v3926 = vrot.slane %v3911, 7
        %v3927 = vsel %vm1104, %v3926, %v3910
        %v3928 = vrot.slane %v3912, 6
        %v3929 = vsel %vm1108, %v3928, %v3927
        %v3930 = vrot.slane %v3913, 5
        %v3931 = vsel %vm1112, %v3930, %v3929
        %v3932 = vrot.slane %v3914, 4
        %v3933 = vsel %vm3731, %v3932, %v3931
        %v3934 = vrot.slane %v3915, 3
        %v3935 = vsel %vm3734, %v3934, %v3933
        %v3936 = vrot.slane %v3916, 2
        %v3937 = vsel %vm3737, %v3936, %v3935
        %v3938 = vrot.slane %v3917, 1
        %v3939 = vsel %vm3740, %v3938, %v3937
        %3940 = vrot.lane.b32.xlu0 %v3939, 96
        %v3941 = vpop.permute.xlu0 %3940
        %vm3943 = vcmask 1048320
        %3944 = vst.msk [vmem:[%s379] sm:$0xff] %vm3943, %v3941
        %v3945 = vld [vmem:[#allocation4 + $0x4] sm:$0x1]
        %v3946 = vld [vmem:[#allocation4 + $0x24] sm:$0x1]
        %v3947 = vld [vmem:[#allocation4 + $0x44] sm:$0x1]
        %v3948 = vld [vmem:[#allocation4 + $0x64] sm:$0x1]
        %v3949 = vld [vmem:[#allocation4 + $0x84] sm:$0x1]
        %v3950 = vld [vmem:[#allocation4 + $0xa4] sm:$0x1]
        %v3951 = vld [vmem:[#allocation4 + $0xc4] sm:$0x1]
        %v3952 = vld [vmem:[#allocation4 + $0xe4] sm:$0x1]
        %v3954 = vrot.slane %v3603, 1
        %v3955 = vrot.slane %v3603, 2
        %v3956 = vrot.slane %v3603, 3
        %v3957 = vrot.slane %v3603, 4
        %v3958 = vrot.slane %v3603, 5
        %v3959 = vrot.slane %v3603, 6
        %v3960 = vrot.slane %v3603, 7
        %v3969 = vmul.f32 %v3945, %v3603
        %v3970 = vmul.f32 %v3946, %v3954
        %v3971 = vmul.f32 %v3947, %v3955
        %v3972 = vmul.f32 %v3948, %v3956
        %v3973 = vmul.f32 %v3949, %v3957
        %v3974 = vmul.f32 %v3950, %v3958
        %v3975 = vmul.f32 %v3951, %v3959
        %v3976 = vmul.f32 %v3952, %v3960
        %v3985 = vrot.slane %v3970, 7
        %v3986 = vsel %vm1104, %v3985, %v3969
        %v3987 = vrot.slane %v3971, 6
        %v3988 = vsel %vm1108, %v3987, %v3986
        %v3989 = vrot.slane %v3972, 5
        %v3990 = vsel %vm1112, %v3989, %v3988
        %v3991 = vrot.slane %v3973, 4
        %v3992 = vsel %vm3731, %v3991, %v3990
        %v3993 = vrot.slane %v3974, 3
        %v3994 = vsel %vm3734, %v3993, %v3992
        %v3995 = vrot.slane %v3975, 2
        %v3996 = vsel %vm3737, %v3995, %v3994
        %v3997 = vrot.slane %v3976, 1
        %v3998 = vsel %vm3740, %v3997, %v3996
        %4000 = vst.msk [vmem:[%s379 + $0x8] sm:$0xff] %vm3487, %v3998
        %v4001 = vld [vmem:[#allocation4 + $0x5] sm:$0x1]
        %v4002 = vld [vmem:[#allocation4 + $0x25] sm:$0x1]
        %v4003 = vld [vmem:[#allocation4 + $0x45] sm:$0x1]
        %v4004 = vld [vmem:[#allocation4 + $0x65] sm:$0x1]
        %v4005 = vld [vmem:[#allocation4 + $0x85] sm:$0x1]
        %v4006 = vld [vmem:[#allocation4 + $0xa5] sm:$0x1]
        %v4007 = vld [vmem:[#allocation4 + $0xc5] sm:$0x1]
        %v4008 = vld [vmem:[#allocation4 + $0xe5] sm:$0x1]
        %4009 = vrot.lane.b32.xlu0 %v3603, 96
        %v4010 = vpop.permute.xlu0 %4009
        %4011 = vrot.lane.b32.xlu0 %v3954, 96
        %v4012 = vpop.permute.xlu0 %4011
        %4013 = vrot.lane.b32.xlu0 %v3955, 96
        %v4014 = vpop.permute.xlu0 %4013
        %4015 = vrot.lane.b32.xlu0 %v3956, 96
        %v4016 = vpop.permute.xlu0 %4015
        %4017 = vrot.lane.b32.xlu0 %v3957, 96
        %v4018 = vpop.permute.xlu0 %4017
        %4019 = vrot.lane.b32.xlu0 %v3958, 96
        %v4020 = vpop.permute.xlu0 %4019
        %4021 = vrot.lane.b32.xlu0 %v3959, 96
        %v4022 = vpop.permute.xlu0 %4021
        %4023 = vrot.lane.b32.xlu0 %v3960, 96
        %v4024 = vpop.permute.xlu0 %4023
        %v4033 = vmul.f32 %v4001, %v4010
        %v4034 = vmul.f32 %v4002, %v4012
        %v4035 = vmul.f32 %v4003, %v4014
        %v4036 = vmul.f32 %v4004, %v4016
        %v4037 = vmul.f32 %v4005, %v4018
        %v4038 = vmul.f32 %v4006, %v4020
        %v4039 = vmul.f32 %v4007, %v4022
        %v4040 = vmul.f32 %v4008, %v4024
        %v4049 = vrot.slane %v4034, 7
        %v4050 = vsel %vm1104, %v4049, %v4033
        %v4051 = vrot.slane %v4035, 6
        %v4052 = vsel %vm1108, %v4051, %v4050
        %v4053 = vrot.slane %v4036, 5
        %v4054 = vsel %vm1112, %v4053, %v4052
        %v4055 = vrot.slane %v4037, 4
        %v4056 = vsel %vm3731, %v4055, %v4054
        %v4057 = vrot.slane %v4038, 3
        %v4058 = vsel %vm3734, %v4057, %v4056
        %v4059 = vrot.slane %v4039, 2
        %v4060 = vsel %vm3737, %v4059, %v4058
        %v4061 = vrot.slane %v4040, 1
        %v4062 = vsel %vm3740, %v4061, %v4060
        %4063 = vrot.lane.b32.xlu0 %v4062, 32
        %v4064 = vpop.permute.xlu0 %4063
        %4066 = vst.msk [vmem:[%s379 + $0x8] sm:$0xff] %vm3809, %v4064
        %v4067 = vld [vmem:[#allocation4 + $0x6] sm:$0x1]
        %v4068 = vld [vmem:[#allocation4 + $0x26] sm:$0x1]
        %v4069 = vld [vmem:[#allocation4 + $0x46] sm:$0x1]
        %v4070 = vld [vmem:[#allocation4 + $0x66] sm:$0x1]
        %v4071 = vld [vmem:[#allocation4 + $0x86] sm:$0x1]
        %v4072 = vld [vmem:[#allocation4 + $0xa6] sm:$0x1]
        %v4073 = vld [vmem:[#allocation4 + $0xc6] sm:$0x1]
        %v4074 = vld [vmem:[#allocation4 + $0xe6] sm:$0x1]
        %4075 = vrot.lane.b32.xlu0 %v3603, 64
        %v4076 = vpop.permute.xlu0 %4075
        %4077 = vrot.lane.b32.xlu0 %v3954, 64
        %v4078 = vpop.permute.xlu0 %4077
        %4079 = vrot.lane.b32.xlu0 %v3955, 64
        %v4080 = vpop.permute.xlu0 %4079
        %4081 = vrot.lane.b32.xlu0 %v3956, 64
        %v4082 = vpop.permute.xlu0 %4081
        %4083 = vrot.lane.b32.xlu0 %v3957, 64
        %v4084 = vpop.permute.xlu0 %4083
        %4085 = vrot.lane.b32.xlu0 %v3958, 64
        %v4086 = vpop.permute.xlu0 %4085
        %4087 = vrot.lane.b32.xlu0 %v3959, 64
        %v4088 = vpop.permute.xlu0 %4087
        %4089 = vrot.lane.b32.xlu0 %v3960, 64
        %v4090 = vpop.permute.xlu0 %4089
        %v4099 = vmul.f32 %v4067, %v4076
        %v4100 = vmul.f32 %v4068, %v4078
        %v4101 = vmul.f32 %v4069, %v4080
        %v4102 = vmul.f32 %v4070, %v4082
        %v4103 = vmul.f32 %v4071, %v4084
        %v4104 = vmul.f32 %v4072, %v4086
        %v4105 = vmul.f32 %v4073, %v4088
        %v4106 = vmul.f32 %v4074, %v4090
        %v4115 = vrot.slane %v4100, 7
        %v4116 = vsel %vm1104, %v4115, %v4099
        %v4117 = vrot.slane %v4101, 6
        %v4118 = vsel %vm1108, %v4117, %v4116
        %v4119 = vrot.slane %v4102, 5
        %v4120 = vsel %vm1112, %v4119, %v4118
        %v4121 = vrot.slane %v4103, 4
        %v4122 = vsel %vm3731, %v4121, %v4120
        %v4123 = vrot.slane %v4104, 3
        %v4124 = vsel %vm3734, %v4123, %v4122
        %v4125 = vrot.slane %v4105, 2
        %v4126 = vsel %vm3737, %v4125, %v4124
        %v4127 = vrot.slane %v4106, 1
        %v4128 = vsel %vm3740, %v4127, %v4126
        %4129 = vrot.lane.b32.xlu0 %v4128, 64
        %v4130 = vpop.permute.xlu0 %4129
        %4132 = vst.msk [vmem:[%s379 + $0x8] sm:$0xff] %vm3876, %v4130
        %v4133 = vld [vmem:[#allocation4 + $0x7] sm:$0x1]
        %v4134 = vld [vmem:[#allocation4 + $0x27] sm:$0x1]
        %v4135 = vld [vmem:[#allocation4 + $0x47] sm:$0x1]
        %v4136 = vld [vmem:[#allocation4 + $0x67] sm:$0x1]
        %v4137 = vld [vmem:[#allocation4 + $0x87] sm:$0x1]
        %v4138 = vld [vmem:[#allocation4 + $0xa7] sm:$0x1]
        %v4139 = vld [vmem:[#allocation4 + $0xc7] sm:$0x1]
        %v4140 = vld [vmem:[#allocation4 + $0xe7] sm:$0x1]
        %4141 = vrot.lane.b32.xlu0 %v3603, 32
        %v4142 = vpop.permute.xlu0 %4141
        %4143 = vrot.lane.b32.xlu0 %v3954, 32
        %v4144 = vpop.permute.xlu0 %4143
        %4145 = vrot.lane.b32.xlu0 %v3955, 32
        %v4146 = vpop.permute.xlu0 %4145
        %4147 = vrot.lane.b32.xlu0 %v3956, 32
        %v4148 = vpop.permute.xlu0 %4147
        %4149 = vrot.lane.b32.xlu0 %v3957, 32
        %v4150 = vpop.permute.xlu0 %4149
        %4151 = vrot.lane.b32.xlu0 %v3958, 32
        %v4152 = vpop.permute.xlu0 %4151
        %4153 = vrot.lane.b32.xlu0 %v3959, 32
        %v4154 = vpop.permute.xlu0 %4153
        %4155 = vrot.lane.b32.xlu0 %v3960, 32
        %v4156 = vpop.permute.xlu0 %4155
        %v4165 = vmul.f32 %v4133, %v4142
        %v4166 = vmul.f32 %v4134, %v4144
        %v4167 = vmul.f32 %v4135, %v4146
        %v4168 = vmul.f32 %v4136, %v4148
        %v4169 = vmul.f32 %v4137, %v4150
        %v4170 = vmul.f32 %v4138, %v4152
        %v4171 = vmul.f32 %v4139, %v4154
        %v4172 = vmul.f32 %v4140, %v4156
        %v4181 = vrot.slane %v4166, 7
        %v4182 = vsel %vm1104, %v4181, %v4165
        %v4183 = vrot.slane %v4167, 6
        %v4184 = vsel %vm1108, %v4183, %v4182
        %v4185 = vrot.slane %v4168, 5
        %v4186 = vsel %vm1112, %v4185, %v4184
        %v4187 = vrot.slane %v4169, 4
        %v4188 = vsel %vm3731, %v4187, %v4186
        %v4189 = vrot.slane %v4170, 3
        %v4190 = vsel %vm3734, %v4189, %v4188
        %v4191 = vrot.slane %v4171, 2
        %v4192 = vsel %vm3737, %v4191, %v4190
        %v4193 = vrot.slane %v4172, 1
        %v4194 = vsel %vm3740, %v4193, %v4192
        %4195 = vrot.lane.b32.xlu0 %v4194, 96
        %v4196 = vpop.permute.xlu0 %4195
        %4198 = vst.msk [vmem:[%s379 + $0x8] sm:$0xff] %vm3943, %v4196
        %v4199 = vld [vmem:[#allocation4 + $0x8] sm:$0x1]
        %v4200 = vld [vmem:[#allocation4 + $0x28] sm:$0x1]
        %v4201 = vld [vmem:[#allocation4 + $0x48] sm:$0x1]
        %v4202 = vld [vmem:[#allocation4 + $0x68] sm:$0x1]
        %v4203 = vld [vmem:[#allocation4 + $0x88] sm:$0x1]
        %v4204 = vld [vmem:[#allocation4 + $0xa8] sm:$0x1]
        %v4205 = vld [vmem:[#allocation4 + $0xc8] sm:$0x1]
        %v4206 = vld [vmem:[#allocation4 + $0xe8] sm:$0x1]
        %v4208 = vrot.slane %v3616, 1
        %v4209 = vrot.slane %v3616, 2
        %v4210 = vrot.slane %v3616, 3
        %v4211 = vrot.slane %v3616, 4
        %v4212 = vrot.slane %v3616, 5
        %v4213 = vrot.slane %v3616, 6
        %v4214 = vrot.slane %v3616, 7
        %v4223 = vmul.f32 %v4199, %v3616
        %v4224 = vmul.f32 %v4200, %v4208
        %v4225 = vmul.f32 %v4201, %v4209
        %v4226 = vmul.f32 %v4202, %v4210
        %v4227 = vmul.f32 %v4203, %v4211
        %v4228 = vmul.f32 %v4204, %v4212
        %v4229 = vmul.f32 %v4205, %v4213
        %v4230 = vmul.f32 %v4206, %v4214
        %v4239 = vrot.slane %v4224, 7
        %v4240 = vsel %vm1104, %v4239, %v4223
        %v4241 = vrot.slane %v4225, 6
        %v4242 = vsel %vm1108, %v4241, %v4240
        %v4243 = vrot.slane %v4226, 5
        %v4244 = vsel %vm1112, %v4243, %v4242
        %v4245 = vrot.slane %v4227, 4
        %v4246 = vsel %vm3731, %v4245, %v4244
        %v4247 = vrot.slane %v4228, 3
        %v4248 = vsel %vm3734, %v4247, %v4246
        %v4249 = vrot.slane %v4229, 2
        %v4250 = vsel %vm3737, %v4249, %v4248
        %v4251 = vrot.slane %v4230, 1
        %v4252 = vsel %vm3740, %v4251, %v4250
        %4254 = vst.msk [vmem:[%s379 + $0x10] sm:$0xff] %vm3487, %v4252
        %v4255 = vld [vmem:[#allocation4 + $0x9] sm:$0x1]
        %v4256 = vld [vmem:[#allocation4 + $0x29] sm:$0x1]
        %v4257 = vld [vmem:[#allocation4 + $0x49] sm:$0x1]
        %v4258 = vld [vmem:[#allocation4 + $0x69] sm:$0x1]
        %v4259 = vld [vmem:[#allocation4 + $0x89] sm:$0x1]
        %v4260 = vld [vmem:[#allocation4 + $0xa9] sm:$0x1]
        %v4261 = vld [vmem:[#allocation4 + $0xc9] sm:$0x1]
        %v4262 = vld [vmem:[#allocation4 + $0xe9] sm:$0x1]
        %4263 = vrot.lane.b32.xlu0 %v3616, 96
        %v4264 = vpop.permute.xlu0 %4263
        %4265 = vrot.lane.b32.xlu0 %v4208, 96
        %v4266 = vpop.permute.xlu0 %4265
        %4267 = vrot.lane.b32.xlu0 %v4209, 96
        %v4268 = vpop.permute.xlu0 %4267
        %4269 = vrot.lane.b32.xlu0 %v4210, 96
        %v4270 = vpop.permute.xlu0 %4269
        %4271 = vrot.lane.b32.xlu0 %v4211, 96
        %v4272 = vpop.permute.xlu0 %4271
        %4273 = vrot.lane.b32.xlu0 %v4212, 96
        %v4274 = vpop.permute.xlu0 %4273
        %4275 = vrot.lane.b32.xlu0 %v4213, 96
        %v4276 = vpop.permute.xlu0 %4275
        %4277 = vrot.lane.b32.xlu0 %v4214, 96
        %v4278 = vpop.permute.xlu0 %4277
        %v4287 = vmul.f32 %v4255, %v4264
        %v4288 = vmul.f32 %v4256, %v4266
        %v4289 = vmul.f32 %v4257, %v4268
        %v4290 = vmul.f32 %v4258, %v4270
        %v4291 = vmul.f32 %v4259, %v4272
        %v4292 = vmul.f32 %v4260, %v4274
        %v4293 = vmul.f32 %v4261, %v4276
        %v4294 = vmul.f32 %v4262, %v4278
        %v4303 = vrot.slane %v4288, 7
        %v4304 = vsel %vm1104, %v4303, %v4287
        %v4305 = vrot.slane %v4289, 6
        %v4306 = vsel %vm1108, %v4305, %v4304
        %v4307 = vrot.slane %v4290, 5
        %v4308 = vsel %vm1112, %v4307, %v4306
        %v4309 = vrot.slane %v4291, 4
        %v4310 = vsel %vm3731, %v4309, %v4308
        %v4311 = vrot.slane %v4292, 3
        %v4312 = vsel %vm3734, %v4311, %v4310
        %v4313 = vrot.slane %v4293, 2
        %v4314 = vsel %vm3737, %v4313, %v4312
        %v4315 = vrot.slane %v4294, 1
        %v4316 = vsel %vm3740, %v4315, %v4314
        %4317 = vrot.lane.b32.xlu0 %v4316, 32
        %v4318 = vpop.permute.xlu0 %4317
        %4320 = vst.msk [vmem:[%s379 + $0x10] sm:$0xff] %vm3809, %v4318
        %v4321 = vld [vmem:[#allocation4 + $0xa] sm:$0x1]
        %v4322 = vld [vmem:[#allocation4 + $0x2a] sm:$0x1]
        %v4323 = vld [vmem:[#allocation4 + $0x4a] sm:$0x1]
        %v4324 = vld [vmem:[#allocation4 + $0x6a] sm:$0x1]
        %v4325 = vld [vmem:[#allocation4 + $0x8a] sm:$0x1]
        %v4326 = vld [vmem:[#allocation4 + $0xaa] sm:$0x1]
        %v4327 = vld [vmem:[#allocation4 + $0xca] sm:$0x1]
        %v4328 = vld [vmem:[#allocation4 + $0xea] sm:$0x1]
        %4329 = vrot.lane.b32.xlu0 %v3616, 64
        %v4330 = vpop.permute.xlu0 %4329
        %4331 = vrot.lane.b32.xlu0 %v4208, 64
        %v4332 = vpop.permute.xlu0 %4331
        %4333 = vrot.lane.b32.xlu0 %v4209, 64
        %v4334 = vpop.permute.xlu0 %4333
        %4335 = vrot.lane.b32.xlu0 %v4210, 64
        %v4336 = vpop.permute.xlu0 %4335
        %4337 = vrot.lane.b32.xlu0 %v4211, 64
        %v4338 = vpop.permute.xlu0 %4337
        %4339 = vrot.lane.b32.xlu0 %v4212, 64
        %v4340 = vpop.permute.xlu0 %4339
        %4341 = vrot.lane.b32.xlu0 %v4213, 64
        %v4342 = vpop.permute.xlu0 %4341
        %4343 = vrot.lane.b32.xlu0 %v4214, 64
        %v4344 = vpop.permute.xlu0 %4343
        %v4353 = vmul.f32 %v4321, %v4330
        %v4354 = vmul.f32 %v4322, %v4332
        %v4355 = vmul.f32 %v4323, %v4334
        %v4356 = vmul.f32 %v4324, %v4336
        %v4357 = vmul.f32 %v4325, %v4338
        %v4358 = vmul.f32 %v4326, %v4340
        %v4359 = vmul.f32 %v4327, %v4342
        %v4360 = vmul.f32 %v4328, %v4344
        %v4369 = vrot.slane %v4354, 7
        %v4370 = vsel %vm1104, %v4369, %v4353
        %v4371 = vrot.slane %v4355, 6
        %v4372 = vsel %vm1108, %v4371, %v4370
        %v4373 = vrot.slane %v4356, 5
        %v4374 = vsel %vm1112, %v4373, %v4372
        %v4375 = vrot.slane %v4357, 4
        %v4376 = vsel %vm3731, %v4375, %v4374
        %v4377 = vrot.slane %v4358, 3
        %v4378 = vsel %vm3734, %v4377, %v4376
        %v4379 = vrot.slane %v4359, 2
        %v4380 = vsel %vm3737, %v4379, %v4378
        %v4381 = vrot.slane %v4360, 1
        %v4382 = vsel %vm3740, %v4381, %v4380
        %4383 = vrot.lane.b32.xlu0 %v4382, 64
        %v4384 = vpop.permute.xlu0 %4383
        %4386 = vst.msk [vmem:[%s379 + $0x10] sm:$0xff] %vm3876, %v4384
        %v4387 = vld [vmem:[#allocation4 + $0xb] sm:$0x1]
        %v4388 = vld [vmem:[#allocation4 + $0x2b] sm:$0x1]
        %v4389 = vld [vmem:[#allocation4 + $0x4b] sm:$0x1]
        %v4390 = vld [vmem:[#allocation4 + $0x6b] sm:$0x1]
        %v4391 = vld [vmem:[#allocation4 + $0x8b] sm:$0x1]
        %v4392 = vld [vmem:[#allocation4 + $0xab] sm:$0x1]
        %v4393 = vld [vmem:[#allocation4 + $0xcb] sm:$0x1]
        %v4394 = vld [vmem:[#allocation4 + $0xeb] sm:$0x1]
        %4395 = vrot.lane.b32.xlu0 %v3616, 32
        %v4396 = vpop.permute.xlu0 %4395
        %4397 = vrot.lane.b32.xlu0 %v4208, 32
        %v4398 = vpop.permute.xlu0 %4397
        %4399 = vrot.lane.b32.xlu0 %v4209, 32
        %v4400 = vpop.permute.xlu0 %4399
        %4401 = vrot.lane.b32.xlu0 %v4210, 32
        %v4402 = vpop.permute.xlu0 %4401
        %4403 = vrot.lane.b32.xlu0 %v4211, 32
        %v4404 = vpop.permute.xlu0 %4403
        %4405 = vrot.lane.b32.xlu0 %v4212, 32
        %v4406 = vpop.permute.xlu0 %4405
        %4407 = vrot.lane.b32.xlu0 %v4213, 32
        %v4408 = vpop.permute.xlu0 %4407
        %4409 = vrot.lane.b32.xlu0 %v4214, 32
        %v4410 = vpop.permute.xlu0 %4409
        %v4419 = vmul.f32 %v4387, %v4396
        %v4420 = vmul.f32 %v4388, %v4398
        %v4421 = vmul.f32 %v4389, %v4400
        %v4422 = vmul.f32 %v4390, %v4402
        %v4423 = vmul.f32 %v4391, %v4404
        %v4424 = vmul.f32 %v4392, %v4406
        %v4425 = vmul.f32 %v4393, %v4408
        %v4426 = vmul.f32 %v4394, %v4410
        %v4435 = vrot.slane %v4420, 7
        %v4436 = vsel %vm1104, %v4435, %v4419
        %v4437 = vrot.slane %v4421, 6
        %v4438 = vsel %vm1108, %v4437, %v4436
        %v4439 = vrot.slane %v4422, 5
        %v4440 = vsel %vm1112, %v4439, %v4438
        %v4441 = vrot.slane %v4423, 4
        %v4442 = vsel %vm3731, %v4441, %v4440
        %v4443 = vrot.slane %v4424, 3
        %v4444 = vsel %vm3734, %v4443, %v4442
        %v4445 = vrot.slane %v4425, 2
        %v4446 = vsel %vm3737, %v4445, %v4444
        %v4447 = vrot.slane %v4426, 1
        %v4448 = vsel %vm3740, %v4447, %v4446
        %4449 = vrot.lane.b32.xlu0 %v4448, 96
        %v4450 = vpop.permute.xlu0 %4449
        %4452 = vst.msk [vmem:[%s379 + $0x10] sm:$0xff] %vm3943, %v4450
        %v4453 = vld [vmem:[#allocation4 + $0xc] sm:$0x1]
        %v4454 = vld [vmem:[#allocation4 + $0x2c] sm:$0x1]
        %v4455 = vld [vmem:[#allocation4 + $0x4c] sm:$0x1]
        %v4456 = vld [vmem:[#allocation4 + $0x6c] sm:$0x1]
        %v4457 = vld [vmem:[#allocation4 + $0x8c] sm:$0x1]
        %v4458 = vld [vmem:[#allocation4 + $0xac] sm:$0x1]
        %v4459 = vld [vmem:[#allocation4 + $0xcc] sm:$0x1]
        %v4460 = vld [vmem:[#allocation4 + $0xec] sm:$0x1]
        %v4462 = vrot.slane %v3629, 1
        %v4463 = vrot.slane %v3629, 2
        %v4464 = vrot.slane %v3629, 3
        %v4465 = vrot.slane %v3629, 4
        %v4466 = vrot.slane %v3629, 5
        %v4467 = vrot.slane %v3629, 6
        %v4468 = vrot.slane %v3629, 7
        %v4477 = vmul.f32 %v4453, %v3629
        %v4478 = vmul.f32 %v4454, %v4462
        %v4479 = vmul.f32 %v4455, %v4463
        %v4480 = vmul.f32 %v4456, %v4464
        %v4481 = vmul.f32 %v4457, %v4465
        %v4482 = vmul.f32 %v4458, %v4466
        %v4483 = vmul.f32 %v4459, %v4467
        %v4484 = vmul.f32 %v4460, %v4468
        %v4493 = vrot.slane %v4478, 7
        %v4494 = vsel %vm1104, %v4493, %v4477
        %v4495 = vrot.slane %v4479, 6
        %v4496 = vsel %vm1108, %v4495, %v4494
        %v4497 = vrot.slane %v4480, 5
        %v4498 = vsel %vm1112, %v4497, %v4496
        %v4499 = vrot.slane %v4481, 4
        %v4500 = vsel %vm3731, %v4499, %v4498
        %v4501 = vrot.slane %v4482, 3
        %v4502 = vsel %vm3734, %v4501, %v4500
        %v4503 = vrot.slane %v4483, 2
        %v4504 = vsel %vm3737, %v4503, %v4502
        %v4505 = vrot.slane %v4484, 1
        %v4506 = vsel %vm3740, %v4505, %v4504
        %4508 = vst.msk [vmem:[%s379 + $0x18] sm:$0xff] %vm3487, %v4506
        %v4509 = vld [vmem:[#allocation4 + $0xd] sm:$0x1]
        %v4510 = vld [vmem:[#allocation4 + $0x2d] sm:$0x1]
        %v4511 = vld [vmem:[#allocation4 + $0x4d] sm:$0x1]
        %v4512 = vld [vmem:[#allocation4 + $0x6d] sm:$0x1]
        %v4513 = vld [vmem:[#allocation4 + $0x8d] sm:$0x1]
        %v4514 = vld [vmem:[#allocation4 + $0xad] sm:$0x1]
        %v4515 = vld [vmem:[#allocation4 + $0xcd] sm:$0x1]
        %v4516 = vld [vmem:[#allocation4 + $0xed] sm:$0x1]
        %4517 = vrot.lane.b32.xlu0 %v3629, 96
        %v4518 = vpop.permute.xlu0 %4517
        %4519 = vrot.lane.b32.xlu0 %v4462, 96
        %v4520 = vpop.permute.xlu0 %4519
        %4521 = vrot.lane.b32.xlu0 %v4463, 96
        %v4522 = vpop.permute.xlu0 %4521
        %4523 = vrot.lane.b32.xlu0 %v4464, 96
        %v4524 = vpop.permute.xlu0 %4523
        %4525 = vrot.lane.b32.xlu0 %v4465, 96
        %v4526 = vpop.permute.xlu0 %4525
        %4527 = vrot.lane.b32.xlu0 %v4466, 96
        %v4528 = vpop.permute.xlu0 %4527
        %4529 = vrot.lane.b32.xlu0 %v4467, 96
        %v4530 = vpop.permute.xlu0 %4529
        %4531 = vrot.lane.b32.xlu0 %v4468, 96
        %v4532 = vpop.permute.xlu0 %4531
        %v4541 = vmul.f32 %v4509, %v4518
        %v4542 = vmul.f32 %v4510, %v4520
        %v4543 = vmul.f32 %v4511, %v4522
        %v4544 = vmul.f32 %v4512, %v4524
        %v4545 = vmul.f32 %v4513, %v4526
        %v4546 = vmul.f32 %v4514, %v4528
        %v4547 = vmul.f32 %v4515, %v4530
        %v4548 = vmul.f32 %v4516, %v4532
        %v4557 = vrot.slane %v4542, 7
        %v4558 = vsel %vm1104, %v4557, %v4541
        %v4559 = vrot.slane %v4543, 6
        %v4560 = vsel %vm1108, %v4559, %v4558
        %v4561 = vrot.slane %v4544, 5
        %v4562 = vsel %vm1112, %v4561, %v4560
        %v4563 = vrot.slane %v4545, 4
        %v4564 = vsel %vm3731, %v4563, %v4562
        %v4565 = vrot.slane %v4546, 3
        %v4566 = vsel %vm3734, %v4565, %v4564
        %v4567 = vrot.slane %v4547, 2
        %v4568 = vsel %vm3737, %v4567, %v4566
        %v4569 = vrot.slane %v4548, 1
        %v4570 = vsel %vm3740, %v4569, %v4568
        %4571 = vrot.lane.b32.xlu0 %v4570, 32
        %v4572 = vpop.permute.xlu0 %4571
        %4574 = vst.msk [vmem:[%s379 + $0x18] sm:$0xff] %vm3809, %v4572
        %v4575 = vld [vmem:[#allocation4 + $0xe] sm:$0x1]
        %v4576 = vld [vmem:[#allocation4 + $0x2e] sm:$0x1]
        %v4577 = vld [vmem:[#allocation4 + $0x4e] sm:$0x1]
        %v4578 = vld [vmem:[#allocation4 + $0x6e] sm:$0x1]
        %v4579 = vld [vmem:[#allocation4 + $0x8e] sm:$0x1]
        %v4580 = vld [vmem:[#allocation4 + $0xae] sm:$0x1]
        %v4581 = vld [vmem:[#allocation4 + $0xce] sm:$0x1]
        %v4582 = vld [vmem:[#allocation4 + $0xee] sm:$0x1]
        %4583 = vrot.lane.b32.xlu0 %v3629, 64
        %v4584 = vpop.permute.xlu0 %4583
        %4585 = vrot.lane.b32.xlu0 %v4462, 64
        %v4586 = vpop.permute.xlu0 %4585
        %4587 = vrot.lane.b32.xlu0 %v4463, 64
        %v4588 = vpop.permute.xlu0 %4587
        %4589 = vrot.lane.b32.xlu0 %v4464, 64
        %v4590 = vpop.permute.xlu0 %4589
        %4591 = vrot.lane.b32.xlu0 %v4465, 64
        %v4592 = vpop.permute.xlu0 %4591
        %4593 = vrot.lane.b32.xlu0 %v4466, 64
        %v4594 = vpop.permute.xlu0 %4593
        %4595 = vrot.lane.b32.xlu0 %v4467, 64
        %v4596 = vpop.permute.xlu0 %4595
        %4597 = vrot.lane.b32.xlu0 %v4468, 64
        %v4598 = vpop.permute.xlu0 %4597
        %v4607 = vmul.f32 %v4575, %v4584
        %v4608 = vmul.f32 %v4576, %v4586
        %v4609 = vmul.f32 %v4577, %v4588
        %v4610 = vmul.f32 %v4578, %v4590
        %v4611 = vmul.f32 %v4579, %v4592
        %v4612 = vmul.f32 %v4580, %v4594
        %v4613 = vmul.f32 %v4581, %v4596
        %v4614 = vmul.f32 %v4582, %v4598
        %v4623 = vrot.slane %v4608, 7
        %v4624 = vsel %vm1104, %v4623, %v4607
        %v4625 = vrot.slane %v4609, 6
        %v4626 = vsel %vm1108, %v4625, %v4624
        %v4627 = vrot.slane %v4610, 5
        %v4628 = vsel %vm1112, %v4627, %v4626
        %v4629 = vrot.slane %v4611, 4
        %v4630 = vsel %vm3731, %v4629, %v4628
        %v4631 = vrot.slane %v4612, 3
        %v4632 = vsel %vm3734, %v4631, %v4630
        %v4633 = vrot.slane %v4613, 2
        %v4634 = vsel %vm3737, %v4633, %v4632
        %v4635 = vrot.slane %v4614, 1
        %v4636 = vsel %vm3740, %v4635, %v4634
        %4637 = vrot.lane.b32.xlu0 %v4636, 64
        %v4638 = vpop.permute.xlu0 %4637
        %4640 = vst.msk [vmem:[%s379 + $0x18] sm:$0xff] %vm3876, %v4638
        %v4641 = vld [vmem:[#allocation4 + $0xf] sm:$0x1]
        %v4642 = vld [vmem:[#allocation4 + $0x2f] sm:$0x1]
        %v4643 = vld [vmem:[#allocation4 + $0x4f] sm:$0x1]
        %v4644 = vld [vmem:[#allocation4 + $0x6f] sm:$0x1]
        %v4645 = vld [vmem:[#allocation4 + $0x8f] sm:$0x1]
        %v4646 = vld [vmem:[#allocation4 + $0xaf] sm:$0x1]
        %v4647 = vld [vmem:[#allocation4 + $0xcf] sm:$0x1]
        %v4648 = vld [vmem:[#allocation4 + $0xef] sm:$0x1]
        %4649 = vrot.lane.b32.xlu0 %v3629, 32
        %v4650 = vpop.permute.xlu0 %4649
        %4651 = vrot.lane.b32.xlu0 %v4462, 32
        %v4652 = vpop.permute.xlu0 %4651
        %4653 = vrot.lane.b32.xlu0 %v4463, 32
        %v4654 = vpop.permute.xlu0 %4653
        %4655 = vrot.lane.b32.xlu0 %v4464, 32
        %v4656 = vpop.permute.xlu0 %4655
        %4657 = vrot.lane.b32.xlu0 %v4465, 32
        %v4658 = vpop.permute.xlu0 %4657
        %4659 = vrot.lane.b32.xlu0 %v4466, 32
        %v4660 = vpop.permute.xlu0 %4659
        %4661 = vrot.lane.b32.xlu0 %v4467, 32
        %v4662 = vpop.permute.xlu0 %4661
        %4663 = vrot.lane.b32.xlu0 %v4468, 32
        %v4664 = vpop.permute.xlu0 %4663
        %v4673 = vmul.f32 %v4641, %v4650
        %v4674 = vmul.f32 %v4642, %v4652
        %v4675 = vmul.f32 %v4643, %v4654
        %v4676 = vmul.f32 %v4644, %v4656
        %v4677 = vmul.f32 %v4645, %v4658
        %v4678 = vmul.f32 %v4646, %v4660
        %v4679 = vmul.f32 %v4647, %v4662
        %v4680 = vmul.f32 %v4648, %v4664
        %v4689 = vrot.slane %v4674, 7
        %v4690 = vsel %vm1104, %v4689, %v4673
        %v4691 = vrot.slane %v4675, 6
        %v4692 = vsel %vm1108, %v4691, %v4690
        %v4693 = vrot.slane %v4676, 5
        %v4694 = vsel %vm1112, %v4693, %v4692
        %v4695 = vrot.slane %v4677, 4
        %v4696 = vsel %vm3731, %v4695, %v4694
        %v4697 = vrot.slane %v4678, 3
        %v4698 = vsel %vm3734, %v4697, %v4696
        %v4699 = vrot.slane %v4679, 2
        %v4700 = vsel %vm3737, %v4699, %v4698
        %v4701 = vrot.slane %v4680, 1
        %v4702 = vsel %vm3740, %v4701, %v4700
        %4703 = vrot.lane.b32.xlu0 %v4702, 96
        %v4704 = vpop.permute.xlu0 %4703
        %4706 = vst.msk [vmem:[%s379 + $0x18] sm:$0xff] %vm3943, %v4704
        %v4707 = vld [vmem:[#allocation4 + $0x10] sm:$0x1]
        %v4708 = vld [vmem:[#allocation4 + $0x30] sm:$0x1]
        %v4709 = vld [vmem:[#allocation4 + $0x50] sm:$0x1]
        %v4710 = vld [vmem:[#allocation4 + $0x70] sm:$0x1]
        %v4711 = vld [vmem:[#allocation4 + $0x90] sm:$0x1]
        %v4712 = vld [vmem:[#allocation4 + $0xb0] sm:$0x1]
        %v4713 = vld [vmem:[#allocation4 + $0xd0] sm:$0x1]
        %v4714 = vld [vmem:[#allocation4 + $0xf0] sm:$0x1]
        %v4716 = vrot.slane %v3642, 1
        %v4717 = vrot.slane %v3642, 2
        %v4718 = vrot.slane %v3642, 3
        %v4719 = vrot.slane %v3642, 4
        %v4720 = vrot.slane %v3642, 5
        %v4721 = vrot.slane %v3642, 6
        %v4722 = vrot.slane %v3642, 7
        %v4731 = vmul.f32 %v4707, %v3642
        %v4732 = vmul.f32 %v4708, %v4716
        %v4733 = vmul.f32 %v4709, %v4717
        %v4734 = vmul.f32 %v4710, %v4718
        %v4735 = vmul.f32 %v4711, %v4719
        %v4736 = vmul.f32 %v4712, %v4720
        %v4737 = vmul.f32 %v4713, %v4721
        %v4738 = vmul.f32 %v4714, %v4722
        %v4747 = vrot.slane %v4732, 7
        %v4748 = vsel %vm1104, %v4747, %v4731
        %v4749 = vrot.slane %v4733, 6
        %v4750 = vsel %vm1108, %v4749, %v4748
        %v4751 = vrot.slane %v4734, 5
        %v4752 = vsel %vm1112, %v4751, %v4750
        %v4753 = vrot.slane %v4735, 4
        %v4754 = vsel %vm3731, %v4753, %v4752
        %v4755 = vrot.slane %v4736, 3
        %v4756 = vsel %vm3734, %v4755, %v4754
        %v4757 = vrot.slane %v4737, 2
        %v4758 = vsel %vm3737, %v4757, %v4756
        %v4759 = vrot.slane %v4738, 1
        %v4760 = vsel %vm3740, %v4759, %v4758
        %4762 = vst.msk [vmem:[%s379 + $0x20] sm:$0xff] %vm3487, %v4760
        %v4763 = vld [vmem:[#allocation4 + $0x11] sm:$0x1]
        %v4764 = vld [vmem:[#allocation4 + $0x31] sm:$0x1]
        %v4765 = vld [vmem:[#allocation4 + $0x51] sm:$0x1]
        %v4766 = vld [vmem:[#allocation4 + $0x71] sm:$0x1]
        %v4767 = vld [vmem:[#allocation4 + $0x91] sm:$0x1]
        %v4768 = vld [vmem:[#allocation4 + $0xb1] sm:$0x1]
        %v4769 = vld [vmem:[#allocation4 + $0xd1] sm:$0x1]
        %v4770 = vld [vmem:[#allocation4 + $0xf1] sm:$0x1]
        %4771 = vrot.lane.b32.xlu0 %v3642, 96
        %v4772 = vpop.permute.xlu0 %4771
        %4773 = vrot.lane.b32.xlu0 %v4716, 96
        %v4774 = vpop.permute.xlu0 %4773
        %4775 = vrot.lane.b32.xlu0 %v4717, 96
        %v4776 = vpop.permute.xlu0 %4775
        %4777 = vrot.lane.b32.xlu0 %v4718, 96
        %v4778 = vpop.permute.xlu0 %4777
        %4779 = vrot.lane.b32.xlu0 %v4719, 96
        %v4780 = vpop.permute.xlu0 %4779
        %4781 = vrot.lane.b32.xlu0 %v4720, 96
        %v4782 = vpop.permute.xlu0 %4781
        %4783 = vrot.lane.b32.xlu0 %v4721, 96
        %v4784 = vpop.permute.xlu0 %4783
        %4785 = vrot.lane.b32.xlu0 %v4722, 96
        %v4786 = vpop.permute.xlu0 %4785
        %v4795 = vmul.f32 %v4763, %v4772
        %v4796 = vmul.f32 %v4764, %v4774
        %v4797 = vmul.f32 %v4765, %v4776
        %v4798 = vmul.f32 %v4766, %v4778
        %v4799 = vmul.f32 %v4767, %v4780
        %v4800 = vmul.f32 %v4768, %v4782
        %v4801 = vmul.f32 %v4769, %v4784
        %v4802 = vmul.f32 %v4770, %v4786
        %v4811 = vrot.slane %v4796, 7
        %v4812 = vsel %vm1104, %v4811, %v4795
        %v4813 = vrot.slane %v4797, 6
        %v4814 = vsel %vm1108, %v4813, %v4812
        %v4815 = vrot.slane %v4798, 5
        %v4816 = vsel %vm1112, %v4815, %v4814
        %v4817 = vrot.slane %v4799, 4
        %v4818 = vsel %vm3731, %v4817, %v4816
        %v4819 = vrot.slane %v4800, 3
        %v4820 = vsel %vm3734, %v4819, %v4818
        %v4821 = vrot.slane %v4801, 2
        %v4822 = vsel %vm3737, %v4821, %v4820
        %v4823 = vrot.slane %v4802, 1
        %v4824 = vsel %vm3740, %v4823, %v4822
        %4825 = vrot.lane.b32.xlu0 %v4824, 32
        %v4826 = vpop.permute.xlu0 %4825
        %4828 = vst.msk [vmem:[%s379 + $0x20] sm:$0xff] %vm3809, %v4826
        %v4829 = vld [vmem:[#allocation4 + $0x12] sm:$0x1]
        %v4830 = vld [vmem:[#allocation4 + $0x32] sm:$0x1]
        %v4831 = vld [vmem:[#allocation4 + $0x52] sm:$0x1]
        %v4832 = vld [vmem:[#allocation4 + $0x72] sm:$0x1]
        %v4833 = vld [vmem:[#allocation4 + $0x92] sm:$0x1]
        %v4834 = vld [vmem:[#allocation4 + $0xb2] sm:$0x1]
        %v4835 = vld [vmem:[#allocation4 + $0xd2] sm:$0x1]
        %v4836 = vld [vmem:[#allocation4 + $0xf2] sm:$0x1]
        %4837 = vrot.lane.b32.xlu0 %v3642, 64
        %v4838 = vpop.permute.xlu0 %4837
        %4839 = vrot.lane.b32.xlu0 %v4716, 64
        %v4840 = vpop.permute.xlu0 %4839
        %4841 = vrot.lane.b32.xlu0 %v4717, 64
        %v4842 = vpop.permute.xlu0 %4841
        %4843 = vrot.lane.b32.xlu0 %v4718, 64
        %v4844 = vpop.permute.xlu0 %4843
        %4845 = vrot.lane.b32.xlu0 %v4719, 64
        %v4846 = vpop.permute.xlu0 %4845
        %4847 = vrot.lane.b32.xlu0 %v4720, 64
        %v4848 = vpop.permute.xlu0 %4847
        %4849 = vrot.lane.b32.xlu0 %v4721, 64
        %v4850 = vpop.permute.xlu0 %4849
        %4851 = vrot.lane.b32.xlu0 %v4722, 64
        %v4852 = vpop.permute.xlu0 %4851
        %v4861 = vmul.f32 %v4829, %v4838
        %v4862 = vmul.f32 %v4830, %v4840
        %v4863 = vmul.f32 %v4831, %v4842
        %v4864 = vmul.f32 %v4832, %v4844
        %v4865 = vmul.f32 %v4833, %v4846
        %v4866 = vmul.f32 %v4834, %v4848
        %v4867 = vmul.f32 %v4835, %v4850
        %v4868 = vmul.f32 %v4836, %v4852
        %v4877 = vrot.slane %v4862, 7
        %v4878 = vsel %vm1104, %v4877, %v4861
        %v4879 = vrot.slane %v4863, 6
        %v4880 = vsel %vm1108, %v4879, %v4878
        %v4881 = vrot.slane %v4864, 5
        %v4882 = vsel %vm1112, %v4881, %v4880
        %v4883 = vrot.slane %v4865, 4
        %v4884 = vsel %vm3731, %v4883, %v4882
        %v4885 = vrot.slane %v4866, 3
        %v4886 = vsel %vm3734, %v4885, %v4884
        %v4887 = vrot.slane %v4867, 2
        %v4888 = vsel %vm3737, %v4887, %v4886
        %v4889 = vrot.slane %v4868, 1
        %v4890 = vsel %vm3740, %v4889, %v4888
        %4891 = vrot.lane.b32.xlu0 %v4890, 64
        %v4892 = vpop.permute.xlu0 %4891
        %4894 = vst.msk [vmem:[%s379 + $0x20] sm:$0xff] %vm3876, %v4892
        %v4895 = vld [vmem:[#allocation4 + $0x13] sm:$0x1]
        %v4896 = vld [vmem:[#allocation4 + $0x33] sm:$0x1]
        %v4897 = vld [vmem:[#allocation4 + $0x53] sm:$0x1]
        %v4898 = vld [vmem:[#allocation4 + $0x73] sm:$0x1]
        %v4899 = vld [vmem:[#allocation4 + $0x93] sm:$0x1]
        %v4900 = vld [vmem:[#allocation4 + $0xb3] sm:$0x1]
        %v4901 = vld [vmem:[#allocation4 + $0xd3] sm:$0x1]
        %v4902 = vld [vmem:[#allocation4 + $0xf3] sm:$0x1]
        %4903 = vrot.lane.b32.xlu0 %v3642, 32
        %v4904 = vpop.permute.xlu0 %4903
        %4905 = vrot.lane.b32.xlu0 %v4716, 32
        %v4906 = vpop.permute.xlu0 %4905
        %4907 = vrot.lane.b32.xlu0 %v4717, 32
        %v4908 = vpop.permute.xlu0 %4907
        %4909 = vrot.lane.b32.xlu0 %v4718, 32
        %v4910 = vpop.permute.xlu0 %4909
        %4911 = vrot.lane.b32.xlu0 %v4719, 32
        %v4912 = vpop.permute.xlu0 %4911
        %4913 = vrot.lane.b32.xlu0 %v4720, 32
        %v4914 = vpop.permute.xlu0 %4913
        %4915 = vrot.lane.b32.xlu0 %v4721, 32
        %v4916 = vpop.permute.xlu0 %4915
        %4917 = vrot.lane.b32.xlu0 %v4722, 32
        %v4918 = vpop.permute.xlu0 %4917
        %v4927 = vmul.f32 %v4895, %v4904
        %v4928 = vmul.f32 %v4896, %v4906
        %v4929 = vmul.f32 %v4897, %v4908
        %v4930 = vmul.f32 %v4898, %v4910
        %v4931 = vmul.f32 %v4899, %v4912
        %v4932 = vmul.f32 %v4900, %v4914
        %v4933 = vmul.f32 %v4901, %v4916
        %v4934 = vmul.f32 %v4902, %v4918
        %v4943 = vrot.slane %v4928, 7
        %v4944 = vsel %vm1104, %v4943, %v4927
        %v4945 = vrot.slane %v4929, 6
        %v4946 = vsel %vm1108, %v4945, %v4944
        %v4947 = vrot.slane %v4930, 5
        %v4948 = vsel %vm1112, %v4947, %v4946
        %v4949 = vrot.slane %v4931, 4
        %v4950 = vsel %vm3731, %v4949, %v4948
        %v4951 = vrot.slane %v4932, 3
        %v4952 = vsel %vm3734, %v4951, %v4950
        %v4953 = vrot.slane %v4933, 2
        %v4954 = vsel %vm3737, %v4953, %v4952
        %v4955 = vrot.slane %v4934, 1
        %v4956 = vsel %vm3740, %v4955, %v4954
        %4957 = vrot.lane.b32.xlu0 %v4956, 96
        %v4958 = vpop.permute.xlu0 %4957
        %4960 = vst.msk [vmem:[%s379 + $0x20] sm:$0xff] %vm3943, %v4958
        %v4961 = vld [vmem:[#allocation4 + $0x14] sm:$0x1]
        %v4962 = vld [vmem:[#allocation4 + $0x34] sm:$0x1]
        %v4963 = vld [vmem:[#allocation4 + $0x54] sm:$0x1]
        %v4964 = vld [vmem:[#allocation4 + $0x74] sm:$0x1]
        %v4965 = vld [vmem:[#allocation4 + $0x94] sm:$0x1]
        %v4966 = vld [vmem:[#allocation4 + $0xb4] sm:$0x1]
        %v4967 = vld [vmem:[#allocation4 + $0xd4] sm:$0x1]
        %v4968 = vld [vmem:[#allocation4 + $0xf4] sm:$0x1]
        %v4970 = vrot.slane %v3655, 1
        %v4971 = vrot.slane %v3655, 2
        %v4972 = vrot.slane %v3655, 3
        %v4973 = vrot.slane %v3655, 4
        %v4974 = vrot.slane %v3655, 5
        %v4975 = vrot.slane %v3655, 6
        %v4976 = vrot.slane %v3655, 7
        %v4985 = vmul.f32 %v4961, %v3655
        %v4986 = vmul.f32 %v4962, %v4970
        %v4987 = vmul.f32 %v4963, %v4971
        %v4988 = vmul.f32 %v4964, %v4972
        %v4989 = vmul.f32 %v4965, %v4973
        %v4990 = vmul.f32 %v4966, %v4974
        %v4991 = vmul.f32 %v4967, %v4975
        %v4992 = vmul.f32 %v4968, %v4976
        %v5001 = vrot.slane %v4986, 7
        %v5002 = vsel %vm1104, %v5001, %v4985
        %v5003 = vrot.slane %v4987, 6
        %v5004 = vsel %vm1108, %v5003, %v5002
        %v5005 = vrot.slane %v4988, 5
        %v5006 = vsel %vm1112, %v5005, %v5004
        %v5007 = vrot.slane %v4989, 4
        %v5008 = vsel %vm3731, %v5007, %v5006
        %v5009 = vrot.slane %v4990, 3
        %v5010 = vsel %vm3734, %v5009, %v5008
        %v5011 = vrot.slane %v4991, 2
        %v5012 = vsel %vm3737, %v5011, %v5010
        %v5013 = vrot.slane %v4992, 1
        %v5014 = vsel %vm3740, %v5013, %v5012
        %5016 = vst.msk [vmem:[%s379 + $0x28] sm:$0xff] %vm3487, %v5014
        %v5017 = vld [vmem:[#allocation4 + $0x15] sm:$0x1]
        %v5018 = vld [vmem:[#allocation4 + $0x35] sm:$0x1]
        %v5019 = vld [vmem:[#allocation4 + $0x55] sm:$0x1]
        %v5020 = vld [vmem:[#allocation4 + $0x75] sm:$0x1]
        %v5021 = vld [vmem:[#allocation4 + $0x95] sm:$0x1]
        %v5022 = vld [vmem:[#allocation4 + $0xb5] sm:$0x1]
        %v5023 = vld [vmem:[#allocation4 + $0xd5] sm:$0x1]
        %v5024 = vld [vmem:[#allocation4 + $0xf5] sm:$0x1]
        %5025 = vrot.lane.b32.xlu0 %v3655, 96
        %v5026 = vpop.permute.xlu0 %5025
        %5027 = vrot.lane.b32.xlu0 %v4970, 96
        %v5028 = vpop.permute.xlu0 %5027
        %5029 = vrot.lane.b32.xlu0 %v4971, 96
        %v5030 = vpop.permute.xlu0 %5029
        %5031 = vrot.lane.b32.xlu0 %v4972, 96
        %v5032 = vpop.permute.xlu0 %5031
        %5033 = vrot.lane.b32.xlu0 %v4973, 96
        %v5034 = vpop.permute.xlu0 %5033
        %5035 = vrot.lane.b32.xlu0 %v4974, 96
        %v5036 = vpop.permute.xlu0 %5035
        %5037 = vrot.lane.b32.xlu0 %v4975, 96
        %v5038 = vpop.permute.xlu0 %5037
        %5039 = vrot.lane.b32.xlu0 %v4976, 96
        %v5040 = vpop.permute.xlu0 %5039
        %v5049 = vmul.f32 %v5017, %v5026
        %v5050 = vmul.f32 %v5018, %v5028
        %v5051 = vmul.f32 %v5019, %v5030
        %v5052 = vmul.f32 %v5020, %v5032
        %v5053 = vmul.f32 %v5021, %v5034
        %v5054 = vmul.f32 %v5022, %v5036
        %v5055 = vmul.f32 %v5023, %v5038
        %v5056 = vmul.f32 %v5024, %v5040
        %v5065 = vrot.slane %v5050, 7
        %v5066 = vsel %vm1104, %v5065, %v5049
        %v5067 = vrot.slane %v5051, 6
        %v5068 = vsel %vm1108, %v5067, %v5066
        %v5069 = vrot.slane %v5052, 5
        %v5070 = vsel %vm1112, %v5069, %v5068
        %v5071 = vrot.slane %v5053, 4
        %v5072 = vsel %vm3731, %v5071, %v5070
        %v5073 = vrot.slane %v5054, 3
        %v5074 = vsel %vm3734, %v5073, %v5072
        %v5075 = vrot.slane %v5055, 2
        %v5076 = vsel %vm3737, %v5075, %v5074
        %v5077 = vrot.slane %v5056, 1
        %v5078 = vsel %vm3740, %v5077, %v5076
        %5079 = vrot.lane.b32.xlu0 %v5078, 32
        %v5080 = vpop.permute.xlu0 %5079
        %5082 = vst.msk [vmem:[%s379 + $0x28] sm:$0xff] %vm3809, %v5080
        %v5083 = vld [vmem:[#allocation4 + $0x16] sm:$0x1]
        %v5084 = vld [vmem:[#allocation4 + $0x36] sm:$0x1]
        %v5085 = vld [vmem:[#allocation4 + $0x56] sm:$0x1]
        %v5086 = vld [vmem:[#allocation4 + $0x76] sm:$0x1]
        %v5087 = vld [vmem:[#allocation4 + $0x96] sm:$0x1]
        %v5088 = vld [vmem:[#allocation4 + $0xb6] sm:$0x1]
        %v5089 = vld [vmem:[#allocation4 + $0xd6] sm:$0x1]
        %v5090 = vld [vmem:[#allocation4 + $0xf6] sm:$0x1]
        %5091 = vrot.lane.b32.xlu0 %v3655, 64
        %v5092 = vpop.permute.xlu0 %5091
        %5093 = vrot.lane.b32.xlu0 %v4970, 64
        %v5094 = vpop.permute.xlu0 %5093
        %5095 = vrot.lane.b32.xlu0 %v4971, 64
        %v5096 = vpop.permute.xlu0 %5095
        %5097 = vrot.lane.b32.xlu0 %v4972, 64
        %v5098 = vpop.permute.xlu0 %5097
        %5099 = vrot.lane.b32.xlu0 %v4973, 64
        %v5100 = vpop.permute.xlu0 %5099
        %5101 = vrot.lane.b32.xlu0 %v4974, 64
        %v5102 = vpop.permute.xlu0 %5101
        %5103 = vrot.lane.b32.xlu0 %v4975, 64
        %v5104 = vpop.permute.xlu0 %5103
        %5105 = vrot.lane.b32.xlu0 %v4976, 64
        %v5106 = vpop.permute.xlu0 %5105
        %v5115 = vmul.f32 %v5083, %v5092
        %v5116 = vmul.f32 %v5084, %v5094
        %v5117 = vmul.f32 %v5085, %v5096
        %v5118 = vmul.f32 %v5086, %v5098
        %v5119 = vmul.f32 %v5087, %v5100
        %v5120 = vmul.f32 %v5088, %v5102
        %v5121 = vmul.f32 %v5089, %v5104
        %v5122 = vmul.f32 %v5090, %v5106
        %v5131 = vrot.slane %v5116, 7
        %v5132 = vsel %vm1104, %v5131, %v5115
        %v5133 = vrot.slane %v5117, 6
        %v5134 = vsel %vm1108, %v5133, %v5132
        %v5135 = vrot.slane %v5118, 5
        %v5136 = vsel %vm1112, %v5135, %v5134
        %v5137 = vrot.slane %v5119, 4
        %v5138 = vsel %vm3731, %v5137, %v5136
        %v5139 = vrot.slane %v5120, 3
        %v5140 = vsel %vm3734, %v5139, %v5138
        %v5141 = vrot.slane %v5121, 2
        %v5142 = vsel %vm3737, %v5141, %v5140
        %v5143 = vrot.slane %v5122, 1
        %v5144 = vsel %vm3740, %v5143, %v5142
        %5145 = vrot.lane.b32.xlu0 %v5144, 64
        %v5146 = vpop.permute.xlu0 %5145
        %5148 = vst.msk [vmem:[%s379 + $0x28] sm:$0xff] %vm3876, %v5146
        %v5149 = vld [vmem:[#allocation4 + $0x17] sm:$0x1]
        %v5150 = vld [vmem:[#allocation4 + $0x37] sm:$0x1]
        %v5151 = vld [vmem:[#allocation4 + $0x57] sm:$0x1]
        %v5152 = vld [vmem:[#allocation4 + $0x77] sm:$0x1]
        %v5153 = vld [vmem:[#allocation4 + $0x97] sm:$0x1]
        %v5154 = vld [vmem:[#allocation4 + $0xb7] sm:$0x1]
        %v5155 = vld [vmem:[#allocation4 + $0xd7] sm:$0x1]
        %v5156 = vld [vmem:[#allocation4 + $0xf7] sm:$0x1]
        %5157 = vrot.lane.b32.xlu0 %v3655, 32
        %v5158 = vpop.permute.xlu0 %5157
        %5159 = vrot.lane.b32.xlu0 %v4970, 32
        %v5160 = vpop.permute.xlu0 %5159
        %5161 = vrot.lane.b32.xlu0 %v4971, 32
        %v5162 = vpop.permute.xlu0 %5161
        %5163 = vrot.lane.b32.xlu0 %v4972, 32
        %v5164 = vpop.permute.xlu0 %5163
        %5165 = vrot.lane.b32.xlu0 %v4973, 32
        %v5166 = vpop.permute.xlu0 %5165
        %5167 = vrot.lane.b32.xlu0 %v4974, 32
        %v5168 = vpop.permute.xlu0 %5167
        %5169 = vrot.lane.b32.xlu0 %v4975, 32
        %v5170 = vpop.permute.xlu0 %5169
        %5171 = vrot.lane.b32.xlu0 %v4976, 32
        %v5172 = vpop.permute.xlu0 %5171
        %v5181 = vmul.f32 %v5149, %v5158
        %v5182 = vmul.f32 %v5150, %v5160
        %v5183 = vmul.f32 %v5151, %v5162
        %v5184 = vmul.f32 %v5152, %v5164
        %v5185 = vmul.f32 %v5153, %v5166
        %v5186 = vmul.f32 %v5154, %v5168
        %v5187 = vmul.f32 %v5155, %v5170
        %v5188 = vmul.f32 %v5156, %v5172
        %v5197 = vrot.slane %v5182, 7
        %v5198 = vsel %vm1104, %v5197, %v5181
        %v5199 = vrot.slane %v5183, 6
        %v5200 = vsel %vm1108, %v5199, %v5198
        %v5201 = vrot.slane %v5184, 5
        %v5202 = vsel %vm1112, %v5201, %v5200
        %v5203 = vrot.slane %v5185, 4
        %v5204 = vsel %vm3731, %v5203, %v5202
        %v5205 = vrot.slane %v5186, 3
        %v5206 = vsel %vm3734, %v5205, %v5204
        %v5207 = vrot.slane %v5187, 2
        %v5208 = vsel %vm3737, %v5207, %v5206
        %v5209 = vrot.slane %v5188, 1
        %v5210 = vsel %vm3740, %v5209, %v5208
        %5211 = vrot.lane.b32.xlu0 %v5210, 96
        %v5212 = vpop.permute.xlu0 %5211
        %5214 = vst.msk [vmem:[%s379 + $0x28] sm:$0xff] %vm3943, %v5212
        %v5215 = vld [vmem:[#allocation4 + $0x18] sm:$0x1]
        %v5216 = vld [vmem:[#allocation4 + $0x38] sm:$0x1]
        %v5217 = vld [vmem:[#allocation4 + $0x58] sm:$0x1]
        %v5218 = vld [vmem:[#allocation4 + $0x78] sm:$0x1]
        %v5219 = vld [vmem:[#allocation4 + $0x98] sm:$0x1]
        %v5220 = vld [vmem:[#allocation4 + $0xb8] sm:$0x1]
        %v5221 = vld [vmem:[#allocation4 + $0xd8] sm:$0x1]
        %v5222 = vld [vmem:[#allocation4 + $0xf8] sm:$0x1]
        %v5224 = vrot.slane %v3668, 1
        %v5225 = vrot.slane %v3668, 2
        %v5226 = vrot.slane %v3668, 3
        %v5227 = vrot.slane %v3668, 4
        %v5228 = vrot.slane %v3668, 5
        %v5229 = vrot.slane %v3668, 6
        %v5230 = vrot.slane %v3668, 7
        %v5239 = vmul.f32 %v5215, %v3668
        %v5240 = vmul.f32 %v5216, %v5224
        %v5241 = vmul.f32 %v5217, %v5225
        %v5242 = vmul.f32 %v5218, %v5226
        %v5243 = vmul.f32 %v5219, %v5227
        %v5244 = vmul.f32 %v5220, %v5228
        %v5245 = vmul.f32 %v5221, %v5229
        %v5246 = vmul.f32 %v5222, %v5230
        %v5255 = vrot.slane %v5240, 7
        %v5256 = vsel %vm1104, %v5255, %v5239
        %v5257 = vrot.slane %v5241, 6
        %v5258 = vsel %vm1108, %v5257, %v5256
        %v5259 = vrot.slane %v5242, 5
        %v5260 = vsel %vm1112, %v5259, %v5258
        %v5261 = vrot.slane %v5243, 4
        %v5262 = vsel %vm3731, %v5261, %v5260
        %v5263 = vrot.slane %v5244, 3
        %v5264 = vsel %vm3734, %v5263, %v5262
        %v5265 = vrot.slane %v5245, 2
        %v5266 = vsel %vm3737, %v5265, %v5264
        %v5267 = vrot.slane %v5246, 1
        %v5268 = vsel %vm3740, %v5267, %v5266
        %5270 = vst.msk [vmem:[%s379 + $0x30] sm:$0xff] %vm3487, %v5268
        %v5271 = vld [vmem:[#allocation4 + $0x19] sm:$0x1]
        %v5272 = vld [vmem:[#allocation4 + $0x39] sm:$0x1]
        %v5273 = vld [vmem:[#allocation4 + $0x59] sm:$0x1]
        %v5274 = vld [vmem:[#allocation4 + $0x79] sm:$0x1]
        %v5275 = vld [vmem:[#allocation4 + $0x99] sm:$0x1]
        %v5276 = vld [vmem:[#allocation4 + $0xb9] sm:$0x1]
        %v5277 = vld [vmem:[#allocation4 + $0xd9] sm:$0x1]
        %v5278 = vld [vmem:[#allocation4 + $0xf9] sm:$0x1]
        %5279 = vrot.lane.b32.xlu0 %v3668, 96
        %v5280 = vpop.permute.xlu0 %5279
        %5281 = vrot.lane.b32.xlu0 %v5224, 96
        %v5282 = vpop.permute.xlu0 %5281
        %5283 = vrot.lane.b32.xlu0 %v5225, 96
        %v5284 = vpop.permute.xlu0 %5283
        %5285 = vrot.lane.b32.xlu0 %v5226, 96
        %v5286 = vpop.permute.xlu0 %5285
        %5287 = vrot.lane.b32.xlu0 %v5227, 96
        %v5288 = vpop.permute.xlu0 %5287
        %5289 = vrot.lane.b32.xlu0 %v5228, 96
        %v5290 = vpop.permute.xlu0 %5289
        %5291 = vrot.lane.b32.xlu0 %v5229, 96
        %v5292 = vpop.permute.xlu0 %5291
        %5293 = vrot.lane.b32.xlu0 %v5230, 96
        %v5294 = vpop.permute.xlu0 %5293
        %v5303 = vmul.f32 %v5271, %v5280
        %v5304 = vmul.f32 %v5272, %v5282
        %v5305 = vmul.f32 %v5273, %v5284
        %v5306 = vmul.f32 %v5274, %v5286
        %v5307 = vmul.f32 %v5275, %v5288
        %v5308 = vmul.f32 %v5276, %v5290
        %v5309 = vmul.f32 %v5277, %v5292
        %v5310 = vmul.f32 %v5278, %v5294
        %v5319 = vrot.slane %v5304, 7
        %v5320 = vsel %vm1104, %v5319, %v5303
        %v5321 = vrot.slane %v5305, 6
        %v5322 = vsel %vm1108, %v5321, %v5320
        %v5323 = vrot.slane %v5306, 5
        %v5324 = vsel %vm1112, %v5323, %v5322
        %v5325 = vrot.slane %v5307, 4
        %v5326 = vsel %vm3731, %v5325, %v5324
        %v5327 = vrot.slane %v5308, 3
        %v5328 = vsel %vm3734, %v5327, %v5326
        %v5329 = vrot.slane %v5309, 2
        %v5330 = vsel %vm3737, %v5329, %v5328
        %v5331 = vrot.slane %v5310, 1
        %v5332 = vsel %vm3740, %v5331, %v5330
        %5333 = vrot.lane.b32.xlu0 %v5332, 32
        %v5334 = vpop.permute.xlu0 %5333
        %5336 = vst.msk [vmem:[%s379 + $0x30] sm:$0xff] %vm3809, %v5334
        %v5337 = vld [vmem:[#allocation4 + $0x1a] sm:$0x1]
        %v5338 = vld [vmem:[#allocation4 + $0x3a] sm:$0x1]
        %v5339 = vld [vmem:[#allocation4 + $0x5a] sm:$0x1]
        %v5340 = vld [vmem:[#allocation4 + $0x7a] sm:$0x1]
        %v5341 = vld [vmem:[#allocation4 + $0x9a] sm:$0x1]
        %v5342 = vld [vmem:[#allocation4 + $0xba] sm:$0x1]
        %v5343 = vld [vmem:[#allocation4 + $0xda] sm:$0x1]
        %v5344 = vld [vmem:[#allocation4 + $0xfa] sm:$0x1]
        %5345 = vrot.lane.b32.xlu0 %v3668, 64
        %v5346 = vpop.permute.xlu0 %5345
        %5347 = vrot.lane.b32.xlu0 %v5224, 64
        %v5348 = vpop.permute.xlu0 %5347
        %5349 = vrot.lane.b32.xlu0 %v5225, 64
        %v5350 = vpop.permute.xlu0 %5349
        %5351 = vrot.lane.b32.xlu0 %v5226, 64
        %v5352 = vpop.permute.xlu0 %5351
        %5353 = vrot.lane.b32.xlu0 %v5227, 64
        %v5354 = vpop.permute.xlu0 %5353
        %5355 = vrot.lane.b32.xlu0 %v5228, 64
        %v5356 = vpop.permute.xlu0 %5355
        %5357 = vrot.lane.b32.xlu0 %v5229, 64
        %v5358 = vpop.permute.xlu0 %5357
        %5359 = vrot.lane.b32.xlu0 %v5230, 64
        %v5360 = vpop.permute.xlu0 %5359
        %v5369 = vmul.f32 %v5337, %v5346
        %v5370 = vmul.f32 %v5338, %v5348
        %v5371 = vmul.f32 %v5339, %v5350
        %v5372 = vmul.f32 %v5340, %v5352
        %v5373 = vmul.f32 %v5341, %v5354
        %v5374 = vmul.f32 %v5342, %v5356
        %v5375 = vmul.f32 %v5343, %v5358
        %v5376 = vmul.f32 %v5344, %v5360
        %v5385 = vrot.slane %v5370, 7
        %v5386 = vsel %vm1104, %v5385, %v5369
        %v5387 = vrot.slane %v5371, 6
        %v5388 = vsel %vm1108, %v5387, %v5386
        %v5389 = vrot.slane %v5372, 5
        %v5390 = vsel %vm1112, %v5389, %v5388
        %v5391 = vrot.slane %v5373, 4
        %v5392 = vsel %vm3731, %v5391, %v5390
        %v5393 = vrot.slane %v5374, 3
        %v5394 = vsel %vm3734, %v5393, %v5392
        %v5395 = vrot.slane %v5375, 2
        %v5396 = vsel %vm3737, %v5395, %v5394
        %v5397 = vrot.slane %v5376, 1
        %v5398 = vsel %vm3740, %v5397, %v5396
        %5399 = vrot.lane.b32.xlu0 %v5398, 64
        %v5400 = vpop.permute.xlu0 %5399
        %5402 = vst.msk [vmem:[%s379 + $0x30] sm:$0xff] %vm3876, %v5400
        %v5403 = vld [vmem:[#allocation4 + $0x1b] sm:$0x1]
        %v5404 = vld [vmem:[#allocation4 + $0x3b] sm:$0x1]
        %v5405 = vld [vmem:[#allocation4 + $0x5b] sm:$0x1]
        %v5406 = vld [vmem:[#allocation4 + $0x7b] sm:$0x1]
        %v5407 = vld [vmem:[#allocation4 + $0x9b] sm:$0x1]
        %v5408 = vld [vmem:[#allocation4 + $0xbb] sm:$0x1]
        %v5409 = vld [vmem:[#allocation4 + $0xdb] sm:$0x1]
        %v5410 = vld [vmem:[#allocation4 + $0xfb] sm:$0x1]
        %5411 = vrot.lane.b32.xlu0 %v3668, 32
        %v5412 = vpop.permute.xlu0 %5411
        %5413 = vrot.lane.b32.xlu0 %v5224, 32
        %v5414 = vpop.permute.xlu0 %5413
        %5415 = vrot.lane.b32.xlu0 %v5225, 32
        %v5416 = vpop.permute.xlu0 %5415
        %5417 = vrot.lane.b32.xlu0 %v5226, 32
        %v5418 = vpop.permute.xlu0 %5417
        %5419 = vrot.lane.b32.xlu0 %v5227, 32
        %v5420 = vpop.permute.xlu0 %5419
        %5421 = vrot.lane.b32.xlu0 %v5228, 32
        %v5422 = vpop.permute.xlu0 %5421
        %5423 = vrot.lane.b32.xlu0 %v5229, 32
        %v5424 = vpop.permute.xlu0 %5423
        %5425 = vrot.lane.b32.xlu0 %v5230, 32
        %v5426 = vpop.permute.xlu0 %5425
        %v5435 = vmul.f32 %v5403, %v5412
        %v5436 = vmul.f32 %v5404, %v5414
        %v5437 = vmul.f32 %v5405, %v5416
        %v5438 = vmul.f32 %v5406, %v5418
        %v5439 = vmul.f32 %v5407, %v5420
        %v5440 = vmul.f32 %v5408, %v5422
        %v5441 = vmul.f32 %v5409, %v5424
        %v5442 = vmul.f32 %v5410, %v5426
        %v5451 = vrot.slane %v5436, 7
        %v5452 = vsel %vm1104, %v5451, %v5435
        %v5453 = vrot.slane %v5437, 6
        %v5454 = vsel %vm1108, %v5453, %v5452
        %v5455 = vrot.slane %v5438, 5
        %v5456 = vsel %vm1112, %v5455, %v5454
        %v5457 = vrot.slane %v5439, 4
        %v5458 = vsel %vm3731, %v5457, %v5456
        %v5459 = vrot.slane %v5440, 3
        %v5460 = vsel %vm3734, %v5459, %v5458
        %v5461 = vrot.slane %v5441, 2
        %v5462 = vsel %vm3737, %v5461, %v5460
        %v5463 = vrot.slane %v5442, 1
        %v5464 = vsel %vm3740, %v5463, %v5462
        %5465 = vrot.lane.b32.xlu0 %v5464, 96
        %v5466 = vpop.permute.xlu0 %5465
        %5468 = vst.msk [vmem:[%s379 + $0x30] sm:$0xff] %vm3943, %v5466
        %v5469 = vld [vmem:[#allocation4 + $0x1c] sm:$0x1]
        %v5470 = vld [vmem:[#allocation4 + $0x3c] sm:$0x1]
        %v5471 = vld [vmem:[#allocation4 + $0x5c] sm:$0x1]
        %v5472 = vld [vmem:[#allocation4 + $0x7c] sm:$0x1]
        %v5473 = vld [vmem:[#allocation4 + $0x9c] sm:$0x1]
        %v5474 = vld [vmem:[#allocation4 + $0xbc] sm:$0x1]
        %v5475 = vld [vmem:[#allocation4 + $0xdc] sm:$0x1]
        %v5476 = vld [vmem:[#allocation4 + $0xfc] sm:$0x1]
        %v5478 = vrot.slane %v3681, 1
        %v5479 = vrot.slane %v3681, 2
        %v5480 = vrot.slane %v3681, 3
        %v5481 = vrot.slane %v3681, 4
        %v5482 = vrot.slane %v3681, 5
        %v5483 = vrot.slane %v3681, 6
        %v5484 = vrot.slane %v3681, 7
        %v5493 = vmul.f32 %v5469, %v3681
        %v5494 = vmul.f32 %v5470, %v5478
        %v5495 = vmul.f32 %v5471, %v5479
        %v5496 = vmul.f32 %v5472, %v5480
        %v5497 = vmul.f32 %v5473, %v5481
        %v5498 = vmul.f32 %v5474, %v5482
        %v5499 = vmul.f32 %v5475, %v5483
        %v5500 = vmul.f32 %v5476, %v5484
        %v5509 = vrot.slane %v5494, 7
        %v5510 = vsel %vm1104, %v5509, %v5493
        %v5511 = vrot.slane %v5495, 6
        %v5512 = vsel %vm1108, %v5511, %v5510
        %v5513 = vrot.slane %v5496, 5
        %v5514 = vsel %vm1112, %v5513, %v5512
        %v5515 = vrot.slane %v5497, 4
        %v5516 = vsel %vm3731, %v5515, %v5514
        %v5517 = vrot.slane %v5498, 3
        %v5518 = vsel %vm3734, %v5517, %v5516
        %v5519 = vrot.slane %v5499, 2
        %v5520 = vsel %vm3737, %v5519, %v5518
        %v5521 = vrot.slane %v5500, 1
        %v5522 = vsel %vm3740, %v5521, %v5520
        %5524 = vst.msk [vmem:[%s379 + $0x38] sm:$0xff] %vm3487, %v5522
        %v5525 = vld [vmem:[#allocation4 + $0x1d] sm:$0x1]
        %v5526 = vld [vmem:[#allocation4 + $0x3d] sm:$0x1]
        %v5527 = vld [vmem:[#allocation4 + $0x5d] sm:$0x1]
        %v5528 = vld [vmem:[#allocation4 + $0x7d] sm:$0x1]
        %v5529 = vld [vmem:[#allocation4 + $0x9d] sm:$0x1]
        %v5530 = vld [vmem:[#allocation4 + $0xbd] sm:$0x1]
        %v5531 = vld [vmem:[#allocation4 + $0xdd] sm:$0x1]
        %v5532 = vld [vmem:[#allocation4 + $0xfd] sm:$0x1]
        %5533 = vrot.lane.b32.xlu0 %v3681, 96
        %v5534 = vpop.permute.xlu0 %5533
        %5535 = vrot.lane.b32.xlu0 %v5478, 96
        %v5536 = vpop.permute.xlu0 %5535
        %5537 = vrot.lane.b32.xlu0 %v5479, 96
        %v5538 = vpop.permute.xlu0 %5537
        %5539 = vrot.lane.b32.xlu0 %v5480, 96
        %v5540 = vpop.permute.xlu0 %5539
        %5541 = vrot.lane.b32.xlu0 %v5481, 96
        %v5542 = vpop.permute.xlu0 %5541
        %5543 = vrot.lane.b32.xlu0 %v5482, 96
        %v5544 = vpop.permute.xlu0 %5543
        %5545 = vrot.lane.b32.xlu0 %v5483, 96
        %v5546 = vpop.permute.xlu0 %5545
        %5547 = vrot.lane.b32.xlu0 %v5484, 96
        %v5548 = vpop.permute.xlu0 %5547
        %v5557 = vmul.f32 %v5525, %v5534
        %v5558 = vmul.f32 %v5526, %v5536
        %v5559 = vmul.f32 %v5527, %v5538
        %v5560 = vmul.f32 %v5528, %v5540
        %v5561 = vmul.f32 %v5529, %v5542
        %v5562 = vmul.f32 %v5530, %v5544
        %v5563 = vmul.f32 %v5531, %v5546
        %v5564 = vmul.f32 %v5532, %v5548
        %v5573 = vrot.slane %v5558, 7
        %v5574 = vsel %vm1104, %v5573, %v5557
        %v5575 = vrot.slane %v5559, 6
        %v5576 = vsel %vm1108, %v5575, %v5574
        %v5577 = vrot.slane %v5560, 5
        %v5578 = vsel %vm1112, %v5577, %v5576
        %v5579 = vrot.slane %v5561, 4
        %v5580 = vsel %vm3731, %v5579, %v5578
        %v5581 = vrot.slane %v5562, 3
        %v5582 = vsel %vm3734, %v5581, %v5580
        %v5583 = vrot.slane %v5563, 2
        %v5584 = vsel %vm3737, %v5583, %v5582
        %v5585 = vrot.slane %v5564, 1
        %v5586 = vsel %vm3740, %v5585, %v5584
        %5587 = vrot.lane.b32.xlu0 %v5586, 32
        %v5588 = vpop.permute.xlu0 %5587
        %5590 = vst.msk [vmem:[%s379 + $0x38] sm:$0xff] %vm3809, %v5588
        %v5591 = vld [vmem:[#allocation4 + $0x1e] sm:$0x1]
        %v5592 = vld [vmem:[#allocation4 + $0x3e] sm:$0x1]
        %v5593 = vld [vmem:[#allocation4 + $0x5e] sm:$0x1]
        %v5594 = vld [vmem:[#allocation4 + $0x7e] sm:$0x1]
        %v5595 = vld [vmem:[#allocation4 + $0x9e] sm:$0x1]
        %v5596 = vld [vmem:[#allocation4 + $0xbe] sm:$0x1]
        %v5597 = vld [vmem:[#allocation4 + $0xde] sm:$0x1]
        %v5598 = vld [vmem:[#allocation4 + $0xfe] sm:$0x1]
        %5599 = vrot.lane.b32.xlu0 %v3681, 64
        %v5600 = vpop.permute.xlu0 %5599
        %5601 = vrot.lane.b32.xlu0 %v5478, 64
        %v5602 = vpop.permute.xlu0 %5601
        %5603 = vrot.lane.b32.xlu0 %v5479, 64
        %v5604 = vpop.permute.xlu0 %5603
        %5605 = vrot.lane.b32.xlu0 %v5480, 64
        %v5606 = vpop.permute.xlu0 %5605
        %5607 = vrot.lane.b32.xlu0 %v5481, 64
        %v5608 = vpop.permute.xlu0 %5607
        %5609 = vrot.lane.b32.xlu0 %v5482, 64
        %v5610 = vpop.permute.xlu0 %5609
        %5611 = vrot.lane.b32.xlu0 %v5483, 64
        %v5612 = vpop.permute.xlu0 %5611
        %5613 = vrot.lane.b32.xlu0 %v5484, 64
        %v5614 = vpop.permute.xlu0 %5613
        %v5623 = vmul.f32 %v5591, %v5600
        %v5624 = vmul.f32 %v5592, %v5602
        %v5625 = vmul.f32 %v5593, %v5604
        %v5626 = vmul.f32 %v5594, %v5606
        %v5627 = vmul.f32 %v5595, %v5608
        %v5628 = vmul.f32 %v5596, %v5610
        %v5629 = vmul.f32 %v5597, %v5612
        %v5630 = vmul.f32 %v5598, %v5614
        %v5639 = vrot.slane %v5624, 7
        %v5640 = vsel %vm1104, %v5639, %v5623
        %v5641 = vrot.slane %v5625, 6
        %v5642 = vsel %vm1108, %v5641, %v5640
        %v5643 = vrot.slane %v5626, 5
        %v5644 = vsel %vm1112, %v5643, %v5642
        %v5645 = vrot.slane %v5627, 4
        %v5646 = vsel %vm3731, %v5645, %v5644
        %v5647 = vrot.slane %v5628, 3
        %v5648 = vsel %vm3734, %v5647, %v5646
        %v5649 = vrot.slane %v5629, 2
        %v5650 = vsel %vm3737, %v5649, %v5648
        %v5651 = vrot.slane %v5630, 1
        %v5652 = vsel %vm3740, %v5651, %v5650
        %5653 = vrot.lane.b32.xlu0 %v5652, 64
        %v5654 = vpop.permute.xlu0 %5653
        %5656 = vst.msk [vmem:[%s379 + $0x38] sm:$0xff] %vm3876, %v5654
        %v5657 = vld [vmem:[#allocation4 + $0x1f] sm:$0x1]
        %v5658 = vld [vmem:[#allocation4 + $0x3f] sm:$0x1]
        %v5659 = vld [vmem:[#allocation4 + $0x5f] sm:$0x1]
        %v5660 = vld [vmem:[#allocation4 + $0x7f] sm:$0x1]
        %v5661 = vld [vmem:[#allocation4 + $0x9f] sm:$0x1]
        %v5662 = vld [vmem:[#allocation4 + $0xbf] sm:$0x1]
        %v5663 = vld [vmem:[#allocation4 + $0xdf] sm:$0x1]
        %v5664 = vld [vmem:[#allocation4 + $0xff] sm:$0x1]
        %5665 = vrot.lane.b32.xlu0 %v3681, 32
        %v5666 = vpop.permute.xlu0 %5665
        %5667 = vrot.lane.b32.xlu0 %v5478, 32
        %v5668 = vpop.permute.xlu0 %5667
        %5669 = vrot.lane.b32.xlu0 %v5479, 32
        %v5670 = vpop.permute.xlu0 %5669
        %5671 = vrot.lane.b32.xlu0 %v5480, 32
        %v5672 = vpop.permute.xlu0 %5671
        %5673 = vrot.lane.b32.xlu0 %v5481, 32
        %v5674 = vpop.permute.xlu0 %5673
        %5675 = vrot.lane.b32.xlu0 %v5482, 32
        %v5676 = vpop.permute.xlu0 %5675
        %5677 = vrot.lane.b32.xlu0 %v5483, 32
        %v5678 = vpop.permute.xlu0 %5677
        %5679 = vrot.lane.b32.xlu0 %v5484, 32
        %v5680 = vpop.permute.xlu0 %5679
        %v5689 = vmul.f32 %v5657, %v5666
        %v5690 = vmul.f32 %v5658, %v5668
        %v5691 = vmul.f32 %v5659, %v5670
        %v5692 = vmul.f32 %v5660, %v5672
        %v5693 = vmul.f32 %v5661, %v5674
        %v5694 = vmul.f32 %v5662, %v5676
        %v5695 = vmul.f32 %v5663, %v5678
        %v5696 = vmul.f32 %v5664, %v5680
        %v5705 = vrot.slane %v5690, 7
        %v5706 = vsel %vm1104, %v5705, %v5689
        %v5707 = vrot.slane %v5691, 6
        %v5708 = vsel %vm1108, %v5707, %v5706
        %v5709 = vrot.slane %v5692, 5
        %v5710 = vsel %vm1112, %v5709, %v5708
        %v5711 = vrot.slane %v5693, 4
        %v5712 = vsel %vm3731, %v5711, %v5710
        %v5713 = vrot.slane %v5694, 3
        %v5714 = vsel %vm3734, %v5713, %v5712
        %v5715 = vrot.slane %v5695, 2
        %v5716 = vsel %vm3737, %v5715, %v5714
        %v5717 = vrot.slane %v5696, 1
        %v5718 = vsel %vm3740, %v5717, %v5716
        %5719 = vrot.lane.b32.xlu0 %v5718, 96
        %v5720 = vpop.permute.xlu0 %5719
        %5722 = vst.msk [vmem:[%s379 + $0x38] sm:$0xff] %vm3943, %v5720
        %s5723 = sand.u32 %s242, 1
        %s5724 = scalar_lea.sflag [#allocation6], %s5723
        %s5725 = sand.u32 %s242, 1
        %s5726 = smul.addr %s5725, 64
        %s5727 = scalar_lea.vmem [#allocation5], %s5726
        // Predicated region
        $region53: #{tpu_custom_call.1} parent=51 // pred_check
          %p5728 = pneg %p252
        $region54: #{tpu_custom_call.1} parent=51 // pred_check_branch
          %5730 = sbr.rel (%p5728) target = $region56
        $region55: #{tpu_custom_call.1} parent=51 // pred_region
          %5732 = vsyncadd %s5724, 0
          %s5733 = smul.addr %s27, 8
          %s5734 = smul.addr %s26, 8
          %s5735 = sadd.s32 %s5733, %s5734
          %s5736 = smul.addr %s5735, 8
          %s5737 = scalar_lea.hbm %s8, %s5736
          %s5739 = sshll.u32 %s5727, 4
          %s5740 = int_to_ptr.vmem [resolvable:$true] %s5739
          %s5741 = sshll.u32 %s5737, 4
          %s5742 = int_to_ptr.hbm [resolvable:$true] %s5741
          %5744 = dma.vmem_to_hbm [thread:$0]  %s5740, 1024, %s5742, %s5724
        $region56: #{tpu_custom_call.1} parent=51 // pred_fallthru
          _
      $region52: #{tpu_custom_call.1} parent=5 // pred_fallthru
        _
      %p5745 = scmp.le.s32.totalorder 2, %s17
      // Predicated region
      $region57: #{tpu_custom_call.1} parent=5 // pred_check
        %p5746 = pneg %p5745
      $region58: #{tpu_custom_call.1} parent=5 // pred_check_branch
        %5748 = sbr.rel (%p5746) target = $region60
      $region59: #{tpu_custom_call.1} parent=5 // pred_region
        %s5749 = ssub.s32 %s17, 2
        // Predicated region
        $region61: #{tpu_custom_call.1} parent=59 // pred_check
          %p5750 = pneg %p258
        $region62: #{tpu_custom_call.1} parent=59 // pred_check_branch
          %5752 = sbr.rel (%p5750) target = $region64
        $region63: #{tpu_custom_call.1} parent=59 // pred_region
          %s5753 = sand.u32 %s243, 1
          %s5754 = scalar_lea.sflag [#allocation6], %s5753
          %s5755 = sand.u32 %s243, 1
          %s5756 = smul.addr %s5755, 64
          %s5757 = scalar_lea.vmem [#allocation5], %s5756
          %5759 = dma.done %s5754, 1024
        $region64: #{tpu_custom_call.1} parent=59 // pred_fallthru
          _
      $region60: #{tpu_custom_call.1} parent=5 // pred_fallthru
        _
    $region6: #{tpu_custom_call.1} parent=1 // loop_footer
      %s21 = sadd.s32 1, %s17
    $region7: #{tpu_custom_call.1} parent=1 // loop_footer_branch
      %16 = sbr.rel target = $region3
    $region8: #{tpu_custom_call.1} parent=1 // loop_exit
      _
    %5760 = vsyncpa [#allocation6], 1
    %s5761 = scalar_lea.sflag [#allocation6], 1
    %5762 = vsyncpa %s5761, 1

</llo_original>
